<compile_context>
chip_gen: v7x
topology: tpu7x:2x2x1
jax: 0.10.0
libtpu: 0.0.40
codegen_flags: <defaults>
</compile_context>

<pallas_src>
import functools

import jax
import jax.numpy as jnp
from jax import lax
from jax.experimental import pallas as pl
from jax.experimental.pallas import tpu as pltpu

LANE = 128  # label head padded to one full lane width


def lstm_forward_kernel(word_ids_ref, feat_ids_ref,   # SMEM int32 (B, T)
                        wembW_ref, fembW_ref,          # VMEM (V, 4H), (F, 4H)
                        whh_t_ref,                     # VMEM (H, 4H)
                        wlab_ref, blab_ref,            # VMEM (H, 128), (1, 128)
                        out_ref,                       # VMEM (B, 128)
                        gates_scratch):                # VMEM scratch (T*B, 4H)
    B, T = word_ids_ref.shape
    H = whh_t_ref.shape[0]

    # --- Fused embedding gather + input projection + bias.
    #     wembW / fembW already hold embeds @ W_ih (word / feature halves) with
    #     the summed LSTM bias folded into fembW, so each (t, b) row is two
    #     lane-dense (1, 4H) dynamic row reads and one add -- no in-kernel
    #     input matmul, no masked sub-lane-width stores.
    for t in range(T):
        for b in range(B):
            wi = word_ids_ref[b, t]
            fi = feat_ids_ref[b, t]
            row = t * B + b
            gates_scratch[row:row + 1, :] = (wembW_ref[pl.ds(wi, 1), :] +
                                             fembW_ref[pl.ds(fi, 1), :])

    whh_t = whh_t_ref[...]                     # (H, 4H)
    h = jnp.zeros((B, H), jnp.float32)
    c = jnp.zeros((B, H), jnp.float32)

    # --- Fully unrolled recurrence, batched across sublanes: every step is one
    #     (B, H) @ (H, 4H) MXU push + full-width EUP pushes shared by all B
    #     samples.  Default matmul precision on purpose (single bf16 pass with
    #     f32 accumulation); forcing exact-f32 emulation would multiply the
    #     per-step MXU latency on the serial h-dependency chain.
    # TODO(synk): if the bundle dump shows Mosaic re-pushing whh_t into the MXU
    # weight registers every step, switch to explicit pltpu.matmul_push_rhs /
    # matmul_acc_lhs / matmul_pop to keep the RHS resident across all 8 steps.
    for t in range(T):
        z = gates_scratch[t * B:(t + 1) * B, :] + jnp.dot(
            h, whh_t, preferred_element_type=jnp.float32)           # (B, 4H)
        sig = jax.nn.sigmoid(z)            # one full-width EUP op covers i,f,o
        g = jnp.tanh(z[:, 2 * H:3 * H])    # tanh only on the g lanes
        i = sig[:, 0:H]
        f = sig[:, H:2 * H]
        o = sig[:, 3 * H:4 * H]
        c = f * c + i * g
        h = o * jnp.tanh(c)

    # --- Lane-dense label head + log_softmax. Padded lanes have zero weights
    #     and a -1e30 bias so they contribute nothing to the log-sum-exp; the
    #     wrapper slices the first num_labels lanes.
    tag = jnp.dot(h, wlab_ref[...],
                  preferred_element_type=jnp.float32) + blab_ref[...]   # (B, 128)
    m = jnp.max(tag, axis=-1, keepdims=True)
    lse = jnp.log(jnp.sum(jnp.exp(tag - m), axis=-1, keepdims=True)) + m
    out_ref[...] = tag - lse


def prepare_params(params):
    """One-time weight prep: fold embeddings into W_ih (gather == projection),
    fold the summed LSTM bias into the feature table, transpose W_hh, and
    zero / -1e30 lane-pad the label head.  Padded w_label columns MUST stay
    exactly zero for the -1e30 bias trick to be safe."""
    E = params["word_embeds"].shape[1]
    H = params["w_hh"].shape[1]
    L = params["w_label"].shape[0]
    hp = jax.lax.Precision.HIGHEST            # one-time, off the critical path

    wih_t = params["w_ih"].T.astype(jnp.float32)                     # (2E, 4H)
    b_sum = (params["b_ih"] + params["b_hh"]).astype(jnp.float32)    # (4H,)

    wembW = jnp.dot(params["word_embeds"].astype(jnp.float32),
                    wih_t[:E], precision=hp)                          # (V, 4H)
    fembW = jnp.dot(params["feature_embeds"].astype(jnp.float32),
                    wih_t[E:], precision=hp) + b_sum                  # (F, 4H)

    wlab_pad = jnp.zeros((H, LANE), jnp.float32).at[:, :L].set(
        params["w_label"].T.astype(jnp.float32))
    blab_pad = jnp.full((LANE,), -1e30, jnp.float32).at[:L].set(
        params["b_label"].astype(jnp.float32)).reshape(1, LANE)

    return {
        "wembW": wembW,                                               # (V, 4H)
        "fembW": fembW,                                               # (F, 4H)
        "whh_t": params["w_hh"].T.astype(jnp.float32),                # (H, 4H)
        "wlab_pad": wlab_pad,                                         # (H, 128)
        "blab_pad": blab_pad,                                         # (1, 128)
    }


@functools.partial(jax.jit, static_argnums=(3,))
def model_forward_batched(word_vecs, feature_vecs, prepped, num_labels):
    """Batched forward: word_vecs / feature_vecs are (B, T) int ids.  Each row
    is processed with exactly the original Model.forward semantics (zero
    initial hidden state, last hidden state -> linear head -> log_softmax).
    Returns (B, num_labels)."""
    B, T = word_vecs.shape
    V = prepped["wembW"].shape[0]
    F = prepped["fembW"].shape[0]
    G = prepped["wembW"].shape[1]             # 4H

    # Clamp ids: dynamic VMEM sublane reads are not bounds-checked.
    wids = jnp.clip(word_vecs.astype(jnp.int32), 0, V - 1)
    fids = jnp.clip(feature_vecs.astype(jnp.int32), 0, F - 1)

    vmem = pl.BlockSpec(memory_space=pltpu.MemorySpace.VMEM)
    smem = pl.BlockSpec(memory_space=pltpu.MemorySpace.SMEM)

    out_pad = pl.pallas_call(
        lstm_forward_kernel,
        out_shape=jax.ShapeDtypeStruct((B, LANE), jnp.float32),
        in_specs=[smem, smem] + [vmem] * 5,
        out_specs=vmem,
        scratch_shapes=[pltpu.VMEM((T * B, G), jnp.float32)],
    )(wids, fids,
      prepped["wembW"], prepped["fembW"], prepped["whh_t"],
      prepped["wlab_pad"], prepped["blab_pad"])

    return out_pad[:, :num_labels]


def model_forward(word_vec, feature_vec, prepped, num_labels):
    """Single-sequence entry point mirroring Model.forward: (T,) ids in,
    (1, num_labels) log-probs out."""
    return model_forward_batched(word_vec[None, :], feature_vec[None, :],
                                 prepped, num_labels)


def reference_forward(word_vec, feature_vec, params):
    """Pure-JAX reference of the same math (PyTorch LSTM semantics)."""
    we = params["word_embeds"][word_vec]
    fe = params["feature_embeds"][feature_vec]
    x = jnp.concatenate([we, fe], axis=-1)
    H = params["w_hh"].shape[1]

    def step(carry, x_t):
        h, c = carry
        z = (x_t @ params["w_ih"].T + params["b_ih"]
             + h @ params["w_hh"].T + params["b_hh"])
        i = jax.nn.sigmoid(z[0:H])
        f = jax.nn.sigmoid(z[H:2 * H])
        g = jnp.tanh(z[2 * H:3 * H])
        o = jax.nn.sigmoid(z[3 * H:4 * H])
        c = f * c + i * g
        h = o * jnp.tanh(c)
        return (h, c), None

    (h, _), _ = lax.scan(step, (jnp.zeros((H,)), jnp.zeros((H,))), x)
    tag = h @ params["w_label"].T + params["b_label"]
    return jax.nn.log_softmax(tag)[None, :]


def make_params(key, vocab_size, num_features, emb_size, hidden_dim, num_labels):
    ks = jax.random.split(key, 8)
    u = lambda k, shape, s=0.1: jax.random.uniform(k, shape, jnp.float32, -s, s)
    return {
        "word_embeds": u(ks[0], (vocab_size, emb_size), 1.0),
        "feature_embeds": u(ks[1], (num_features, emb_size), 1.0),
        "w_ih": u(ks[2], (4 * hidden_dim, 2 * emb_size)),
        "w_hh": u(ks[3], (4 * hidden_dim, hidden_dim)),
        "b_ih": u(ks[4], (4 * hidden_dim,)),
        "b_hh": u(ks[5], (4 * hidden_dim,)),
        "w_label": u(ks[6], (num_labels, hidden_dim)),
        "b_label": u(ks[7], (num_labels,)),
    }


if __name__ == "__main__":
    T = 8            # sequence length
    B = 8            # batch of sequences per kernel call (sublane-vectorized)
    VOCAB = 50
    NUM_FEATURES = 10
    EMB = 16         # embeddings_size
    HIDDEN = 32      # hidden_dim  -> 4H = 128 = one full lane width
    NUM_LABELS = 2

    key = jax.random.PRNGKey(0)
    k_params, k_word, k_feat = jax.random.split(key, 3)
    params = make_params(k_params, VOCAB, NUM_FEATURES, EMB, HIDDEN, NUM_LABELS)
    prepped = prepare_params(params)   # one-time weight prep (not per call)

    word_mat = jax.random.randint(k_word, (B, T), 0, VOCAB, dtype=jnp.int32)
    feat_mat = jax.random.randint(k_feat, (B, T), 0, NUM_FEATURES, dtype=jnp.int32)

    # Batched kernel call (B sequences amortize launch + weight traffic).
    out = jax.block_until_ready(
        model_forward_batched(word_mat, feat_mat, prepped, NUM_LABELS))
    assert out.shape == (B, NUM_LABELS), out.shape
    for b in range(B):
        ref_b = reference_forward(word_mat[b], feat_mat[b], params)
        assert jnp.allclose(out[b:b + 1], ref_b, atol=1e-4, rtol=1e-4), (b, out[b], ref_b)

    # Single-sequence entry point matching Model.forward exactly.
    out1 = jax.block_until_ready(
        model_forward(word_mat[0], feat_mat[0], prepped, NUM_LABELS))
    ref0 = jax.block_until_ready(reference_forward(word_mat[0], feat_mat[0], params))
    assert out1.shape == (1, NUM_LABELS), out1.shape
    assert jnp.allclose(out1, ref0, atol=1e-4, rtol=1e-4), (out1, ref0)

    # TODO(synk): the nn.Linear `attention` head is defined but unused in
    # Model.forward, and self.hidden statefulness across calls is replaced by
    # the zero init_hidden each call (matching the reference semantics here).
    print("KERNEL_OK")
</pallas_src>

<mosaic_0001>
module attributes {stable_mosaic.version = 11 : i64} {
  func.func @lstm_forward_kernel(%arg0: memref<8x8xi32, #tpu.memory_space<smem>>, %arg1: memref<8x8xi32, #tpu.memory_space<smem>>, %arg2: memref<50x128xf32, #tpu.memory_space<vmem>>, %arg3: memref<10x128xf32, #tpu.memory_space<vmem>>, %arg4: memref<32x128xf32, #tpu.memory_space<vmem>>, %arg5: memref<32x128xf32, #tpu.memory_space<vmem>>, %arg6: memref<1x128xf32, #tpu.memory_space<vmem>>, %arg7: memref<8x128xf32, #tpu.memory_space<vmem>>, %arg8: memref<64x128xf32, #tpu.memory_space<vmem>>) attributes {dimension_semantics = [], scalar_prefetch = 0 : i64, scratch_operands = 1 : i64, tpu.core_type = #tpu.core_type<tc>} {
    %c0 = arith.constant 0 : index
    %c0_0 = arith.constant 0 : index
    %0 = memref.load %arg0[%c0, %c0_0] : memref<8x8xi32, #tpu.memory_space<smem>>
    %c0_1 = arith.constant 0 : index
    %c0_2 = arith.constant 0 : index
    %1 = memref.load %arg1[%c0_1, %c0_2] : memref<8x8xi32, #tpu.memory_space<smem>>
    %2 = arith.index_cast %0 : i32 to index
    %c0_3 = arith.constant 0 : index
    %3 = vector.load %arg2[%2, %c0_3] : memref<50x128xf32, #tpu.memory_space<vmem>>, vector<1x128xf32>
    %4 = arith.index_cast %1 : i32 to index
    %c0_4 = arith.constant 0 : index
    %5 = vector.load %arg3[%4, %c0_4] : memref<10x128xf32, #tpu.memory_space<vmem>>, vector<1x128xf32>
    %6 = arith.addf %3, %5 : vector<1x128xf32>
    %c0_5 = arith.constant 0 : index
    %c0_6 = arith.constant 0 : index
    %7 = vector.load %arg8[%c0_5, %c0_6] : memref<64x128xf32, #tpu.memory_space<vmem>>, vector<1x128xf32>
    tpu.vector_store %arg8[%c0_5, %c0_6], %6 {strides = array<i32>} : memref<64x128xf32, #tpu.memory_space<vmem>>, vector<1x128xf32>,
    %c1 = arith.constant 1 : index
    %c0_7 = arith.constant 0 : index
    %8 = memref.load %arg0[%c1, %c0_7] : memref<8x8xi32, #tpu.memory_space<smem>>
    %c1_8 = arith.constant 1 : index
    %c0_9 = arith.constant 0 : index
    %9 = memref.load %arg1[%c1_8, %c0_9] : memref<8x8xi32, #tpu.memory_space<smem>>
    %10 = arith.index_cast %8 : i32 to index
    %c0_10 = arith.constant 0 : index
    %11 = vector.load %arg2[%10, %c0_10] : memref<50x128xf32, #tpu.memory_space<vmem>>, vector<1x128xf32>
    %12 = arith.index_cast %9 : i32 to index
    %c0_11 = arith.constant 0 : index
    %13 = vector.load %arg3[%12, %c0_11] : memref<10x128xf32, #tpu.memory_space<vmem>>, vector<1x128xf32>
    %14 = arith.addf %11, %13 : vector<1x128xf32>
    %c1_12 = arith.constant 1 : index
    %c0_13 = arith.constant 0 : index
    %15 = vector.load %arg8[%c1_12, %c0_13] : memref<64x128xf32, #tpu.memory_space<vmem>>, vector<1x128xf32>
    tpu.vector_store %arg8[%c1_12, %c0_13], %14 {strides = array<i32>} : memref<64x128xf32, #tpu.memory_space<vmem>>, vector<1x128xf32>,
    %c2 = arith.constant 2 : index
    %c0_14 = arith.constant 0 : index
    %16 = memref.load %arg0[%c2, %c0_14] : memref<8x8xi32, #tpu.memory_space<smem>>
    %c2_15 = arith.constant 2 : index
    %c0_16 = arith.constant 0 : index
    %17 = memref.load %arg1[%c2_15, %c0_16] : memref<8x8xi32, #tpu.memory_space<smem>>
    %18 = arith.index_cast %16 : i32 to index
    %c0_17 = arith.constant 0 : index
    %19 = vector.load %arg2[%18, %c0_17] : memref<50x128xf32, #tpu.memory_space<vmem>>, vector<1x128xf32>
    %20 = arith.index_cast %17 : i32 to index
    %c0_18 = arith.constant 0 : index
    %21 = vector.load %arg3[%20, %c0_18] : memref<10x128xf32, #tpu.memory_space<vmem>>, vector<1x128xf32>
    %22 = arith.addf %19, %21 : vector<1x128xf32>
    %c2_19 = arith.constant 2 : index
    %c0_20 = arith.constant 0 : index
    %23 = vector.load %arg8[%c2_19, %c0_20] : memref<64x128xf32, #tpu.memory_space<vmem>>, vector<1x128xf32>
    tpu.vector_store %arg8[%c2_19, %c0_20], %22 {strides = array<i32>} : memref<64x128xf32, #tpu.memory_space<vmem>>, vector<1x128xf32>,
    %c3 = arith.constant 3 : index
    %c0_21 = arith.constant 0 : index
    %24 = memref.load %arg0[%c3, %c0_21] : memref<8x8xi32, #tpu.memory_space<smem>>
    %c3_22 = arith.constant 3 : index
    %c0_23 = arith.constant 0 : index
    %25 = memref.load %arg1[%c3_22, %c0_23] : memref<8x8xi32, #tpu.memory_space<smem>>
    %26 = arith.index_cast %24 : i32 to index
    %c0_24 = arith.constant 0 : index
    %27 = vector.load %arg2[%26, %c0_24] : memref<50x128xf32, #tpu.memory_space<vmem>>, vector<1x128xf32>
    %28 = arith.index_cast %25 : i32 to index
    %c0_25 = arith.constant 0 : index
    %29 = vector.load %arg3[%28, %c0_25] : memref<10x128xf32, #tpu.memory_space<vmem>>, vector<1x128xf32>
    %30 = arith.addf %27, %29 : vector<1x128xf32>
    %c3_26 = arith.constant 3 : index
    %c0_27 = arith.constant 0 : index
    %31 = vector.load %arg8[%c3_26, %c0_27] : memref<64x128xf32, #tpu.memory_space<vmem>>, vector<1x128xf32>
    tpu.vector_store %arg8[%c3_26, %c0_27], %30 {strides = array<i32>} : memref<64x128xf32, #tpu.memory_space<vmem>>, vector<1x128xf32>,
    %c4 = arith.constant 4 : index
    %c0_28 = arith.constant 0 : index
    %32 = memref.load %arg0[%c4, %c0_28] : memref<8x8xi32, #tpu.memory_space<smem>>
    %c4_29 = arith.constant 4 : index
    %c0_30 = arith.constant 0 : index
    %33 = memref.load %arg1[%c4_29, %c0_30] : memref<8x8xi32, #tpu.memory_space<smem>>
    %34 = arith.index_cast %32 : i32 to index
    %c0_31 = arith.constant 0 : index
    %35 = vector.load %arg2[%34, %c0_31] : memref<50x128xf32, #tpu.memory_space<vmem>>, vector<1x128xf32>
    %36 = arith.index_cast %33 : i32 to index
    %c0_32 = arith.constant 0 : index
    %37 = vector.load %arg3[%36, %c0_32] : memref<10x128xf32, #tpu.memory_space<vmem>>, vector<1x128xf32>
    %38 = arith.addf %35, %37 : vector<1x128xf32>
    %c4_33 = arith.constant 4 : index
    %c0_34 = arith.constant 0 : index
    %39 = vector.load %arg8[%c4_33, %c0_34] : memref<64x128xf32, #tpu.memory_space<vmem>>, vector<1x128xf32>
    tpu.vector_store %arg8[%c4_33, %c0_34], %38 {strides = array<i32>} : memref<64x128xf32, #tpu.memory_space<vmem>>, vector<1x128xf32>,
    %c5 = arith.constant 5 : index
    %c0_35 = arith.constant 0 : index
    %40 = memref.load %arg0[%c5, %c0_35] : memref<8x8xi32, #tpu.memory_space<smem>>
    %c5_36 = arith.constant 5 : index
    %c0_37 = arith.constant 0 : index
    %41 = memref.load %arg1[%c5_36, %c0_37] : memref<8x8xi32, #tpu.memory_space<smem>>
    %42 = arith.index_cast %40 : i32 to index
    %c0_38 = arith.constant 0 : index
    %43 = vector.load %arg2[%42, %c0_38] : memref<50x128xf32, #tpu.memory_space<vmem>>, vector<1x128xf32>
    %44 = arith.index_cast %41 : i32 to index
    %c0_39 = arith.constant 0 : index
    %45 = vector.load %arg3[%44, %c0_39] : memref<10x128xf32, #tpu.memory_space<vmem>>, vector<1x128xf32>
    %46 = arith.addf %43, %45 : vector<1x128xf32>
    %c5_40 = arith.constant 5 : index
    %c0_41 = arith.constant 0 : index
    %47 = vector.load %arg8[%c5_40, %c0_41] : memref<64x128xf32, #tpu.memory_space<vmem>>, vector<1x128xf32>
    tpu.vector_store %arg8[%c5_40, %c0_41], %46 {strides = array<i32>} : memref<64x128xf32, #tpu.memory_space<vmem>>, vector<1x128xf32>,
    %c6 = arith.constant 6 : index
    %c0_42 = arith.constant 0 : index
    %48 = memref.load %arg0[%c6, %c0_42] : memref<8x8xi32, #tpu.memory_space<smem>>
    %c6_43 = arith.constant 6 : index
    %c0_44 = arith.constant 0 : index
    %49 = memref.load %arg1[%c6_43, %c0_44] : memref<8x8xi32, #tpu.memory_space<smem>>
    %50 = arith.index_cast %48 : i32 to index
    %c0_45 = arith.constant 0 : index
    %51 = vector.load %arg2[%50, %c0_45] : memref<50x128xf32, #tpu.memory_space<vmem>>, vector<1x128xf32>
    %52 = arith.index_cast %49 : i32 to index
    %c0_46 = arith.constant 0 : index
    %53 = vector.load %arg3[%52, %c0_46] : memref<10x128xf32, #tpu.memory_space<vmem>>, vector<1x128xf32>
    %54 = arith.addf %51, %53 : vector<1x128xf32>
    %c6_47 = arith.constant 6 : index
    %c0_48 = arith.constant 0 : index
    %55 = vector.load %arg8[%c6_47, %c0_48] : memref<64x128xf32, #tpu.memory_space<vmem>>, vector<1x128xf32>
    tpu.vector_store %arg8[%c6_47, %c0_48], %54 {strides = array<i32>} : memref<64x128xf32, #tpu.memory_space<vmem>>, vector<1x128xf32>,
    %c7 = arith.constant 7 : index
    %c0_49 = arith.constant 0 : index
    %56 = memref.load %arg0[%c7, %c0_49] : memref<8x8xi32, #tpu.memory_space<smem>>
    %c7_50 = arith.constant 7 : index
    %c0_51 = arith.constant 0 : index
    %57 = memref.load %arg1[%c7_50, %c0_51] : memref<8x8xi32, #tpu.memory_space<smem>>
    %58 = arith.index_cast %56 : i32 to index
    %c0_52 = arith.constant 0 : index
    %59 = vector.load %arg2[%58, %c0_52] : memref<50x128xf32, #tpu.memory_space<vmem>>, vector<1x128xf32>
    %60 = arith.index_cast %57 : i32 to index
    %c0_53 = arith.constant 0 : index
    %61 = vector.load %arg3[%60, %c0_53] : memref<10x128xf32, #tpu.memory_space<vmem>>, vector<1x128xf32>
    %62 = arith.addf %59, %61 : vector<1x128xf32>
    %c7_54 = arith.constant 7 : index
    %c0_55 = arith.constant 0 : index
    %63 = vector.load %arg8[%c7_54, %c0_55] : memref<64x128xf32, #tpu.memory_space<vmem>>, vector<1x128xf32>
    tpu.vector_store %arg8[%c7_54, %c0_55], %62 {strides = array<i32>} : memref<64x128xf32, #tpu.memory_space<vmem>>, vector<1x128xf32>,
    %c0_56 = arith.constant 0 : index
    %c1_57 = arith.constant 1 : index
    %64 = memref.load %arg0[%c0_56, %c1_57] : memref<8x8xi32, #tpu.memory_space<smem>>
    %c0_58 = arith.constant 0 : index
    %c1_59 = arith.constant 1 : index
    %65 = memref.load %arg1[%c0_58, %c1_59] : memref<8x8xi32, #tpu.memory_space<smem>>
    %66 = arith.index_cast %64 : i32 to index
    %c0_60 = arith.constant 0 : index
    %67 = vector.load %arg2[%66, %c0_60] : memref<50x128xf32, #tpu.memory_space<vmem>>, vector<1x128xf32>
    %68 = arith.index_cast %65 : i32 to index
    %c0_61 = arith.constant 0 : index
    %69 = vector.load %arg3[%68, %c0_61] : memref<10x128xf32, #tpu.memory_space<vmem>>, vector<1x128xf32>
    %70 = arith.addf %67, %69 : vector<1x128xf32>
    %c8 = arith.constant 8 : index
    %c0_62 = arith.constant 0 : index
    %71 = vector.load %arg8[%c8, %c0_62] : memref<64x128xf32, #tpu.memory_space<vmem>>, vector<1x128xf32>
    tpu.vector_store %arg8[%c8, %c0_62], %70 {strides = array<i32>} : memref<64x128xf32, #tpu.memory_space<vmem>>, vector<1x128xf32>,
    %c1_63 = arith.constant 1 : index
    %c1_64 = arith.constant 1 : index
    %72 = memref.load %arg0[%c1_63, %c1_64] : memref<8x8xi32, #tpu.memory_space<smem>>
    %c1_65 = arith.constant 1 : index
    %c1_66 = arith.constant 1 : index
    %73 = memref.load %arg1[%c1_65, %c1_66] : memref<8x8xi32, #tpu.memory_space<smem>>
    %74 = arith.index_cast %72 : i32 to index
    %c0_67 = arith.constant 0 : index
    %75 = vector.load %arg2[%74, %c0_67] : memref<50x128xf32, #tpu.memory_space<vmem>>, vector<1x128xf32>
    %76 = arith.index_cast %73 : i32 to index
    %c0_68 = arith.constant 0 : index
    %77 = vector.load %arg3[%76, %c0_68] : memref<10x128xf32, #tpu.memory_space<vmem>>, vector<1x128xf32>
    %78 = arith.addf %75, %77 : vector<1x128xf32>
    %c9 = arith.constant 9 : index
    %c0_69 = arith.constant 0 : index
    %79 = vector.load %arg8[%c9, %c0_69] : memref<64x128xf32, #tpu.memory_space<vmem>>, vector<1x128xf32>
    tpu.vector_store %arg8[%c9, %c0_69], %78 {strides = array<i32>} : memref<64x128xf32, #tpu.memory_space<vmem>>, vector<1x128xf32>,
    %c2_70 = arith.constant 2 : index
    %c1_71 = arith.constant 1 : index
    %80 = memref.load %arg0[%c2_70, %c1_71] : memref<8x8xi32, #tpu.memory_space<smem>>
    %c2_72 = arith.constant 2 : index
    %c1_73 = arith.constant 1 : index
    %81 = memref.load %arg1[%c2_72, %c1_73] : memref<8x8xi32, #tpu.memory_space<smem>>
    %82 = arith.index_cast %80 : i32 to index
    %c0_74 = arith.constant 0 : index
    %83 = vector.load %arg2[%82, %c0_74] : memref<50x128xf32, #tpu.memory_space<vmem>>, vector<1x128xf32>
    %84 = arith.index_cast %81 : i32 to index
    %c0_75 = arith.constant 0 : index
    %85 = vector.load %arg3[%84, %c0_75] : memref<10x128xf32, #tpu.memory_space<vmem>>, vector<1x128xf32>
    %86 = arith.addf %83, %85 : vector<1x128xf32>
    %c10 = arith.constant 10 : index
    %c0_76 = arith.constant 0 : index
    %87 = vector.load %arg8[%c10, %c0_76] : memref<64x128xf32, #tpu.memory_space<vmem>>, vector<1x128xf32>
    tpu.vector_store %arg8[%c10, %c0_76], %86 {strides = array<i32>} : memref<64x128xf32, #tpu.memory_space<vmem>>, vector<1x128xf32>,
    %c3_77 = arith.constant 3 : index
    %c1_78 = arith.constant 1 : index
    %88 = memref.load %arg0[%c3_77, %c1_78] : memref<8x8xi32, #tpu.memory_space<smem>>
    %c3_79 = arith.constant 3 : index
    %c1_80 = arith.constant 1 : index
    %89 = memref.load %arg1[%c3_79, %c1_80] : memref<8x8xi32, #tpu.memory_space<smem>>
    %90 = arith.index_cast %88 : i32 to index
    %c0_81 = arith.constant 0 : index
    %91 = vector.load %arg2[%90, %c0_81] : memref<50x128xf32, #tpu.memory_space<vmem>>, vector<1x128xf32>
    %92 = arith.index_cast %89 : i32 to index
    %c0_82 = arith.constant 0 : index
    %93 = vector.load %arg3[%92, %c0_82] : memref<10x128xf32, #tpu.memory_space<vmem>>, vector<1x128xf32>
    %94 = arith.addf %91, %93 : vector<1x128xf32>
    %c11 = arith.constant 11 : index
    %c0_83 = arith.constant 0 : index
    %95 = vector.load %arg8[%c11, %c0_83] : memref<64x128xf32, #tpu.memory_space<vmem>>, vector<1x128xf32>
    tpu.vector_store %arg8[%c11, %c0_83], %94 {strides = array<i32>} : memref<64x128xf32, #tpu.memory_space<vmem>>, vector<1x128xf32>,
    %c4_84 = arith.constant 4 : index
    %c1_85 = arith.constant 1 : index
    %96 = memref.load %arg0[%c4_84, %c1_85] : memref<8x8xi32, #tpu.memory_space<smem>>
    %c4_86 = arith.constant 4 : index
    %c1_87 = arith.constant 1 : index
    %97 = memref.load %arg1[%c4_86, %c1_87] : memref<8x8xi32, #tpu.memory_space<smem>>
    %98 = arith.index_cast %96 : i32 to index
    %c0_88 = arith.constant 0 : index
    %99 = vector.load %arg2[%98, %c0_88] : memref<50x128xf32, #tpu.memory_space<vmem>>, vector<1x128xf32>
    %100 = arith.index_cast %97 : i32 to index
    %c0_89 = arith.constant 0 : index
    %101 = vector.load %arg3[%100, %c0_89] : memref<10x128xf32, #tpu.memory_space<vmem>>, vector<1x128xf32>
    %102 = arith.addf %99, %101 : vector<1x128xf32>
    %c12 = arith.constant 12 : index
    %c0_90 = arith.constant 0 : index
    %103 = vector.load %arg8[%c12, %c0_90] : memref<64x128xf32, #tpu.memory_space<vmem>>, vector<1x128xf32>
    tpu.vector_store %arg8[%c12, %c0_90], %102 {strides = array<i32>} : memref<64x128xf32, #tpu.memory_space<vmem>>, vector<1x128xf32>,
    %c5_91 = arith.constant 5 : index
    %c1_92 = arith.constant 1 : index
    %104 = memref.load %arg0[%c5_91, %c1_92] : memref<8x8xi32, #tpu.memory_space<smem>>
    %c5_93 = arith.constant 5 : index
    %c1_94 = arith.constant 1 : index
    %105 = memref.load %arg1[%c5_93, %c1_94] : memref<8x8xi32, #tpu.memory_space<smem>>
    %106 = arith.index_cast %104 : i32 to index
    %c0_95 = arith.constant 0 : index
    %107 = vector.load %arg2[%106, %c0_95] : memref<50x128xf32, #tpu.memory_space<vmem>>, vector<1x128xf32>
    %108 = arith.index_cast %105 : i32 to index
    %c0_96 = arith.constant 0 : index
    %109 = vector.load %arg3[%108, %c0_96] : memref<10x128xf32, #tpu.memory_space<vmem>>, vector<1x128xf32>
    %110 = arith.addf %107, %109 : vector<1x128xf32>
    %c13 = arith.constant 13 : index
    %c0_97 = arith.constant 0 : index
    %111 = vector.load %arg8[%c13, %c0_97] : memref<64x128xf32, #tpu.memory_space<vmem>>, vector<1x128xf32>
    tpu.vector_store %arg8[%c13, %c0_97], %110 {strides = array<i32>} : memref<64x128xf32, #tpu.memory_space<vmem>>, vector<1x128xf32>,
    %c6_98 = arith.constant 6 : index
    %c1_99 = arith.constant 1 : index
    %112 = memref.load %arg0[%c6_98, %c1_99] : memref<8x8xi32, #tpu.memory_space<smem>>
    %c6_100 = arith.constant 6 : index
    %c1_101 = arith.constant 1 : index
    %113 = memref.load %arg1[%c6_100, %c1_101] : memref<8x8xi32, #tpu.memory_space<smem>>
    %114 = arith.index_cast %112 : i32 to index
    %c0_102 = arith.constant 0 : index
    %115 = vector.load %arg2[%114, %c0_102] : memref<50x128xf32, #tpu.memory_space<vmem>>, vector<1x128xf32>
    %116 = arith.index_cast %113 : i32 to index
    %c0_103 = arith.constant 0 : index
    %117 = vector.load %arg3[%116, %c0_103] : memref<10x128xf32, #tpu.memory_space<vmem>>, vector<1x128xf32>
    %118 = arith.addf %115, %117 : vector<1x128xf32>
    %c14 = arith.constant 14 : index
    %c0_104 = arith.constant 0 : index
    %119 = vector.load %arg8[%c14, %c0_104] : memref<64x128xf32, #tpu.memory_space<vmem>>, vector<1x128xf32>
    tpu.vector_store %arg8[%c14, %c0_104], %118 {strides = array<i32>} : memref<64x128xf32, #tpu.memory_space<vmem>>, vector<1x128xf32>,
    %c7_105 = arith.constant 7 : index
    %c1_106 = arith.constant 1 : index
    %120 = memref.load %arg0[%c7_105, %c1_106] : memref<8x8xi32, #tpu.memory_space<smem>>
    %c7_107 = arith.constant 7 : index
    %c1_108 = arith.constant 1 : index
    %121 = memref.load %arg1[%c7_107, %c1_108] : memref<8x8xi32, #tpu.memory_space<smem>>
    %122 = arith.index_cast %120 : i32 to index
    %c0_109 = arith.constant 0 : index
    %123 = vector.load %arg2[%122, %c0_109] : memref<50x128xf32, #tpu.memory_space<vmem>>, vector<1x128xf32>
    %124 = arith.index_cast %121 : i32 to index
    %c0_110 = arith.constant 0 : index
    %125 = vector.load %arg3[%124, %c0_110] : memref<10x128xf32, #tpu.memory_space<vmem>>, vector<1x128xf32>
    %126 = arith.addf %123, %125 : vector<1x128xf32>
    %c15 = arith.constant 15 : index
    %c0_111 = arith.constant 0 : index
    %127 = vector.load %arg8[%c15, %c0_111] : memref<64x128xf32, #tpu.memory_space<vmem>>, vector<1x128xf32>
    tpu.vector_store %arg8[%c15, %c0_111], %126 {strides = array<i32>} : memref<64x128xf32, #tpu.memory_space<vmem>>, vector<1x128xf32>,
    %c0_112 = arith.constant 0 : index
    %c2_113 = arith.constant 2 : index
    %128 = memref.load %arg0[%c0_112, %c2_113] : memref<8x8xi32, #tpu.memory_space<smem>>
    %c0_114 = arith.constant 0 : index
    %c2_115 = arith.constant 2 : index
    %129 = memref.load %arg1[%c0_114, %c2_115] : memref<8x8xi32, #tpu.memory_space<smem>>
    %130 = arith.index_cast %128 : i32 to index
    %c0_116 = arith.constant 0 : index
    %131 = vector.load %arg2[%130, %c0_116] : memref<50x128xf32, #tpu.memory_space<vmem>>, vector<1x128xf32>
    %132 = arith.index_cast %129 : i32 to index
    %c0_117 = arith.constant 0 : index
    %133 = vector.load %arg3[%132, %c0_117] : memref<10x128xf32, #tpu.memory_space<vmem>>, vector<1x128xf32>
    %134 = arith.addf %131, %133 : vector<1x128xf32>
    %c16 = arith.constant 16 : index
    %c0_118 = arith.constant 0 : index
    %135 = vector.load %arg8[%c16, %c0_118] : memref<64x128xf32, #tpu.memory_space<vmem>>, vector<1x128xf32>
    tpu.vector_store %arg8[%c16, %c0_118], %134 {strides = array<i32>} : memref<64x128xf32, #tpu.memory_space<vmem>>, vector<1x128xf32>,
    %c1_119 = arith.constant 1 : index
    %c2_120 = arith.constant 2 : index
    %136 = memref.load %arg0[%c1_119, %c2_120] : memref<8x8xi32, #tpu.memory_space<smem>>
    %c1_121 = arith.constant 1 : index
    %c2_122 = arith.constant 2 : index
    %137 = memref.load %arg1[%c1_121, %c2_122] : memref<8x8xi32, #tpu.memory_space<smem>>
    %138 = arith.index_cast %136 : i32 to index
    %c0_123 = arith.constant 0 : index
    %139 = vector.load %arg2[%138, %c0_123] : memref<50x128xf32, #tpu.memory_space<vmem>>, vector<1x128xf32>
    %140 = arith.index_cast %137 : i32 to index
    %c0_124 = arith.constant 0 : index
    %141 = vector.load %arg3[%140, %c0_124] : memref<10x128xf32, #tpu.memory_space<vmem>>, vector<1x128xf32>
    %142 = arith.addf %139, %141 : vector<1x128xf32>
    %c17 = arith.constant 17 : index
    %c0_125 = arith.constant 0 : index
    %143 = vector.load %arg8[%c17, %c0_125] : memref<64x128xf32, #tpu.memory_space<vmem>>, vector<1x128xf32>
    tpu.vector_store %arg8[%c17, %c0_125], %142 {strides = array<i32>} : memref<64x128xf32, #tpu.memory_space<vmem>>, vector<1x128xf32>,
    %c2_126 = arith.constant 2 : index
    %c2_127 = arith.constant 2 : index
    %144 = memref.load %arg0[%c2_126, %c2_127] : memref<8x8xi32, #tpu.memory_space<smem>>
    %c2_128 = arith.constant 2 : index
    %c2_129 = arith.constant 2 : index
    %145 = memref.load %arg1[%c2_128, %c2_129] : memref<8x8xi32, #tpu.memory_space<smem>>
    %146 = arith.index_cast %144 : i32 to index
    %c0_130 = arith.constant 0 : index
    %147 = vector.load %arg2[%146, %c0_130] : memref<50x128xf32, #tpu.memory_space<vmem>>, vector<1x128xf32>
    %148 = arith.index_cast %145 : i32 to index
    %c0_131 = arith.constant 0 : index
    %149 = vector.load %arg3[%148, %c0_131] : memref<10x128xf32, #tpu.memory_space<vmem>>, vector<1x128xf32>
    %150 = arith.addf %147, %149 : vector<1x128xf32>
    %c18 = arith.constant 18 : index
    %c0_132 = arith.constant 0 : index
    %151 = vector.load %arg8[%c18, %c0_132] : memref<64x128xf32, #tpu.memory_space<vmem>>, vector<1x128xf32>
    tpu.vector_store %arg8[%c18, %c0_132], %150 {strides = array<i32>} : memref<64x128xf32, #tpu.memory_space<vmem>>, vector<1x128xf32>,
    %c3_133 = arith.constant 3 : index
    %c2_134 = arith.constant 2 : index
    %152 = memref.load %arg0[%c3_133, %c2_134] : memref<8x8xi32, #tpu.memory_space<smem>>
    %c3_135 = arith.constant 3 : index
    %c2_136 = arith.constant 2 : index
    %153 = memref.load %arg1[%c3_135, %c2_136] : memref<8x8xi32, #tpu.memory_space<smem>>
    %154 = arith.index_cast %152 : i32 to index
    %c0_137 = arith.constant 0 : index
    %155 = vector.load %arg2[%154, %c0_137] : memref<50x128xf32, #tpu.memory_space<vmem>>, vector<1x128xf32>
    %156 = arith.index_cast %153 : i32 to index
    %c0_138 = arith.constant 0 : index
    %157 = vector.load %arg3[%156, %c0_138] : memref<10x128xf32, #tpu.memory_space<vmem>>, vector<1x128xf32>
    %158 = arith.addf %155, %157 : vector<1x128xf32>
    %c19 = arith.constant 19 : index
    %c0_139 = arith.constant 0 : index
    %159 = vector.load %arg8[%c19, %c0_139] : memref<64x128xf32, #tpu.memory_space<vmem>>, vector<1x128xf32>
    tpu.vector_store %arg8[%c19, %c0_139], %158 {strides = array<i32>} : memref<64x128xf32, #tpu.memory_space<vmem>>, vector<1x128xf32>,
    %c4_140 = arith.constant 4 : index
    %c2_141 = arith.constant 2 : index
    %160 = memref.load %arg0[%c4_140, %c2_141] : memref<8x8xi32, #tpu.memory_space<smem>>
    %c4_142 = arith.constant 4 : index
    %c2_143 = arith.constant 2 : index
    %161 = memref.load %arg1[%c4_142, %c2_143] : memref<8x8xi32, #tpu.memory_space<smem>>
    %162 = arith.index_cast %160 : i32 to index
    %c0_144 = arith.constant 0 : index
    %163 = vector.load %arg2[%162, %c0_144] : memref<50x128xf32, #tpu.memory_space<vmem>>, vector<1x128xf32>
    %164 = arith.index_cast %161 : i32 to index
    %c0_145 = arith.constant 0 : index
    %165 = vector.load %arg3[%164, %c0_145] : memref<10x128xf32, #tpu.memory_space<vmem>>, vector<1x128xf32>
    %166 = arith.addf %163, %165 : vector<1x128xf32>
    %c20 = arith.constant 20 : index
    %c0_146 = arith.constant 0 : index
    %167 = vector.load %arg8[%c20, %c0_146] : memref<64x128xf32, #tpu.memory_space<vmem>>, vector<1x128xf32>
    tpu.vector_store %arg8[%c20, %c0_146], %166 {strides = array<i32>} : memref<64x128xf32, #tpu.memory_space<vmem>>, vector<1x128xf32>,
    %c5_147 = arith.constant 5 : index
    %c2_148 = arith.constant 2 : index
    %168 = memref.load %arg0[%c5_147, %c2_148] : memref<8x8xi32, #tpu.memory_space<smem>>
    %c5_149 = arith.constant 5 : index
    %c2_150 = arith.constant 2 : index
    %169 = memref.load %arg1[%c5_149, %c2_150] : memref<8x8xi32, #tpu.memory_space<smem>>
    %170 = arith.index_cast %168 : i32 to index
    %c0_151 = arith.constant 0 : index
    %171 = vector.load %arg2[%170, %c0_151] : memref<50x128xf32, #tpu.memory_space<vmem>>, vector<1x128xf32>
    %172 = arith.index_cast %169 : i32 to index
    %c0_152 = arith.constant 0 : index
    %173 = vector.load %arg3[%172, %c0_152] : memref<10x128xf32, #tpu.memory_space<vmem>>, vector<1x128xf32>
    %174 = arith.addf %171, %173 : vector<1x128xf32>
    %c21 = arith.constant 21 : index
    %c0_153 = arith.constant 0 : index
    %175 = vector.load %arg8[%c21, %c0_153] : memref<64x128xf32, #tpu.memory_space<vmem>>, vector<1x128xf32>
    tpu.vector_store %arg8[%c21, %c0_153], %174 {strides = array<i32>} : memref<64x128xf32, #tpu.memory_space<vmem>>, vector<1x128xf32>,
    %c6_154 = arith.constant 6 : index
    %c2_155 = arith.constant 2 : index
    %176 = memref.load %arg0[%c6_154, %c2_155] : memref<8x8xi32, #tpu.memory_space<smem>>
    %c6_156 = arith.constant 6 : index
    %c2_157 = arith.constant 2 : index
    %177 = memref.load %arg1[%c6_156, %c2_157] : memref<8x8xi32, #tpu.memory_space<smem>>
    %178 = arith.index_cast %176 : i32 to index
    %c0_158 = arith.constant 0 : index
    %179 = vector.load %arg2[%178, %c0_158] : memref<50x128xf32, #tpu.memory_space<vmem>>, vector<1x128xf32>
    %180 = arith.index_cast %177 : i32 to index
    %c0_159 = arith.constant 0 : index
    %181 = vector.load %arg3[%180, %c0_159] : memref<10x128xf32, #tpu.memory_space<vmem>>, vector<1x128xf32>
    %182 = arith.addf %179, %181 : vector<1x128xf32>
    %c22 = arith.constant 22 : index
    %c0_160 = arith.constant 0 : index
    %183 = vector.load %arg8[%c22, %c0_160] : memref<64x128xf32, #tpu.memory_space<vmem>>, vector<1x128xf32>
    tpu.vector_store %arg8[%c22, %c0_160], %182 {strides = array<i32>} : memref<64x128xf32, #tpu.memory_space<vmem>>, vector<1x128xf32>,
    %c7_161 = arith.constant 7 : index
    %c2_162 = arith.constant 2 : index
    %184 = memref.load %arg0[%c7_161, %c2_162] : memref<8x8xi32, #tpu.memory_space<smem>>
    %c7_163 = arith.constant 7 : index
    %c2_164 = arith.constant 2 : index
    %185 = memref.load %arg1[%c7_163, %c2_164] : memref<8x8xi32, #tpu.memory_space<smem>>
    %186 = arith.index_cast %184 : i32 to index
    %c0_165 = arith.constant 0 : index
    %187 = vector.load %arg2[%186, %c0_165] : memref<50x128xf32, #tpu.memory_space<vmem>>, vector<1x128xf32>
    %188 = arith.index_cast %185 : i32 to index
    %c0_166 = arith.constant 0 : index
    %189 = vector.load %arg3[%188, %c0_166] : memref<10x128xf32, #tpu.memory_space<vmem>>, vector<1x128xf32>
    %190 = arith.addf %187, %189 : vector<1x128xf32>
    %c23 = arith.constant 23 : index
    %c0_167 = arith.constant 0 : index
    %191 = vector.load %arg8[%c23, %c0_167] : memref<64x128xf32, #tpu.memory_space<vmem>>, vector<1x128xf32>
    tpu.vector_store %arg8[%c23, %c0_167], %190 {strides = array<i32>} : memref<64x128xf32, #tpu.memory_space<vmem>>, vector<1x128xf32>,
    %c0_168 = arith.constant 0 : index
    %c3_169 = arith.constant 3 : index
    %192 = memref.load %arg0[%c0_168, %c3_169] : memref<8x8xi32, #tpu.memory_space<smem>>
    %c0_170 = arith.constant 0 : index
    %c3_171 = arith.constant 3 : index
    %193 = memref.load %arg1[%c0_170, %c3_171] : memref<8x8xi32, #tpu.memory_space<smem>>
    %194 = arith.index_cast %192 : i32 to index
    %c0_172 = arith.constant 0 : index
    %195 = vector.load %arg2[%194, %c0_172] : memref<50x128xf32, #tpu.memory_space<vmem>>, vector<1x128xf32>
    %196 = arith.index_cast %193 : i32 to index
    %c0_173 = arith.constant 0 : index
    %197 = vector.load %arg3[%196, %c0_173] : memref<10x128xf32, #tpu.memory_space<vmem>>, vector<1x128xf32>
    %198 = arith.addf %195, %197 : vector<1x128xf32>
    %c24 = arith.constant 24 : index
    %c0_174 = arith.constant 0 : index
    %199 = vector.load %arg8[%c24, %c0_174] : memref<64x128xf32, #tpu.memory_space<vmem>>, vector<1x128xf32>
    tpu.vector_store %arg8[%c24, %c0_174], %198 {strides = array<i32>} : memref<64x128xf32, #tpu.memory_space<vmem>>, vector<1x128xf32>,
    %c1_175 = arith.constant 1 : index
    %c3_176 = arith.constant 3 : index
    %200 = memref.load %arg0[%c1_175, %c3_176] : memref<8x8xi32, #tpu.memory_space<smem>>
    %c1_177 = arith.constant 1 : index
    %c3_178 = arith.constant 3 : index
    %201 = memref.load %arg1[%c1_177, %c3_178] : memref<8x8xi32, #tpu.memory_space<smem>>
    %202 = arith.index_cast %200 : i32 to index
    %c0_179 = arith.constant 0 : index
    %203 = vector.load %arg2[%202, %c0_179] : memref<50x128xf32, #tpu.memory_space<vmem>>, vector<1x128xf32>
    %204 = arith.index_cast %201 : i32 to index
    %c0_180 = arith.constant 0 : index
    %205 = vector.load %arg3[%204, %c0_180] : memref<10x128xf32, #tpu.memory_space<vmem>>, vector<1x128xf32>
    %206 = arith.addf %203, %205 : vector<1x128xf32>
    %c25 = arith.constant 25 : index
    %c0_181 = arith.constant 0 : index
    %207 = vector.load %arg8[%c25, %c0_181] : memref<64x128xf32, #tpu.memory_space<vmem>>, vector<1x128xf32>
    tpu.vector_store %arg8[%c25, %c0_181], %206 {strides = array<i32>} : memref<64x128xf32, #tpu.memory_space<vmem>>, vector<1x128xf32>,
    %c2_182 = arith.constant 2 : index
    %c3_183 = arith.constant 3 : index
    %208 = memref.load %arg0[%c2_182, %c3_183] : memref<8x8xi32, #tpu.memory_space<smem>>
    %c2_184 = arith.constant 2 : index
    %c3_185 = arith.constant 3 : index
    %209 = memref.load %arg1[%c2_184, %c3_185] : memref<8x8xi32, #tpu.memory_space<smem>>
    %210 = arith.index_cast %208 : i32 to index
    %c0_186 = arith.constant 0 : index
    %211 = vector.load %arg2[%210, %c0_186] : memref<50x128xf32, #tpu.memory_space<vmem>>, vector<1x128xf32>
    %212 = arith.index_cast %209 : i32 to index
    %c0_187 = arith.constant 0 : index
    %213 = vector.load %arg3[%212, %c0_187] : memref<10x128xf32, #tpu.memory_space<vmem>>, vector<1x128xf32>
    %214 = arith.addf %211, %213 : vector<1x128xf32>
    %c26 = arith.constant 26 : index
    %c0_188 = arith.constant 0 : index
    %215 = vector.load %arg8[%c26, %c0_188] : memref<64x128xf32, #tpu.memory_space<vmem>>, vector<1x128xf32>
    tpu.vector_store %arg8[%c26, %c0_188], %214 {strides = array<i32>} : memref<64x128xf32, #tpu.memory_space<vmem>>, vector<1x128xf32>,
    %c3_189 = arith.constant 3 : index
    %c3_190 = arith.constant 3 : index
    %216 = memref.load %arg0[%c3_189, %c3_190] : memref<8x8xi32, #tpu.memory_space<smem>>
    %c3_191 = arith.constant 3 : index
    %c3_192 = arith.constant 3 : index
    %217 = memref.load %arg1[%c3_191, %c3_192] : memref<8x8xi32, #tpu.memory_space<smem>>
    %218 = arith.index_cast %216 : i32 to index
    %c0_193 = arith.constant 0 : index
    %219 = vector.load %arg2[%218, %c0_193] : memref<50x128xf32, #tpu.memory_space<vmem>>, vector<1x128xf32>
    %220 = arith.index_cast %217 : i32 to index
    %c0_194 = arith.constant 0 : index
    %221 = vector.load %arg3[%220, %c0_194] : memref<10x128xf32, #tpu.memory_space<vmem>>, vector<1x128xf32>
    %222 = arith.addf %219, %221 : vector<1x128xf32>
    %c27 = arith.constant 27 : index
    %c0_195 = arith.constant 0 : index
    %223 = vector.load %arg8[%c27, %c0_195] : memref<64x128xf32, #tpu.memory_space<vmem>>, vector<1x128xf32>
    tpu.vector_store %arg8[%c27, %c0_195], %222 {strides = array<i32>} : memref<64x128xf32, #tpu.memory_space<vmem>>, vector<1x128xf32>,
    %c4_196 = arith.constant 4 : index
    %c3_197 = arith.constant 3 : index
    %224 = memref.load %arg0[%c4_196, %c3_197] : memref<8x8xi32, #tpu.memory_space<smem>>
    %c4_198 = arith.constant 4 : index
    %c3_199 = arith.constant 3 : index
    %225 = memref.load %arg1[%c4_198, %c3_199] : memref<8x8xi32, #tpu.memory_space<smem>>
    %226 = arith.index_cast %224 : i32 to index
    %c0_200 = arith.constant 0 : index
    %227 = vector.load %arg2[%226, %c0_200] : memref<50x128xf32, #tpu.memory_space<vmem>>, vector<1x128xf32>
    %228 = arith.index_cast %225 : i32 to index
    %c0_201 = arith.constant 0 : index
    %229 = vector.load %arg3[%228, %c0_201] : memref<10x128xf32, #tpu.memory_space<vmem>>, vector<1x128xf32>
    %230 = arith.addf %227, %229 : vector<1x128xf32>
    %c28 = arith.constant 28 : index
    %c0_202 = arith.constant 0 : index
    %231 = vector.load %arg8[%c28, %c0_202] : memref<64x128xf32, #tpu.memory_space<vmem>>, vector<1x128xf32>
    tpu.vector_store %arg8[%c28, %c0_202], %230 {strides = array<i32>} : memref<64x128xf32, #tpu.memory_space<vmem>>, vector<1x128xf32>,
    %c5_203 = arith.constant 5 : index
    %c3_204 = arith.constant 3 : index
    %232 = memref.load %arg0[%c5_203, %c3_204] : memref<8x8xi32, #tpu.memory_space<smem>>
    %c5_205 = arith.constant 5 : index
    %c3_206 = arith.constant 3 : index
    %233 = memref.load %arg1[%c5_205, %c3_206] : memref<8x8xi32, #tpu.memory_space<smem>>
    %234 = arith.index_cast %232 : i32 to index
    %c0_207 = arith.constant 0 : index
    %235 = vector.load %arg2[%234, %c0_207] : memref<50x128xf32, #tpu.memory_space<vmem>>, vector<1x128xf32>
    %236 = arith.index_cast %233 : i32 to index
    %c0_208 = arith.constant 0 : index
    %237 = vector.load %arg3[%236, %c0_208] : memref<10x128xf32, #tpu.memory_space<vmem>>, vector<1x128xf32>
    %238 = arith.addf %235, %237 : vector<1x128xf32>
    %c29 = arith.constant 29 : index
    %c0_209 = arith.constant 0 : index
    %239 = vector.load %arg8[%c29, %c0_209] : memref<64x128xf32, #tpu.memory_space<vmem>>, vector<1x128xf32>
    tpu.vector_store %arg8[%c29, %c0_209], %238 {strides = array<i32>} : memref<64x128xf32, #tpu.memory_space<vmem>>, vector<1x128xf32>,
    %c6_210 = arith.constant 6 : index
    %c3_211 = arith.constant 3 : index
    %240 = memref.load %arg0[%c6_210, %c3_211] : memref<8x8xi32, #tpu.memory_space<smem>>
    %c6_212 = arith.constant 6 : index
    %c3_213 = arith.constant 3 : index
    %241 = memref.load %arg1[%c6_212, %c3_213] : memref<8x8xi32, #tpu.memory_space<smem>>
    %242 = arith.index_cast %240 : i32 to index
    %c0_214 = arith.constant 0 : index
    %243 = vector.load %arg2[%242, %c0_214] : memref<50x128xf32, #tpu.memory_space<vmem>>, vector<1x128xf32>
    %244 = arith.index_cast %241 : i32 to index
    %c0_215 = arith.constant 0 : index
    %245 = vector.load %arg3[%244, %c0_215] : memref<10x128xf32, #tpu.memory_space<vmem>>, vector<1x128xf32>
    %246 = arith.addf %243, %245 : vector<1x128xf32>
    %c30 = arith.constant 30 : index
    %c0_216 = arith.constant 0 : index
    %247 = vector.load %arg8[%c30, %c0_216] : memref<64x128xf32, #tpu.memory_space<vmem>>, vector<1x128xf32>
    tpu.vector_store %arg8[%c30, %c0_216], %246 {strides = array<i32>} : memref<64x128xf32, #tpu.memory_space<vmem>>, vector<1x128xf32>,
    %c7_217 = arith.constant 7 : index
    %c3_218 = arith.constant 3 : index
    %248 = memref.load %arg0[%c7_217, %c3_218] : memref<8x8xi32, #tpu.memory_space<smem>>
    %c7_219 = arith.constant 7 : index
    %c3_220 = arith.constant 3 : index
    %249 = memref.load %arg1[%c7_219, %c3_220] : memref<8x8xi32, #tpu.memory_space<smem>>
    %250 = arith.index_cast %248 : i32 to index
    %c0_221 = arith.constant 0 : index
    %251 = vector.load %arg2[%250, %c0_221] : memref<50x128xf32, #tpu.memory_space<vmem>>, vector<1x128xf32>
    %252 = arith.index_cast %249 : i32 to index
    %c0_222 = arith.constant 0 : index
    %253 = vector.load %arg3[%252, %c0_222] : memref<10x128xf32, #tpu.memory_space<vmem>>, vector<1x128xf32>
    %254 = arith.addf %251, %253 : vector<1x128xf32>
    %c31 = arith.constant 31 : index
    %c0_223 = arith.constant 0 : index
    %255 = vector.load %arg8[%c31, %c0_223] : memref<64x128xf32, #tpu.memory_space<vmem>>, vector<1x128xf32>
    tpu.vector_store %arg8[%c31, %c0_223], %254 {strides = array<i32>} : memref<64x128xf32, #tpu.memory_space<vmem>>, vector<1x128xf32>,
    %c0_224 = arith.constant 0 : index
    %c4_225 = arith.constant 4 : index
    %256 = memref.load %arg0[%c0_224, %c4_225] : memref<8x8xi32, #tpu.memory_space<smem>>
    %c0_226 = arith.constant 0 : index
    %c4_227 = arith.constant 4 : index
    %257 = memref.load %arg1[%c0_226, %c4_227] : memref<8x8xi32, #tpu.memory_space<smem>>
    %258 = arith.index_cast %256 : i32 to index
    %c0_228 = arith.constant 0 : index
    %259 = vector.load %arg2[%258, %c0_228] : memref<50x128xf32, #tpu.memory_space<vmem>>, vector<1x128xf32>
    %260 = arith.index_cast %257 : i32 to index
    %c0_229 = arith.constant 0 : index
    %261 = vector.load %arg3[%260, %c0_229] : memref<10x128xf32, #tpu.memory_space<vmem>>, vector<1x128xf32>
    %262 = arith.addf %259, %261 : vector<1x128xf32>
    %c32 = arith.constant 32 : index
    %c0_230 = arith.constant 0 : index
    %263 = vector.load %arg8[%c32, %c0_230] : memref<64x128xf32, #tpu.memory_space<vmem>>, vector<1x128xf32>
    tpu.vector_store %arg8[%c32, %c0_230], %262 {strides = array<i32>} : memref<64x128xf32, #tpu.memory_space<vmem>>, vector<1x128xf32>,
    %c1_231 = arith.constant 1 : index
    %c4_232 = arith.constant 4 : index
    %264 = memref.load %arg0[%c1_231, %c4_232] : memref<8x8xi32, #tpu.memory_space<smem>>
    %c1_233 = arith.constant 1 : index
    %c4_234 = arith.constant 4 : index
    %265 = memref.load %arg1[%c1_233, %c4_234] : memref<8x8xi32, #tpu.memory_space<smem>>
    %266 = arith.index_cast %264 : i32 to index
    %c0_235 = arith.constant 0 : index
    %267 = vector.load %arg2[%266, %c0_235] : memref<50x128xf32, #tpu.memory_space<vmem>>, vector<1x128xf32>
    %268 = arith.index_cast %265 : i32 to index
    %c0_236 = arith.constant 0 : index
    %269 = vector.load %arg3[%268, %c0_236] : memref<10x128xf32, #tpu.memory_space<vmem>>, vector<1x128xf32>
    %270 = arith.addf %267, %269 : vector<1x128xf32>
    %c33 = arith.constant 33 : index
    %c0_237 = arith.constant 0 : index
    %271 = vector.load %arg8[%c33, %c0_237] : memref<64x128xf32, #tpu.memory_space<vmem>>, vector<1x128xf32>
    tpu.vector_store %arg8[%c33, %c0_237], %270 {strides = array<i32>} : memref<64x128xf32, #tpu.memory_space<vmem>>, vector<1x128xf32>,
    %c2_238 = arith.constant 2 : index
    %c4_239 = arith.constant 4 : index
    %272 = memref.load %arg0[%c2_238, %c4_239] : memref<8x8xi32, #tpu.memory_space<smem>>
    %c2_240 = arith.constant 2 : index
    %c4_241 = arith.constant 4 : index
    %273 = memref.load %arg1[%c2_240, %c4_241] : memref<8x8xi32, #tpu.memory_space<smem>>
    %274 = arith.index_cast %272 : i32 to index
    %c0_242 = arith.constant 0 : index
    %275 = vector.load %arg2[%274, %c0_242] : memref<50x128xf32, #tpu.memory_space<vmem>>, vector<1x128xf32>
    %276 = arith.index_cast %273 : i32 to index
    %c0_243 = arith.constant 0 : index
    %277 = vector.load %arg3[%276, %c0_243] : memref<10x128xf32, #tpu.memory_space<vmem>>, vector<1x128xf32>
    %278 = arith.addf %275, %277 : vector<1x128xf32>
    %c34 = arith.constant 34 : index
    %c0_244 = arith.constant 0 : index
    %279 = vector.load %arg8[%c34, %c0_244] : memref<64x128xf32, #tpu.memory_space<vmem>>, vector<1x128xf32>
    tpu.vector_store %arg8[%c34, %c0_244], %278 {strides = array<i32>} : memref<64x128xf32, #tpu.memory_space<vmem>>, vector<1x128xf32>,
    %c3_245 = arith.constant 3 : index
    %c4_246 = arith.constant 4 : index
    %280 = memref.load %arg0[%c3_245, %c4_246] : memref<8x8xi32, #tpu.memory_space<smem>>
    %c3_247 = arith.constant 3 : index
    %c4_248 = arith.constant 4 : index
    %281 = memref.load %arg1[%c3_247, %c4_248] : memref<8x8xi32, #tpu.memory_space<smem>>
    %282 = arith.index_cast %280 : i32 to index
    %c0_249 = arith.constant 0 : index
    %283 = vector.load %arg2[%282, %c0_249] : memref<50x128xf32, #tpu.memory_space<vmem>>, vector<1x128xf32>
    %284 = arith.index_cast %281 : i32 to index
    %c0_250 = arith.constant 0 : index
    %285 = vector.load %arg3[%284, %c0_250] : memref<10x128xf32, #tpu.memory_space<vmem>>, vector<1x128xf32>
    %286 = arith.addf %283, %285 : vector<1x128xf32>
    %c35 = arith.constant 35 : index
    %c0_251 = arith.constant 0 : index
    %287 = vector.load %arg8[%c35, %c0_251] : memref<64x128xf32, #tpu.memory_space<vmem>>, vector<1x128xf32>
    tpu.vector_store %arg8[%c35, %c0_251], %286 {strides = array<i32>} : memref<64x128xf32, #tpu.memory_space<vmem>>, vector<1x128xf32>,
    %c4_252 = arith.constant 4 : index
    %c4_253 = arith.constant 4 : index
    %288 = memref.load %arg0[%c4_252, %c4_253] : memref<8x8xi32, #tpu.memory_space<smem>>
    %c4_254 = arith.constant 4 : index
    %c4_255 = arith.constant 4 : index
    %289 = memref.load %arg1[%c4_254, %c4_255] : memref<8x8xi32, #tpu.memory_space<smem>>
    %290 = arith.index_cast %288 : i32 to index
    %c0_256 = arith.constant 0 : index
    %291 = vector.load %arg2[%290, %c0_256] : memref<50x128xf32, #tpu.memory_space<vmem>>, vector<1x128xf32>
    %292 = arith.index_cast %289 : i32 to index
    %c0_257 = arith.constant 0 : index
    %293 = vector.load %arg3[%292, %c0_257] : memref<10x128xf32, #tpu.memory_space<vmem>>, vector<1x128xf32>
    %294 = arith.addf %291, %293 : vector<1x128xf32>
    %c36 = arith.constant 36 : index
    %c0_258 = arith.constant 0 : index
    %295 = vector.load %arg8[%c36, %c0_258] : memref<64x128xf32, #tpu.memory_space<vmem>>, vector<1x128xf32>
    tpu.vector_store %arg8[%c36, %c0_258], %294 {strides = array<i32>} : memref<64x128xf32, #tpu.memory_space<vmem>>, vector<1x128xf32>,
    %c5_259 = arith.constant 5 : index
    %c4_260 = arith.constant 4 : index
    %296 = memref.load %arg0[%c5_259, %c4_260] : memref<8x8xi32, #tpu.memory_space<smem>>
    %c5_261 = arith.constant 5 : index
    %c4_262 = arith.constant 4 : index
    %297 = memref.load %arg1[%c5_261, %c4_262] : memref<8x8xi32, #tpu.memory_space<smem>>
    %298 = arith.index_cast %296 : i32 to index
    %c0_263 = arith.constant 0 : index
    %299 = vector.load %arg2[%298, %c0_263] : memref<50x128xf32, #tpu.memory_space<vmem>>, vector<1x128xf32>
    %300 = arith.index_cast %297 : i32 to index
    %c0_264 = arith.constant 0 : index
    %301 = vector.load %arg3[%300, %c0_264] : memref<10x128xf32, #tpu.memory_space<vmem>>, vector<1x128xf32>
    %302 = arith.addf %299, %301 : vector<1x128xf32>
    %c37 = arith.constant 37 : index
    %c0_265 = arith.constant 0 : index
    %303 = vector.load %arg8[%c37, %c0_265] : memref<64x128xf32, #tpu.memory_space<vmem>>, vector<1x128xf32>
    tpu.vector_store %arg8[%c37, %c0_265], %302 {strides = array<i32>} : memref<64x128xf32, #tpu.memory_space<vmem>>, vector<1x128xf32>,
    %c6_266 = arith.constant 6 : index
    %c4_267 = arith.constant 4 : index
    %304 = memref.load %arg0[%c6_266, %c4_267] : memref<8x8xi32, #tpu.memory_space<smem>>
    %c6_268 = arith.constant 6 : index
    %c4_269 = arith.constant 4 : index
    %305 = memref.load %arg1[%c6_268, %c4_269] : memref<8x8xi32, #tpu.memory_space<smem>>
    %306 = arith.index_cast %304 : i32 to index
    %c0_270 = arith.constant 0 : index
    %307 = vector.load %arg2[%306, %c0_270] : memref<50x128xf32, #tpu.memory_space<vmem>>, vector<1x128xf32>
    %308 = arith.index_cast %305 : i32 to index
    %c0_271 = arith.constant 0 : index
    %309 = vector.load %arg3[%308, %c0_271] : memref<10x128xf32, #tpu.memory_space<vmem>>, vector<1x128xf32>
    %310 = arith.addf %307, %309 : vector<1x128xf32>
    %c38 = arith.constant 38 : index
    %c0_272 = arith.constant 0 : index
    %311 = vector.load %arg8[%c38, %c0_272] : memref<64x128xf32, #tpu.memory_space<vmem>>, vector<1x128xf32>
    tpu.vector_store %arg8[%c38, %c0_272], %310 {strides = array<i32>} : memref<64x128xf32, #tpu.memory_space<vmem>>, vector<1x128xf32>,
    %c7_273 = arith.constant 7 : index
    %c4_274 = arith.constant 4 : index
    %312 = memref.load %arg0[%c7_273, %c4_274] : memref<8x8xi32, #tpu.memory_space<smem>>
    %c7_275 = arith.constant 7 : index
    %c4_276 = arith.constant 4 : index
    %313 = memref.load %arg1[%c7_275, %c4_276] : memref<8x8xi32, #tpu.memory_space<smem>>
    %314 = arith.index_cast %312 : i32 to index
    %c0_277 = arith.constant 0 : index
    %315 = vector.load %arg2[%314, %c0_277] : memref<50x128xf32, #tpu.memory_space<vmem>>, vector<1x128xf32>
    %316 = arith.index_cast %313 : i32 to index
    %c0_278 = arith.constant 0 : index
    %317 = vector.load %arg3[%316, %c0_278] : memref<10x128xf32, #tpu.memory_space<vmem>>, vector<1x128xf32>
    %318 = arith.addf %315, %317 : vector<1x128xf32>
    %c39 = arith.constant 39 : index
    %c0_279 = arith.constant 0 : index
    %319 = vector.load %arg8[%c39, %c0_279] : memref<64x128xf32, #tpu.memory_space<vmem>>, vector<1x128xf32>
    tpu.vector_store %arg8[%c39, %c0_279], %318 {strides = array<i32>} : memref<64x128xf32, #tpu.memory_space<vmem>>, vector<1x128xf32>,
    %c0_280 = arith.constant 0 : index
    %c5_281 = arith.constant 5 : index
    %320 = memref.load %arg0[%c0_280, %c5_281] : memref<8x8xi32, #tpu.memory_space<smem>>
    %c0_282 = arith.constant 0 : index
    %c5_283 = arith.constant 5 : index
    %321 = memref.load %arg1[%c0_282, %c5_283] : memref<8x8xi32, #tpu.memory_space<smem>>
    %322 = arith.index_cast %320 : i32 to index
    %c0_284 = arith.constant 0 : index
    %323 = vector.load %arg2[%322, %c0_284] : memref<50x128xf32, #tpu.memory_space<vmem>>, vector<1x128xf32>
    %324 = arith.index_cast %321 : i32 to index
    %c0_285 = arith.constant 0 : index
    %325 = vector.load %arg3[%324, %c0_285] : memref<10x128xf32, #tpu.memory_space<vmem>>, vector<1x128xf32>
    %326 = arith.addf %323, %325 : vector<1x128xf32>
    %c40 = arith.constant 40 : index
    %c0_286 = arith.constant 0 : index
    %327 = vector.load %arg8[%c40, %c0_286] : memref<64x128xf32, #tpu.memory_space<vmem>>, vector<1x128xf32>
    tpu.vector_store %arg8[%c40, %c0_286], %326 {strides = array<i32>} : memref<64x128xf32, #tpu.memory_space<vmem>>, vector<1x128xf32>,
    %c1_287 = arith.constant 1 : index
    %c5_288 = arith.constant 5 : index
    %328 = memref.load %arg0[%c1_287, %c5_288] : memref<8x8xi32, #tpu.memory_space<smem>>
    %c1_289 = arith.constant 1 : index
    %c5_290 = arith.constant 5 : index
    %329 = memref.load %arg1[%c1_289, %c5_290] : memref<8x8xi32, #tpu.memory_space<smem>>
    %330 = arith.index_cast %328 : i32 to index
    %c0_291 = arith.constant 0 : index
    %331 = vector.load %arg2[%330, %c0_291] : memref<50x128xf32, #tpu.memory_space<vmem>>, vector<1x128xf32>
    %332 = arith.index_cast %329 : i32 to index
    %c0_292 = arith.constant 0 : index
    %333 = vector.load %arg3[%332, %c0_292] : memref<10x128xf32, #tpu.memory_space<vmem>>, vector<1x128xf32>
    %334 = arith.addf %331, %333 : vector<1x128xf32>
    %c41 = arith.constant 41 : index
    %c0_293 = arith.constant 0 : index
    %335 = vector.load %arg8[%c41, %c0_293] : memref<64x128xf32, #tpu.memory_space<vmem>>, vector<1x128xf32>
    tpu.vector_store %arg8[%c41, %c0_293], %334 {strides = array<i32>} : memref<64x128xf32, #tpu.memory_space<vmem>>, vector<1x128xf32>,
    %c2_294 = arith.constant 2 : index
    %c5_295 = arith.constant 5 : index
    %336 = memref.load %arg0[%c2_294, %c5_295] : memref<8x8xi32, #tpu.memory_space<smem>>
    %c2_296 = arith.constant 2 : index
    %c5_297 = arith.constant 5 : index
    %337 = memref.load %arg1[%c2_296, %c5_297] : memref<8x8xi32, #tpu.memory_space<smem>>
    %338 = arith.index_cast %336 : i32 to index
    %c0_298 = arith.constant 0 : index
    %339 = vector.load %arg2[%338, %c0_298] : memref<50x128xf32, #tpu.memory_space<vmem>>, vector<1x128xf32>
    %340 = arith.index_cast %337 : i32 to index
    %c0_299 = arith.constant 0 : index
    %341 = vector.load %arg3[%340, %c0_299] : memref<10x128xf32, #tpu.memory_space<vmem>>, vector<1x128xf32>
    %342 = arith.addf %339, %341 : vector<1x128xf32>
    %c42 = arith.constant 42 : index
    %c0_300 = arith.constant 0 : index
    %343 = vector.load %arg8[%c42, %c0_300] : memref<64x128xf32, #tpu.memory_space<vmem>>, vector<1x128xf32>
    tpu.vector_store %arg8[%c42, %c0_300], %342 {strides = array<i32>} : memref<64x128xf32, #tpu.memory_space<vmem>>, vector<1x128xf32>,
    %c3_301 = arith.constant 3 : index
    %c5_302 = arith.constant 5 : index
    %344 = memref.load %arg0[%c3_301, %c5_302] : memref<8x8xi32, #tpu.memory_space<smem>>
    %c3_303 = arith.constant 3 : index
    %c5_304 = arith.constant 5 : index
    %345 = memref.load %arg1[%c3_303, %c5_304] : memref<8x8xi32, #tpu.memory_space<smem>>
    %346 = arith.index_cast %344 : i32 to index
    %c0_305 = arith.constant 0 : index
    %347 = vector.load %arg2[%346, %c0_305] : memref<50x128xf32, #tpu.memory_space<vmem>>, vector<1x128xf32>
    %348 = arith.index_cast %345 : i32 to index
    %c0_306 = arith.constant 0 : index
    %349 = vector.load %arg3[%348, %c0_306] : memref<10x128xf32, #tpu.memory_space<vmem>>, vector<1x128xf32>
    %350 = arith.addf %347, %349 : vector<1x128xf32>
    %c43 = arith.constant 43 : index
    %c0_307 = arith.constant 0 : index
    %351 = vector.load %arg8[%c43, %c0_307] : memref<64x128xf32, #tpu.memory_space<vmem>>, vector<1x128xf32>
    tpu.vector_store %arg8[%c43, %c0_307], %350 {strides = array<i32>} : memref<64x128xf32, #tpu.memory_space<vmem>>, vector<1x128xf32>,
    %c4_308 = arith.constant 4 : index
    %c5_309 = arith.constant 5 : index
    %352 = memref.load %arg0[%c4_308, %c5_309] : memref<8x8xi32, #tpu.memory_space<smem>>
    %c4_310 = arith.constant 4 : index
    %c5_311 = arith.constant 5 : index
    %353 = memref.load %arg1[%c4_310, %c5_311] : memref<8x8xi32, #tpu.memory_space<smem>>
    %354 = arith.index_cast %352 : i32 to index
    %c0_312 = arith.constant 0 : index
    %355 = vector.load %arg2[%354, %c0_312] : memref<50x128xf32, #tpu.memory_space<vmem>>, vector<1x128xf32>
    %356 = arith.index_cast %353 : i32 to index
    %c0_313 = arith.constant 0 : index
    %357 = vector.load %arg3[%356, %c0_313] : memref<10x128xf32, #tpu.memory_space<vmem>>, vector<1x128xf32>
    %358 = arith.addf %355, %357 : vector<1x128xf32>
    %c44 = arith.constant 44 : index
    %c0_314 = arith.constant 0 : index
    %359 = vector.load %arg8[%c44, %c0_314] : memref<64x128xf32, #tpu.memory_space<vmem>>, vector<1x128xf32>
    tpu.vector_store %arg8[%c44, %c0_314], %358 {strides = array<i32>} : memref<64x128xf32, #tpu.memory_space<vmem>>, vector<1x128xf32>,
    %c5_315 = arith.constant 5 : index
    %c5_316 = arith.constant 5 : index
    %360 = memref.load %arg0[%c5_315, %c5_316] : memref<8x8xi32, #tpu.memory_space<smem>>
    %c5_317 = arith.constant 5 : index
    %c5_318 = arith.constant 5 : index
    %361 = memref.load %arg1[%c5_317, %c5_318] : memref<8x8xi32, #tpu.memory_space<smem>>
    %362 = arith.index_cast %360 : i32 to index
    %c0_319 = arith.constant 0 : index
    %363 = vector.load %arg2[%362, %c0_319] : memref<50x128xf32, #tpu.memory_space<vmem>>, vector<1x128xf32>
    %364 = arith.index_cast %361 : i32 to index
    %c0_320 = arith.constant 0 : index
    %365 = vector.load %arg3[%364, %c0_320] : memref<10x128xf32, #tpu.memory_space<vmem>>, vector<1x128xf32>
    %366 = arith.addf %363, %365 : vector<1x128xf32>
    %c45 = arith.constant 45 : index
    %c0_321 = arith.constant 0 : index
    %367 = vector.load %arg8[%c45, %c0_321] : memref<64x128xf32, #tpu.memory_space<vmem>>, vector<1x128xf32>
    tpu.vector_store %arg8[%c45, %c0_321], %366 {strides = array<i32>} : memref<64x128xf32, #tpu.memory_space<vmem>>, vector<1x128xf32>,
    %c6_322 = arith.constant 6 : index
    %c5_323 = arith.constant 5 : index
    %368 = memref.load %arg0[%c6_322, %c5_323] : memref<8x8xi32, #tpu.memory_space<smem>>
    %c6_324 = arith.constant 6 : index
    %c5_325 = arith.constant 5 : index
    %369 = memref.load %arg1[%c6_324, %c5_325] : memref<8x8xi32, #tpu.memory_space<smem>>
    %370 = arith.index_cast %368 : i32 to index
    %c0_326 = arith.constant 0 : index
    %371 = vector.load %arg2[%370, %c0_326] : memref<50x128xf32, #tpu.memory_space<vmem>>, vector<1x128xf32>
    %372 = arith.index_cast %369 : i32 to index
    %c0_327 = arith.constant 0 : index
    %373 = vector.load %arg3[%372, %c0_327] : memref<10x128xf32, #tpu.memory_space<vmem>>, vector<1x128xf32>
    %374 = arith.addf %371, %373 : vector<1x128xf32>
    %c46 = arith.constant 46 : index
    %c0_328 = arith.constant 0 : index
    %375 = vector.load %arg8[%c46, %c0_328] : memref<64x128xf32, #tpu.memory_space<vmem>>, vector<1x128xf32>
    tpu.vector_store %arg8[%c46, %c0_328], %374 {strides = array<i32>} : memref<64x128xf32, #tpu.memory_space<vmem>>, vector<1x128xf32>,
    %c7_329 = arith.constant 7 : index
    %c5_330 = arith.constant 5 : index
    %376 = memref.load %arg0[%c7_329, %c5_330] : memref<8x8xi32, #tpu.memory_space<smem>>
    %c7_331 = arith.constant 7 : index
    %c5_332 = arith.constant 5 : index
    %377 = memref.load %arg1[%c7_331, %c5_332] : memref<8x8xi32, #tpu.memory_space<smem>>
    %378 = arith.index_cast %376 : i32 to index
    %c0_333 = arith.constant 0 : index
    %379 = vector.load %arg2[%378, %c0_333] : memref<50x128xf32, #tpu.memory_space<vmem>>, vector<1x128xf32>
    %380 = arith.index_cast %377 : i32 to index
    %c0_334 = arith.constant 0 : index
    %381 = vector.load %arg3[%380, %c0_334] : memref<10x128xf32, #tpu.memory_space<vmem>>, vector<1x128xf32>
    %382 = arith.addf %379, %381 : vector<1x128xf32>
    %c47 = arith.constant 47 : index
    %c0_335 = arith.constant 0 : index
    %383 = vector.load %arg8[%c47, %c0_335] : memref<64x128xf32, #tpu.memory_space<vmem>>, vector<1x128xf32>
    tpu.vector_store %arg8[%c47, %c0_335], %382 {strides = array<i32>} : memref<64x128xf32, #tpu.memory_space<vmem>>, vector<1x128xf32>,
    %c0_336 = arith.constant 0 : index
    %c6_337 = arith.constant 6 : index
    %384 = memref.load %arg0[%c0_336, %c6_337] : memref<8x8xi32, #tpu.memory_space<smem>>
    %c0_338 = arith.constant 0 : index
    %c6_339 = arith.constant 6 : index
    %385 = memref.load %arg1[%c0_338, %c6_339] : memref<8x8xi32, #tpu.memory_space<smem>>
    %386 = arith.index_cast %384 : i32 to index
    %c0_340 = arith.constant 0 : index
    %387 = vector.load %arg2[%386, %c0_340] : memref<50x128xf32, #tpu.memory_space<vmem>>, vector<1x128xf32>
    %388 = arith.index_cast %385 : i32 to index
    %c0_341 = arith.constant 0 : index
    %389 = vector.load %arg3[%388, %c0_341] : memref<10x128xf32, #tpu.memory_space<vmem>>, vector<1x128xf32>
    %390 = arith.addf %387, %389 : vector<1x128xf32>
    %c48 = arith.constant 48 : index
    %c0_342 = arith.constant 0 : index
    %391 = vector.load %arg8[%c48, %c0_342] : memref<64x128xf32, #tpu.memory_space<vmem>>, vector<1x128xf32>
    tpu.vector_store %arg8[%c48, %c0_342], %390 {strides = array<i32>} : memref<64x128xf32, #tpu.memory_space<vmem>>, vector<1x128xf32>,
    %c1_343 = arith.constant 1 : index
    %c6_344 = arith.constant 6 : index
    %392 = memref.load %arg0[%c1_343, %c6_344] : memref<8x8xi32, #tpu.memory_space<smem>>
    %c1_345 = arith.constant 1 : index
    %c6_346 = arith.constant 6 : index
    %393 = memref.load %arg1[%c1_345, %c6_346] : memref<8x8xi32, #tpu.memory_space<smem>>
    %394 = arith.index_cast %392 : i32 to index
    %c0_347 = arith.constant 0 : index
    %395 = vector.load %arg2[%394, %c0_347] : memref<50x128xf32, #tpu.memory_space<vmem>>, vector<1x128xf32>
    %396 = arith.index_cast %393 : i32 to index
    %c0_348 = arith.constant 0 : index
    %397 = vector.load %arg3[%396, %c0_348] : memref<10x128xf32, #tpu.memory_space<vmem>>, vector<1x128xf32>
    %398 = arith.addf %395, %397 : vector<1x128xf32>
    %c49 = arith.constant 49 : index
    %c0_349 = arith.constant 0 : index
    %399 = vector.load %arg8[%c49, %c0_349] : memref<64x128xf32, #tpu.memory_space<vmem>>, vector<1x128xf32>
    tpu.vector_store %arg8[%c49, %c0_349], %398 {strides = array<i32>} : memref<64x128xf32, #tpu.memory_space<vmem>>, vector<1x128xf32>,
    %c2_350 = arith.constant 2 : index
    %c6_351 = arith.constant 6 : index
    %400 = memref.load %arg0[%c2_350, %c6_351] : memref<8x8xi32, #tpu.memory_space<smem>>
    %c2_352 = arith.constant 2 : index
    %c6_353 = arith.constant 6 : index
    %401 = memref.load %arg1[%c2_352, %c6_353] : memref<8x8xi32, #tpu.memory_space<smem>>
    %402 = arith.index_cast %400 : i32 to index
    %c0_354 = arith.constant 0 : index
    %403 = vector.load %arg2[%402, %c0_354] : memref<50x128xf32, #tpu.memory_space<vmem>>, vector<1x128xf32>
    %404 = arith.index_cast %401 : i32 to index
    %c0_355 = arith.constant 0 : index
    %405 = vector.load %arg3[%404, %c0_355] : memref<10x128xf32, #tpu.memory_space<vmem>>, vector<1x128xf32>
    %406 = arith.addf %403, %405 : vector<1x128xf32>
    %c50 = arith.constant 50 : index
    %c0_356 = arith.constant 0 : index
    %407 = vector.load %arg8[%c50, %c0_356] : memref<64x128xf32, #tpu.memory_space<vmem>>, vector<1x128xf32>
    tpu.vector_store %arg8[%c50, %c0_356], %406 {strides = array<i32>} : memref<64x128xf32, #tpu.memory_space<vmem>>, vector<1x128xf32>,
    %c3_357 = arith.constant 3 : index
    %c6_358 = arith.constant 6 : index
    %408 = memref.load %arg0[%c3_357, %c6_358] : memref<8x8xi32, #tpu.memory_space<smem>>
    %c3_359 = arith.constant 3 : index
    %c6_360 = arith.constant 6 : index
    %409 = memref.load %arg1[%c3_359, %c6_360] : memref<8x8xi32, #tpu.memory_space<smem>>
    %410 = arith.index_cast %408 : i32 to index
    %c0_361 = arith.constant 0 : index
    %411 = vector.load %arg2[%410, %c0_361] : memref<50x128xf32, #tpu.memory_space<vmem>>, vector<1x128xf32>
    %412 = arith.index_cast %409 : i32 to index
    %c0_362 = arith.constant 0 : index
    %413 = vector.load %arg3[%412, %c0_362] : memref<10x128xf32, #tpu.memory_space<vmem>>, vector<1x128xf32>
    %414 = arith.addf %411, %413 : vector<1x128xf32>
    %c51 = arith.constant 51 : index
    %c0_363 = arith.constant 0 : index
    %415 = vector.load %arg8[%c51, %c0_363] : memref<64x128xf32, #tpu.memory_space<vmem>>, vector<1x128xf32>
    tpu.vector_store %arg8[%c51, %c0_363], %414 {strides = array<i32>} : memref<64x128xf32, #tpu.memory_space<vmem>>, vector<1x128xf32>,
    %c4_364 = arith.constant 4 : index
    %c6_365 = arith.constant 6 : index
    %416 = memref.load %arg0[%c4_364, %c6_365] : memref<8x8xi32, #tpu.memory_space<smem>>
    %c4_366 = arith.constant 4 : index
    %c6_367 = arith.constant 6 : index
    %417 = memref.load %arg1[%c4_366, %c6_367] : memref<8x8xi32, #tpu.memory_space<smem>>
    %418 = arith.index_cast %416 : i32 to index
    %c0_368 = arith.constant 0 : index
    %419 = vector.load %arg2[%418, %c0_368] : memref<50x128xf32, #tpu.memory_space<vmem>>, vector<1x128xf32>
    %420 = arith.index_cast %417 : i32 to index
    %c0_369 = arith.constant 0 : index
    %421 = vector.load %arg3[%420, %c0_369] : memref<10x128xf32, #tpu.memory_space<vmem>>, vector<1x128xf32>
    %422 = arith.addf %419, %421 : vector<1x128xf32>
    %c52 = arith.constant 52 : index
    %c0_370 = arith.constant 0 : index
    %423 = vector.load %arg8[%c52, %c0_370] : memref<64x128xf32, #tpu.memory_space<vmem>>, vector<1x128xf32>
    tpu.vector_store %arg8[%c52, %c0_370], %422 {strides = array<i32>} : memref<64x128xf32, #tpu.memory_space<vmem>>, vector<1x128xf32>,
    %c5_371 = arith.constant 5 : index
    %c6_372 = arith.constant 6 : index
    %424 = memref.load %arg0[%c5_371, %c6_372] : memref<8x8xi32, #tpu.memory_space<smem>>
    %c5_373 = arith.constant 5 : index
    %c6_374 = arith.constant 6 : index
    %425 = memref.load %arg1[%c5_373, %c6_374] : memref<8x8xi32, #tpu.memory_space<smem>>
    %426 = arith.index_cast %424 : i32 to index
    %c0_375 = arith.constant 0 : index
    %427 = vector.load %arg2[%426, %c0_375] : memref<50x128xf32, #tpu.memory_space<vmem>>, vector<1x128xf32>
    %428 = arith.index_cast %425 : i32 to index
    %c0_376 = arith.constant 0 : index
    %429 = vector.load %arg3[%428, %c0_376] : memref<10x128xf32, #tpu.memory_space<vmem>>, vector<1x128xf32>
    %430 = arith.addf %427, %429 : vector<1x128xf32>
    %c53 = arith.constant 53 : index
    %c0_377 = arith.constant 0 : index
    %431 = vector.load %arg8[%c53, %c0_377] : memref<64x128xf32, #tpu.memory_space<vmem>>, vector<1x128xf32>
    tpu.vector_store %arg8[%c53, %c0_377], %430 {strides = array<i32>} : memref<64x128xf32, #tpu.memory_space<vmem>>, vector<1x128xf32>,
    %c6_378 = arith.constant 6 : index
    %c6_379 = arith.constant 6 : index
    %432 = memref.load %arg0[%c6_378, %c6_379] : memref<8x8xi32, #tpu.memory_space<smem>>
    %c6_380 = arith.constant 6 : index
    %c6_381 = arith.constant 6 : index
    %433 = memref.load %arg1[%c6_380, %c6_381] : memref<8x8xi32, #tpu.memory_space<smem>>
    %434 = arith.index_cast %432 : i32 to index
    %c0_382 = arith.constant 0 : index
    %435 = vector.load %arg2[%434, %c0_382] : memref<50x128xf32, #tpu.memory_space<vmem>>, vector<1x128xf32>
    %436 = arith.index_cast %433 : i32 to index
    %c0_383 = arith.constant 0 : index
    %437 = vector.load %arg3[%436, %c0_383] : memref<10x128xf32, #tpu.memory_space<vmem>>, vector<1x128xf32>
    %438 = arith.addf %435, %437 : vector<1x128xf32>
    %c54 = arith.constant 54 : index
    %c0_384 = arith.constant 0 : index
    %439 = vector.load %arg8[%c54, %c0_384] : memref<64x128xf32, #tpu.memory_space<vmem>>, vector<1x128xf32>
    tpu.vector_store %arg8[%c54, %c0_384], %438 {strides = array<i32>} : memref<64x128xf32, #tpu.memory_space<vmem>>, vector<1x128xf32>,
    %c7_385 = arith.constant 7 : index
    %c6_386 = arith.constant 6 : index
    %440 = memref.load %arg0[%c7_385, %c6_386] : memref<8x8xi32, #tpu.memory_space<smem>>
    %c7_387 = arith.constant 7 : index
    %c6_388 = arith.constant 6 : index
    %441 = memref.load %arg1[%c7_387, %c6_388] : memref<8x8xi32, #tpu.memory_space<smem>>
    %442 = arith.index_cast %440 : i32 to index
    %c0_389 = arith.constant 0 : index
    %443 = vector.load %arg2[%442, %c0_389] : memref<50x128xf32, #tpu.memory_space<vmem>>, vector<1x128xf32>
    %444 = arith.index_cast %441 : i32 to index
    %c0_390 = arith.constant 0 : index
    %445 = vector.load %arg3[%444, %c0_390] : memref<10x128xf32, #tpu.memory_space<vmem>>, vector<1x128xf32>
    %446 = arith.addf %443, %445 : vector<1x128xf32>
    %c55 = arith.constant 55 : index
    %c0_391 = arith.constant 0 : index
    %447 = vector.load %arg8[%c55, %c0_391] : memref<64x128xf32, #tpu.memory_space<vmem>>, vector<1x128xf32>
    tpu.vector_store %arg8[%c55, %c0_391], %446 {strides = array<i32>} : memref<64x128xf32, #tpu.memory_space<vmem>>, vector<1x128xf32>,
    %c0_392 = arith.constant 0 : index
    %c7_393 = arith.constant 7 : index
    %448 = memref.load %arg0[%c0_392, %c7_393] : memref<8x8xi32, #tpu.memory_space<smem>>
    %c0_394 = arith.constant 0 : index
    %c7_395 = arith.constant 7 : index
    %449 = memref.load %arg1[%c0_394, %c7_395] : memref<8x8xi32, #tpu.memory_space<smem>>
    %450 = arith.index_cast %448 : i32 to index
    %c0_396 = arith.constant 0 : index
    %451 = vector.load %arg2[%450, %c0_396] : memref<50x128xf32, #tpu.memory_space<vmem>>, vector<1x128xf32>
    %452 = arith.index_cast %449 : i32 to index
    %c0_397 = arith.constant 0 : index
    %453 = vector.load %arg3[%452, %c0_397] : memref<10x128xf32, #tpu.memory_space<vmem>>, vector<1x128xf32>
    %454 = arith.addf %451, %453 : vector<1x128xf32>
    %c56 = arith.constant 56 : index
    %c0_398 = arith.constant 0 : index
    %455 = vector.load %arg8[%c56, %c0_398] : memref<64x128xf32, #tpu.memory_space<vmem>>, vector<1x128xf32>
    tpu.vector_store %arg8[%c56, %c0_398], %454 {strides = array<i32>} : memref<64x128xf32, #tpu.memory_space<vmem>>, vector<1x128xf32>,
    %c1_399 = arith.constant 1 : index
    %c7_400 = arith.constant 7 : index
    %456 = memref.load %arg0[%c1_399, %c7_400] : memref<8x8xi32, #tpu.memory_space<smem>>
    %c1_401 = arith.constant 1 : index
    %c7_402 = arith.constant 7 : index
    %457 = memref.load %arg1[%c1_401, %c7_402] : memref<8x8xi32, #tpu.memory_space<smem>>
    %458 = arith.index_cast %456 : i32 to index
    %c0_403 = arith.constant 0 : index
    %459 = vector.load %arg2[%458, %c0_403] : memref<50x128xf32, #tpu.memory_space<vmem>>, vector<1x128xf32>
    %460 = arith.index_cast %457 : i32 to index
    %c0_404 = arith.constant 0 : index
    %461 = vector.load %arg3[%460, %c0_404] : memref<10x128xf32, #tpu.memory_space<vmem>>, vector<1x128xf32>
    %462 = arith.addf %459, %461 : vector<1x128xf32>
    %c57 = arith.constant 57 : index
    %c0_405 = arith.constant 0 : index
    %463 = vector.load %arg8[%c57, %c0_405] : memref<64x128xf32, #tpu.memory_space<vmem>>, vector<1x128xf32>
    tpu.vector_store %arg8[%c57, %c0_405], %462 {strides = array<i32>} : memref<64x128xf32, #tpu.memory_space<vmem>>, vector<1x128xf32>,
    %c2_406 = arith.constant 2 : index
    %c7_407 = arith.constant 7 : index
    %464 = memref.load %arg0[%c2_406, %c7_407] : memref<8x8xi32, #tpu.memory_space<smem>>
    %c2_408 = arith.constant 2 : index
    %c7_409 = arith.constant 7 : index
    %465 = memref.load %arg1[%c2_408, %c7_409] : memref<8x8xi32, #tpu.memory_space<smem>>
    %466 = arith.index_cast %464 : i32 to index
    %c0_410 = arith.constant 0 : index
    %467 = vector.load %arg2[%466, %c0_410] : memref<50x128xf32, #tpu.memory_space<vmem>>, vector<1x128xf32>
    %468 = arith.index_cast %465 : i32 to index
    %c0_411 = arith.constant 0 : index
    %469 = vector.load %arg3[%468, %c0_411] : memref<10x128xf32, #tpu.memory_space<vmem>>, vector<1x128xf32>
    %470 = arith.addf %467, %469 : vector<1x128xf32>
    %c58 = arith.constant 58 : index
    %c0_412 = arith.constant 0 : index
    %471 = vector.load %arg8[%c58, %c0_412] : memref<64x128xf32, #tpu.memory_space<vmem>>, vector<1x128xf32>
    tpu.vector_store %arg8[%c58, %c0_412], %470 {strides = array<i32>} : memref<64x128xf32, #tpu.memory_space<vmem>>, vector<1x128xf32>,
    %c3_413 = arith.constant 3 : index
    %c7_414 = arith.constant 7 : index
    %472 = memref.load %arg0[%c3_413, %c7_414] : memref<8x8xi32, #tpu.memory_space<smem>>
    %c3_415 = arith.constant 3 : index
    %c7_416 = arith.constant 7 : index
    %473 = memref.load %arg1[%c3_415, %c7_416] : memref<8x8xi32, #tpu.memory_space<smem>>
    %474 = arith.index_cast %472 : i32 to index
    %c0_417 = arith.constant 0 : index
    %475 = vector.load %arg2[%474, %c0_417] : memref<50x128xf32, #tpu.memory_space<vmem>>, vector<1x128xf32>
    %476 = arith.index_cast %473 : i32 to index
    %c0_418 = arith.constant 0 : index
    %477 = vector.load %arg3[%476, %c0_418] : memref<10x128xf32, #tpu.memory_space<vmem>>, vector<1x128xf32>
    %478 = arith.addf %475, %477 : vector<1x128xf32>
    %c59 = arith.constant 59 : index
    %c0_419 = arith.constant 0 : index
    %479 = vector.load %arg8[%c59, %c0_419] : memref<64x128xf32, #tpu.memory_space<vmem>>, vector<1x128xf32>
    tpu.vector_store %arg8[%c59, %c0_419], %478 {strides = array<i32>} : memref<64x128xf32, #tpu.memory_space<vmem>>, vector<1x128xf32>,
    %c4_420 = arith.constant 4 : index
    %c7_421 = arith.constant 7 : index
    %480 = memref.load %arg0[%c4_420, %c7_421] : memref<8x8xi32, #tpu.memory_space<smem>>
    %c4_422 = arith.constant 4 : index
    %c7_423 = arith.constant 7 : index
    %481 = memref.load %arg1[%c4_422, %c7_423] : memref<8x8xi32, #tpu.memory_space<smem>>
    %482 = arith.index_cast %480 : i32 to index
    %c0_424 = arith.constant 0 : index
    %483 = vector.load %arg2[%482, %c0_424] : memref<50x128xf32, #tpu.memory_space<vmem>>, vector<1x128xf32>
    %484 = arith.index_cast %481 : i32 to index
    %c0_425 = arith.constant 0 : index
    %485 = vector.load %arg3[%484, %c0_425] : memref<10x128xf32, #tpu.memory_space<vmem>>, vector<1x128xf32>
    %486 = arith.addf %483, %485 : vector<1x128xf32>
    %c60 = arith.constant 60 : index
    %c0_426 = arith.constant 0 : index
    %487 = vector.load %arg8[%c60, %c0_426] : memref<64x128xf32, #tpu.memory_space<vmem>>, vector<1x128xf32>
    tpu.vector_store %arg8[%c60, %c0_426], %486 {strides = array<i32>} : memref<64x128xf32, #tpu.memory_space<vmem>>, vector<1x128xf32>,
    %c5_427 = arith.constant 5 : index
    %c7_428 = arith.constant 7 : index
    %488 = memref.load %arg0[%c5_427, %c7_428] : memref<8x8xi32, #tpu.memory_space<smem>>
    %c5_429 = arith.constant 5 : index
    %c7_430 = arith.constant 7 : index
    %489 = memref.load %arg1[%c5_429, %c7_430] : memref<8x8xi32, #tpu.memory_space<smem>>
    %490 = arith.index_cast %488 : i32 to index
    %c0_431 = arith.constant 0 : index
    %491 = vector.load %arg2[%490, %c0_431] : memref<50x128xf32, #tpu.memory_space<vmem>>, vector<1x128xf32>
    %492 = arith.index_cast %489 : i32 to index
    %c0_432 = arith.constant 0 : index
    %493 = vector.load %arg3[%492, %c0_432] : memref<10x128xf32, #tpu.memory_space<vmem>>, vector<1x128xf32>
    %494 = arith.addf %491, %493 : vector<1x128xf32>
    %c61 = arith.constant 61 : index
    %c0_433 = arith.constant 0 : index
    %495 = vector.load %arg8[%c61, %c0_433] : memref<64x128xf32, #tpu.memory_space<vmem>>, vector<1x128xf32>
    tpu.vector_store %arg8[%c61, %c0_433], %494 {strides = array<i32>} : memref<64x128xf32, #tpu.memory_space<vmem>>, vector<1x128xf32>,
    %c6_434 = arith.constant 6 : index
    %c7_435 = arith.constant 7 : index
    %496 = memref.load %arg0[%c6_434, %c7_435] : memref<8x8xi32, #tpu.memory_space<smem>>
    %c6_436 = arith.constant 6 : index
    %c7_437 = arith.constant 7 : index
    %497 = memref.load %arg1[%c6_436, %c7_437] : memref<8x8xi32, #tpu.memory_space<smem>>
    %498 = arith.index_cast %496 : i32 to index
    %c0_438 = arith.constant 0 : index
    %499 = vector.load %arg2[%498, %c0_438] : memref<50x128xf32, #tpu.memory_space<vmem>>, vector<1x128xf32>
    %500 = arith.index_cast %497 : i32 to index
    %c0_439 = arith.constant 0 : index
    %501 = vector.load %arg3[%500, %c0_439] : memref<10x128xf32, #tpu.memory_space<vmem>>, vector<1x128xf32>
    %502 = arith.addf %499, %501 : vector<1x128xf32>
    %c62 = arith.constant 62 : index
    %c0_440 = arith.constant 0 : index
    %503 = vector.load %arg8[%c62, %c0_440] : memref<64x128xf32, #tpu.memory_space<vmem>>, vector<1x128xf32>
    tpu.vector_store %arg8[%c62, %c0_440], %502 {strides = array<i32>} : memref<64x128xf32, #tpu.memory_space<vmem>>, vector<1x128xf32>,
    %c7_441 = arith.constant 7 : index
    %c7_442 = arith.constant 7 : index
    %504 = memref.load %arg0[%c7_441, %c7_442] : memref<8x8xi32, #tpu.memory_space<smem>>
    %c7_443 = arith.constant 7 : index
    %c7_444 = arith.constant 7 : index
    %505 = memref.load %arg1[%c7_443, %c7_444] : memref<8x8xi32, #tpu.memory_space<smem>>
    %506 = arith.index_cast %504 : i32 to index
    %c0_445 = arith.constant 0 : index
    %507 = vector.load %arg2[%506, %c0_445] : memref<50x128xf32, #tpu.memory_space<vmem>>, vector<1x128xf32>
    %508 = arith.index_cast %505 : i32 to index
    %c0_446 = arith.constant 0 : index
    %509 = vector.load %arg3[%508, %c0_446] : memref<10x128xf32, #tpu.memory_space<vmem>>, vector<1x128xf32>
    %510 = arith.addf %507, %509 : vector<1x128xf32>
    %c63 = arith.constant 63 : index
    %c0_447 = arith.constant 0 : index
    %511 = vector.load %arg8[%c63, %c0_447] : memref<64x128xf32, #tpu.memory_space<vmem>>, vector<1x128xf32>
    tpu.vector_store %arg8[%c63, %c0_447], %510 {strides = array<i32>} : memref<64x128xf32, #tpu.memory_space<vmem>>, vector<1x128xf32>,
    %c0_448 = arith.constant 0 : index
    %c0_449 = arith.constant 0 : index
    %512 = vector.load %arg4[%c0_448, %c0_449] : memref<32x128xf32, #tpu.memory_space<vmem>>, vector<32x128xf32>
    %cst = arith.constant 0.000000e+00 : f32
    %513 = vector.broadcast %cst : f32 to vector<8x32xf32>
    %cst_450 = arith.constant 0.000000e+00 : f32
    %514 = vector.broadcast %cst_450 : f32 to vector<8x32xf32>
    %c0_451 = arith.constant 0 : index
    %c0_452 = arith.constant 0 : index
    %515 = vector.load %arg8[%c0_451, %c0_452] : memref<64x128xf32, #tpu.memory_space<vmem>>, vector<8x128xf32>
    %cst_453 = arith.constant dense<0.000000e+00> : vector<8x128xf32>
    %516 = tpu.matmul %513, %512, %cst_453 {dimension_numbers = #tpu.dot_dimension_numbers<[1], [0], [0], [1], [0, 0, 1, 1], [], []>} : vector<8x32xf32>, vector<32x128xf32>, vector<8x128xf32> -> vector<8x128xf32>
    %517 = arith.addf %515, %516 : vector<8x128xf32>
    %518 = arith.negf %517 : vector<8x128xf32>
    %519 = math.exp %518 : vector<8x128xf32>
    %cst_454 = arith.constant 1.000000e+00 : f32
    %520 = vector.broadcast %cst_454 : f32 to vector<8x128xf32>
    %521 = arith.addf %520, %519 : vector<8x128xf32>
    %522 = arith.divf %520, %521 : vector<8x128xf32>
    %523 = vector.extract_strided_slice %517 {offsets = [0, 64], sizes = [8, 32], strides = [1, 1]} : vector<8x128xf32> to vector<8x32xf32>
    %524 = math.tanh %523 : vector<8x32xf32>
    %525 = vector.extract_strided_slice %522 {offsets = [0, 0], sizes = [8, 32], strides = [1, 1]} : vector<8x128xf32> to vector<8x32xf32>
    %526 = vector.extract_strided_slice %522 {offsets = [0, 32], sizes = [8, 32], strides = [1, 1]} : vector<8x128xf32> to vector<8x32xf32>
    %527 = vector.extract_strided_slice %522 {offsets = [0, 96], sizes = [8, 32], strides = [1, 1]} : vector<8x128xf32> to vector<8x32xf32>
    %528 = arith.mulf %526, %514 : vector<8x32xf32>
    %529 = arith.mulf %525, %524 : vector<8x32xf32>
    %530 = arith.addf %528, %529 : vector<8x32xf32>
    %531 = math.tanh %530 : vector<8x32xf32>
    %532 = arith.mulf %527, %531 : vector<8x32xf32>
    %c8_455 = arith.constant 8 : index
    %c0_456 = arith.constant 0 : index
    %533 = vector.load %arg8[%c8_455, %c0_456] : memref<64x128xf32, #tpu.memory_space<vmem>>, vector<8x128xf32>
    %cst_457 = arith.constant dense<0.000000e+00> : vector<8x128xf32>
    %534 = tpu.matmul %532, %512, %cst_457 {dimension_numbers = #tpu.dot_dimension_numbers<[1], [0], [0], [1], [0, 0, 1, 1], [], []>} : vector<8x32xf32>, vector<32x128xf32>, vector<8x128xf32> -> vector<8x128xf32>
    %535 = arith.addf %533, %534 : vector<8x128xf32>
    %536 = arith.negf %535 : vector<8x128xf32>
    %537 = math.exp %536 : vector<8x128xf32>
    %cst_458 = arith.constant 1.000000e+00 : f32
    %538 = vector.broadcast %cst_458 : f32 to vector<8x128xf32>
    %539 = arith.addf %538, %537 : vector<8x128xf32>
    %540 = arith.divf %538, %539 : vector<8x128xf32>
    %541 = vector.extract_strided_slice %535 {offsets = [0, 64], sizes = [8, 32], strides = [1, 1]} : vector<8x128xf32> to vector<8x32xf32>
    %542 = math.tanh %541 : vector<8x32xf32>
    %543 = vector.extract_strided_slice %540 {offsets = [0, 0], sizes = [8, 32], strides = [1, 1]} : vector<8x128xf32> to vector<8x32xf32>
    %544 = vector.extract_strided_slice %540 {offsets = [0, 32], sizes = [8, 32], strides = [1, 1]} : vector<8x128xf32> to vector<8x32xf32>
    %545 = vector.extract_strided_slice %540 {offsets = [0, 96], sizes = [8, 32], strides = [1, 1]} : vector<8x128xf32> to vector<8x32xf32>
    %546 = arith.mulf %544, %530 : vector<8x32xf32>
    %547 = arith.mulf %543, %542 : vector<8x32xf32>
    %548 = arith.addf %546, %547 : vector<8x32xf32>
    %549 = math.tanh %548 : vector<8x32xf32>
    %550 = arith.mulf %545, %549 : vector<8x32xf32>
    %c16_459 = arith.constant 16 : index
    %c0_460 = arith.constant 0 : index
    %551 = vector.load %arg8[%c16_459, %c0_460] : memref<64x128xf32, #tpu.memory_space<vmem>>, vector<8x128xf32>
    %cst_461 = arith.constant dense<0.000000e+00> : vector<8x128xf32>
    %552 = tpu.matmul %550, %512, %cst_461 {dimension_numbers = #tpu.dot_dimension_numbers<[1], [0], [0], [1], [0, 0, 1, 1], [], []>} : vector<8x32xf32>, vector<32x128xf32>, vector<8x128xf32> -> vector<8x128xf32>
    %553 = arith.addf %551, %552 : vector<8x128xf32>
    %554 = arith.negf %553 : vector<8x128xf32>
    %555 = math.exp %554 : vector<8x128xf32>
    %cst_462 = arith.constant 1.000000e+00 : f32
    %556 = vector.broadcast %cst_462 : f32 to vector<8x128xf32>
    %557 = arith.addf %556, %555 : vector<8x128xf32>
    %558 = arith.divf %556, %557 : vector<8x128xf32>
    %559 = vector.extract_strided_slice %553 {offsets = [0, 64], sizes = [8, 32], strides = [1, 1]} : vector<8x128xf32> to vector<8x32xf32>
    %560 = math.tanh %559 : vector<8x32xf32>
    %561 = vector.extract_strided_slice %558 {offsets = [0, 0], sizes = [8, 32], strides = [1, 1]} : vector<8x128xf32> to vector<8x32xf32>
    %562 = vector.extract_strided_slice %558 {offsets = [0, 32], sizes = [8, 32], strides = [1, 1]} : vector<8x128xf32> to vector<8x32xf32>
    %563 = vector.extract_strided_slice %558 {offsets = [0, 96], sizes = [8, 32], strides = [1, 1]} : vector<8x128xf32> to vector<8x32xf32>
    %564 = arith.mulf %562, %548 : vector<8x32xf32>
    %565 = arith.mulf %561, %560 : vector<8x32xf32>
    %566 = arith.addf %564, %565 : vector<8x32xf32>
    %567 = math.tanh %566 : vector<8x32xf32>
    %568 = arith.mulf %563, %567 : vector<8x32xf32>
    %c24_463 = arith.constant 24 : index
    %c0_464 = arith.constant 0 : index
    %569 = vector.load %arg8[%c24_463, %c0_464] : memref<64x128xf32, #tpu.memory_space<vmem>>, vector<8x128xf32>
    %cst_465 = arith.constant dense<0.000000e+00> : vector<8x128xf32>
    %570 = tpu.matmul %568, %512, %cst_465 {dimension_numbers = #tpu.dot_dimension_numbers<[1], [0], [0], [1], [0, 0, 1, 1], [], []>} : vector<8x32xf32>, vector<32x128xf32>, vector<8x128xf32> -> vector<8x128xf32>
    %571 = arith.addf %569, %570 : vector<8x128xf32>
    %572 = arith.negf %571 : vector<8x128xf32>
    %573 = math.exp %572 : vector<8x128xf32>
    %cst_466 = arith.constant 1.000000e+00 : f32
    %574 = vector.broadcast %cst_466 : f32 to vector<8x128xf32>
    %575 = arith.addf %574, %573 : vector<8x128xf32>
    %576 = arith.divf %574, %575 : vector<8x128xf32>
    %577 = vector.extract_strided_slice %571 {offsets = [0, 64], sizes = [8, 32], strides = [1, 1]} : vector<8x128xf32> to vector<8x32xf32>
    %578 = math.tanh %577 : vector<8x32xf32>
    %579 = vector.extract_strided_slice %576 {offsets = [0, 0], sizes = [8, 32], strides = [1, 1]} : vector<8x128xf32> to vector<8x32xf32>
    %580 = vector.extract_strided_slice %576 {offsets = [0, 32], sizes = [8, 32], strides = [1, 1]} : vector<8x128xf32> to vector<8x32xf32>
    %581 = vector.extract_strided_slice %576 {offsets = [0, 96], sizes = [8, 32], strides = [1, 1]} : vector<8x128xf32> to vector<8x32xf32>
    %582 = arith.mulf %580, %566 : vector<8x32xf32>
    %583 = arith.mulf %579, %578 : vector<8x32xf32>
    %584 = arith.addf %582, %583 : vector<8x32xf32>
    %585 = math.tanh %584 : vector<8x32xf32>
    %586 = arith.mulf %581, %585 : vector<8x32xf32>
    %c32_467 = arith.constant 32 : index
    %c0_468 = arith.constant 0 : index
    %587 = vector.load %arg8[%c32_467, %c0_468] : memref<64x128xf32, #tpu.memory_space<vmem>>, vector<8x128xf32>
    %cst_469 = arith.constant dense<0.000000e+00> : vector<8x128xf32>
    %588 = tpu.matmul %586, %512, %cst_469 {dimension_numbers = #tpu.dot_dimension_numbers<[1], [0], [0], [1], [0, 0, 1, 1], [], []>} : vector<8x32xf32>, vector<32x128xf32>, vector<8x128xf32> -> vector<8x128xf32>
    %589 = arith.addf %587, %588 : vector<8x128xf32>
    %590 = arith.negf %589 : vector<8x128xf32>
    %591 = math.exp %590 : vector<8x128xf32>
    %cst_470 = arith.constant 1.000000e+00 : f32
    %592 = vector.broadcast %cst_470 : f32 to vector<8x128xf32>
    %593 = arith.addf %592, %591 : vector<8x128xf32>
    %594 = arith.divf %592, %593 : vector<8x128xf32>
    %595 = vector.extract_strided_slice %589 {offsets = [0, 64], sizes = [8, 32], strides = [1, 1]} : vector<8x128xf32> to vector<8x32xf32>
    %596 = math.tanh %595 : vector<8x32xf32>
    %597 = vector.extract_strided_slice %594 {offsets = [0, 0], sizes = [8, 32], strides = [1, 1]} : vector<8x128xf32> to vector<8x32xf32>
    %598 = vector.extract_strided_slice %594 {offsets = [0, 32], sizes = [8, 32], strides = [1, 1]} : vector<8x128xf32> to vector<8x32xf32>
    %599 = vector.extract_strided_slice %594 {offsets = [0, 96], sizes = [8, 32], strides = [1, 1]} : vector<8x128xf32> to vector<8x32xf32>
    %600 = arith.mulf %598, %584 : vector<8x32xf32>
    %601 = arith.mulf %597, %596 : vector<8x32xf32>
    %602 = arith.addf %600, %601 : vector<8x32xf32>
    %603 = math.tanh %602 : vector<8x32xf32>
    %604 = arith.mulf %599, %603 : vector<8x32xf32>
    %c40_471 = arith.constant 40 : index
    %c0_472 = arith.constant 0 : index
    %605 = vector.load %arg8[%c40_471, %c0_472] : memref<64x128xf32, #tpu.memory_space<vmem>>, vector<8x128xf32>
    %cst_473 = arith.constant dense<0.000000e+00> : vector<8x128xf32>
    %606 = tpu.matmul %604, %512, %cst_473 {dimension_numbers = #tpu.dot_dimension_numbers<[1], [0], [0], [1], [0, 0, 1, 1], [], []>} : vector<8x32xf32>, vector<32x128xf32>, vector<8x128xf32> -> vector<8x128xf32>
    %607 = arith.addf %605, %606 : vector<8x128xf32>
    %608 = arith.negf %607 : vector<8x128xf32>
    %609 = math.exp %608 : vector<8x128xf32>
    %cst_474 = arith.constant 1.000000e+00 : f32
    %610 = vector.broadcast %cst_474 : f32 to vector<8x128xf32>
    %611 = arith.addf %610, %609 : vector<8x128xf32>
    %612 = arith.divf %610, %611 : vector<8x128xf32>
    %613 = vector.extract_strided_slice %607 {offsets = [0, 64], sizes = [8, 32], strides = [1, 1]} : vector<8x128xf32> to vector<8x32xf32>
    %614 = math.tanh %613 : vector<8x32xf32>
    %615 = vector.extract_strided_slice %612 {offsets = [0, 0], sizes = [8, 32], strides = [1, 1]} : vector<8x128xf32> to vector<8x32xf32>
    %616 = vector.extract_strided_slice %612 {offsets = [0, 32], sizes = [8, 32], strides = [1, 1]} : vector<8x128xf32> to vector<8x32xf32>
    %617 = vector.extract_strided_slice %612 {offsets = [0, 96], sizes = [8, 32], strides = [1, 1]} : vector<8x128xf32> to vector<8x32xf32>
    %618 = arith.mulf %616, %602 : vector<8x32xf32>
    %619 = arith.mulf %615, %614 : vector<8x32xf32>
    %620 = arith.addf %618, %619 : vector<8x32xf32>
    %621 = math.tanh %620 : vector<8x32xf32>
    %622 = arith.mulf %617, %621 : vector<8x32xf32>
    %c48_475 = arith.constant 48 : index
    %c0_476 = arith.constant 0 : index
    %623 = vector.load %arg8[%c48_475, %c0_476] : memref<64x128xf32, #tpu.memory_space<vmem>>, vector<8x128xf32>
    %cst_477 = arith.constant dense<0.000000e+00> : vector<8x128xf32>
    %624 = tpu.matmul %622, %512, %cst_477 {dimension_numbers = #tpu.dot_dimension_numbers<[1], [0], [0], [1], [0, 0, 1, 1], [], []>} : vector<8x32xf32>, vector<32x128xf32>, vector<8x128xf32> -> vector<8x128xf32>
    %625 = arith.addf %623, %624 : vector<8x128xf32>
    %626 = arith.negf %625 : vector<8x128xf32>
    %627 = math.exp %626 : vector<8x128xf32>
    %cst_478 = arith.constant 1.000000e+00 : f32
    %628 = vector.broadcast %cst_478 : f32 to vector<8x128xf32>
    %629 = arith.addf %628, %627 : vector<8x128xf32>
    %630 = arith.divf %628, %629 : vector<8x128xf32>
    %631 = vector.extract_strided_slice %625 {offsets = [0, 64], sizes = [8, 32], strides = [1, 1]} : vector<8x128xf32> to vector<8x32xf32>
    %632 = math.tanh %631 : vector<8x32xf32>
    %633 = vector.extract_strided_slice %630 {offsets = [0, 0], sizes = [8, 32], strides = [1, 1]} : vector<8x128xf32> to vector<8x32xf32>
    %634 = vector.extract_strided_slice %630 {offsets = [0, 32], sizes = [8, 32], strides = [1, 1]} : vector<8x128xf32> to vector<8x32xf32>
    %635 = vector.extract_strided_slice %630 {offsets = [0, 96], sizes = [8, 32], strides = [1, 1]} : vector<8x128xf32> to vector<8x32xf32>
    %636 = arith.mulf %634, %620 : vector<8x32xf32>
    %637 = arith.mulf %633, %632 : vector<8x32xf32>
    %638 = arith.addf %636, %637 : vector<8x32xf32>
    %639 = math.tanh %638 : vector<8x32xf32>
    %640 = arith.mulf %635, %639 : vector<8x32xf32>
    %c56_479 = arith.constant 56 : index
    %c0_480 = arith.constant 0 : index
    %641 = vector.load %arg8[%c56_479, %c0_480] : memref<64x128xf32, #tpu.memory_space<vmem>>, vector<8x128xf32>
    %cst_481 = arith.constant dense<0.000000e+00> : vector<8x128xf32>
    %642 = tpu.matmul %640, %512, %cst_481 {dimension_numbers = #tpu.dot_dimension_numbers<[1], [0], [0], [1], [0, 0, 1, 1], [], []>} : vector<8x32xf32>, vector<32x128xf32>, vector<8x128xf32> -> vector<8x128xf32>
    %643 = arith.addf %641, %642 : vector<8x128xf32>
    %644 = arith.negf %643 : vector<8x128xf32>
    %645 = math.exp %644 : vector<8x128xf32>
    %cst_482 = arith.constant 1.000000e+00 : f32
    %646 = vector.broadcast %cst_482 : f32 to vector<8x128xf32>
    %647 = arith.addf %646, %645 : vector<8x128xf32>
    %648 = arith.divf %646, %647 : vector<8x128xf32>
    %649 = vector.extract_strided_slice %643 {offsets = [0, 64], sizes = [8, 32], strides = [1, 1]} : vector<8x128xf32> to vector<8x32xf32>
    %650 = math.tanh %649 : vector<8x32xf32>
    %651 = vector.extract_strided_slice %648 {offsets = [0, 0], sizes = [8, 32], strides = [1, 1]} : vector<8x128xf32> to vector<8x32xf32>
    %652 = vector.extract_strided_slice %648 {offsets = [0, 32], sizes = [8, 32], strides = [1, 1]} : vector<8x128xf32> to vector<8x32xf32>
    %653 = vector.extract_strided_slice %648 {offsets = [0, 96], sizes = [8, 32], strides = [1, 1]} : vector<8x128xf32> to vector<8x32xf32>
    %654 = arith.mulf %652, %638 : vector<8x32xf32>
    %655 = arith.mulf %651, %650 : vector<8x32xf32>
    %656 = arith.addf %654, %655 : vector<8x32xf32>
    %657 = math.tanh %656 : vector<8x32xf32>
    %658 = arith.mulf %653, %657 : vector<8x32xf32>
    %c0_483 = arith.constant 0 : index
    %c0_484 = arith.constant 0 : index
    %659 = vector.load %arg5[%c0_483, %c0_484] : memref<32x128xf32, #tpu.memory_space<vmem>>, vector<32x128xf32>
    %cst_485 = arith.constant dense<0.000000e+00> : vector<8x128xf32>
    %660 = tpu.matmul %658, %659, %cst_485 {dimension_numbers = #tpu.dot_dimension_numbers<[1], [0], [0], [1], [0, 0, 1, 1], [], []>} : vector<8x32xf32>, vector<32x128xf32>, vector<8x128xf32> -> vector<8x128xf32>
    %c0_486 = arith.constant 0 : index
    %c0_487 = arith.constant 0 : index
    %661 = vector.load %arg6[%c0_486, %c0_487] : memref<1x128xf32, #tpu.memory_space<vmem>>, vector<1x128xf32>
    %662 = vector.broadcast %661 : vector<1x128xf32> to vector<8x128xf32>
    %663 = arith.addf %660, %662 : vector<8x128xf32>
    %cst_488 = arith.constant dense<0xFF800000> : vector<8xf32>
    %664 = vector.multi_reduction <maximumf>, %663, %cst_488 [1] : vector<8x128xf32> to vector<8xf32>
    %665 = vector.shape_cast %664 : vector<8xf32> to vector<8x1xf32>
    %666 = vector.broadcast %665 : vector<8x1xf32> to vector<8x128xf32>
    %667 = arith.subf %663, %666 : vector<8x128xf32>
    %668 = math.exp %667 : vector<8x128xf32>
    %cst_489 = arith.constant dense<0.000000e+00> : vector<8xf32>
    %669 = vector.multi_reduction <add>, %668, %cst_489 [1] : vector<8x128xf32> to vector<8xf32>
    %670 = vector.shape_cast %669 : vector<8xf32> to vector<8x1xf32>
    %671 = math.log %670 : vector<8x1xf32>
    %672 = arith.addf %671, %665 : vector<8x1xf32>
    %673 = vector.broadcast %672 : vector<8x1xf32> to vector<8x128xf32>
    %674 = arith.subf %663, %673 : vector<8x128xf32>
    %c0_490 = arith.constant 0 : index
    %c0_491 = arith.constant 0 : index
    %675 = vector.load %arg7[%c0_490, %c0_491] : memref<8x128xf32, #tpu.memory_space<vmem>>, vector<8x128xf32>
    tpu.vector_store %arg7[%c0_490, %c0_491], %674 {strides = array<i32>} : memref<8x128xf32, #tpu.memory_space<vmem>>, vector<8x128xf32>,
    return
  }
}

</mosaic_0001>

<llo_original>
// kernel: model_forward_batched.1
$region0: #{model_forward_batched.1}
  #allocation0 [shape = 'u32[]', space=smem, size = 0x4, offset = 0x4, fixed_abs, tag = 'smem constant byte address 0x4 - core index']
  #allocation1 [shape = 'u32[144,128]{1,0:T(1,128)}', space=vmem, size = 0x12000, scoped, tag = 'internal scratch']
  #allocation2 [shape = 'f32[64,128]{1,0:T(8,128)}', space=vmem, size = 0x8000, scoped, tag = 'scratch operand']
  %s0 = inlined_call_operand.vmem [shape: s32[8,8], index: 0, kind: input, shape index: {}]
  %s1 = inlined_call_operand.vmem [shape: s32[8,8], index: 1, kind: input, shape index: {}]
  %s2 = inlined_call_operand.hbm [shape: f32[50,128], index: 2, kind: input, shape index: {}]
  %s3 = inlined_call_operand.vmem [shape: f32[10,128], index: 3, kind: input, shape index: {}]
  %s4 = inlined_call_operand.vmem [shape: f32[32,128], index: 4, kind: input, shape index: {}]
  %s5 = inlined_call_operand.hbm [shape: f32[32,128], index: 5, kind: input, shape index: {}]
  %s6 = inlined_call_operand.vmem [shape: f32[1,128], index: 6, kind: input, shape index: {}]
  %s7 = inlined_call_operand.vmem [shape: f32[8,128], index: 7, kind: output, shape index: {}]
  %s8 = sld [smem:[#allocation0]]
  $region54: #{model_forward_batched.1} parent=0
    _
  %s10 = ssub.s32 1, %s8
  %s11 = scalar_select 0, %s10, %s8
  $region1: #{model_forward_batched.1} parent=0
    #allocation3 [shape = 'u8[4096]{0}', space=smem, size = 0x1000, scoped, tag = 'input window, operand 0, single buffered']
    #allocation4 [shape = 's32[1]{0}', space=sflag, size = 0x4, scoped, tag = 'scoped memory for model_forward_batched.1']
    #allocation5 [shape = 's32[1]{0}', space=sflag, size = 0x4, scoped, tag = 'scoped memory for model_forward_batched.1']
    #allocation6 [shape = 'u8[4096]{0}', space=smem, size = 0x1000, scoped, tag = 'input window, operand 1, single buffered']
    #allocation7 [shape = 's32[1]{0}', space=sflag, size = 0x4, scoped, tag = 'scoped memory for model_forward_batched.1']
    #allocation8 [shape = 'u8[28672]{0}', space=vmem, size = 0x7000, scoped, tag = 'input window, operand 2, single buffered']
    #allocation9 [shape = 'u8[16384]{0}', space=vmem, size = 0x4000, scoped, tag = 'input window, operand 5, single buffered']
    #allocation10 [shape = 's32[1]{0}', space=sflag, size = 0x4, scoped, tag = 'scoped memory for model_forward_batched.1']
    %12 = vsyncpa [#allocation5], 0
    %13 = vsyncpa [#allocation7], 0
    %14 = vsyncpa [#allocation4], 0
    %15 = vsyncpa [#allocation10], 0
    // Predicated region
    $region2: #{model_forward_batched.1} parent=1 // pred_check
      _
    $region3: #{model_forward_batched.1} parent=1 // pred_check_branch
      %17 = sbr.rel (0) target = $region5
    $region4: #{model_forward_batched.1} parent=1 // pred_region
      %s19 = ssub.s32 128, 128
      %20 = vsyncadd [#allocation5], %s19
      %s22 = sshll.u32 %s0, 4
      %s23 = int_to_ptr.vmem [resolvable:$true] %s22
      %25 = dma.vmem_to_smem %s23, 128, [#allocation3], [#allocation5]
    $region5: #{model_forward_batched.1} parent=1 // pred_fallthru
      _
    // Predicated region
    $region6: #{model_forward_batched.1} parent=1 // pred_check
      _
    $region7: #{model_forward_batched.1} parent=1 // pred_check_branch
      %27 = sbr.rel (0) target = $region9
    $region8: #{model_forward_batched.1} parent=1 // pred_region
      %s29 = ssub.s32 128, 128
      %30 = vsyncadd [#allocation7], %s29
      %s32 = sshll.u32 %s1, 4
      %s33 = int_to_ptr.vmem [resolvable:$true] %s32
      %35 = dma.vmem_to_smem %s33, 128, [#allocation6], [#allocation7]
    $region9: #{model_forward_batched.1} parent=1 // pred_fallthru
      _
    // Predicated region
    $region10: #{model_forward_batched.1} parent=1 // pred_check
      _
    $region11: #{model_forward_batched.1} parent=1 // pred_check_branch
      %37 = sbr.rel (0) target = $region13
    $region12: #{model_forward_batched.1} parent=1 // pred_region
      %s39 = ssub.s32 896, 896
      %40 = vsyncadd [#allocation4], %s39
      %s41 = sshll.u32 [#allocation8], 4
      %s42 = int_to_ptr.vmem [resolvable:$true] %s41
      %47 = dma.hbm_to_vmem [thread:$0]  %s2, 896, %s42, [#allocation4], 128, 128, 8
    $region13: #{model_forward_batched.1} parent=1 // pred_fallthru
      _
    // Predicated region
    $region14: #{model_forward_batched.1} parent=1 // pred_check
      _
    $region15: #{model_forward_batched.1} parent=1 // pred_check_branch
      %49 = sbr.rel (0) target = $region17
    $region16: #{model_forward_batched.1} parent=1 // pred_region
      _
    $region17: #{model_forward_batched.1} parent=1 // pred_fallthru
      _
    // Predicated region
    $region18: #{model_forward_batched.1} parent=1 // pred_check
      _
    $region19: #{model_forward_batched.1} parent=1 // pred_check_branch
      %51 = sbr.rel (0) target = $region21
    $region20: #{model_forward_batched.1} parent=1 // pred_region
      _
    $region21: #{model_forward_batched.1} parent=1 // pred_fallthru
      _
    // Predicated region
    $region22: #{model_forward_batched.1} parent=1 // pred_check
      _
    $region23: #{model_forward_batched.1} parent=1 // pred_check_branch
      %53 = sbr.rel (0) target = $region25
    $region24: #{model_forward_batched.1} parent=1 // pred_region
      %s55 = ssub.s32 512, 512
      %56 = vsyncadd [#allocation10], %s55
      %s57 = sshll.u32 [#allocation9], 4
      %s58 = int_to_ptr.vmem [resolvable:$true] %s57
      %63 = dma.hbm_to_vmem [thread:$0]  %s5, 512, %s58, [#allocation10], 128, 128, 8
    $region25: #{model_forward_batched.1} parent=1 // pred_fallthru
      _
    // Predicated region
    $region26: #{model_forward_batched.1} parent=1 // pred_check
      _
    $region27: #{model_forward_batched.1} parent=1 // pred_check_branch
      %65 = sbr.rel (0) target = $region29
    $region28: #{model_forward_batched.1} parent=1 // pred_region
      _
    $region29: #{model_forward_batched.1} parent=1 // pred_fallthru
      _
    // Predicated region
    $region30: #{model_forward_batched.1} parent=1 // pred_check
      _
    $region31: #{model_forward_batched.1} parent=1 // pred_check_branch
      %67 = sbr.rel (0) target = $region33
    $region32: #{model_forward_batched.1} parent=1 // pred_region
      %68 = dma.done [#allocation5], 128
    $region33: #{model_forward_batched.1} parent=1 // pred_fallthru
      _
    // Predicated region
    $region34: #{model_forward_batched.1} parent=1 // pred_check
      _
    $region35: #{model_forward_batched.1} parent=1 // pred_check_branch
      %70 = sbr.rel (0) target = $region37
    $region36: #{model_forward_batched.1} parent=1 // pred_region
      %71 = dma.done [#allocation7], 128
    $region37: #{model_forward_batched.1} parent=1 // pred_fallthru
      _
    // Predicated region
    $region38: #{model_forward_batched.1} parent=1 // pred_check
      _
    $region39: #{model_forward_batched.1} parent=1 // pred_check_branch
      %73 = sbr.rel (0) target = $region41
    $region40: #{model_forward_batched.1} parent=1 // pred_region
      %74 = dma.done [#allocation4], 896
    $region41: #{model_forward_batched.1} parent=1 // pred_fallthru
      _
    // Predicated region
    $region42: #{model_forward_batched.1} parent=1 // pred_check
      _
    $region43: #{model_forward_batched.1} parent=1 // pred_check_branch
      %76 = sbr.rel (0) target = $region45
    $region44: #{model_forward_batched.1} parent=1 // pred_region
      %77 = dma.done [#allocation10], 512
    $region45: #{model_forward_batched.1} parent=1 // pred_fallthru
      _
    %78 = sfence
    %s79 = sld [smem:[#allocation3]]
    %s80 = sld [smem:[#allocation6]]
    %s81 = scalar_lea.vmem [#allocation8], %s79
    %v82 = vld [vmem:[%s81] sm:$0x1]
    %s83 = scalar_lea.vmem %s3, %s80
    %v84 = vld [vmem:[%s83] sm:$0x1]
    %v85 = vadd.f32 %v82, %v84
    %86 = vst [vmem:[#allocation2] sm:$0x1] %v85
    %s87 = sld [smem:[#allocation3 + $0x80]]
    %s88 = sld [smem:[#allocation6 + $0x80]]
    %s89 = scalar_lea.vmem [#allocation8], %s87
    %v90 = vld [vmem:[%s89] sm:$0x1]
    %s91 = scalar_lea.vmem %s3, %s88
    %v92 = vld [vmem:[%s91] sm:$0x1]
    %v93 = vadd.f32 %v90, %v92
    %94 = vst [vmem:[#allocation2 + $0x1] sm:$0x1] %v93
    %s95 = sld [smem:[#allocation3 + $0x100]]
    %s96 = sld [smem:[#allocation6 + $0x100]]
    %s97 = scalar_lea.vmem [#allocation8], %s95
    %v98 = vld [vmem:[%s97] sm:$0x1]
    %s99 = scalar_lea.vmem %s3, %s96
    %v100 = vld [vmem:[%s99] sm:$0x1]
    %v101 = vadd.f32 %v98, %v100
    %102 = vst [vmem:[#allocation2 + $0x2] sm:$0x1] %v101
    %s103 = sld [smem:[#allocation3 + $0x180]]
    %s104 = sld [smem:[#allocation6 + $0x180]]
    %s105 = scalar_lea.vmem [#allocation8], %s103
    %v106 = vld [vmem:[%s105] sm:$0x1]
    %s107 = scalar_lea.vmem %s3, %s104
    %v108 = vld [vmem:[%s107] sm:$0x1]
    %v109 = vadd.f32 %v106, %v108
    %110 = vst [vmem:[#allocation2 + $0x3] sm:$0x1] %v109
    %s111 = sld [smem:[#allocation3 + $0x200]]
    %s112 = sld [smem:[#allocation6 + $0x200]]
    %s113 = scalar_lea.vmem [#allocation8], %s111
    %v114 = vld [vmem:[%s113] sm:$0x1]
    %s115 = scalar_lea.vmem %s3, %s112
    %v116 = vld [vmem:[%s115] sm:$0x1]
    %v117 = vadd.f32 %v114, %v116
    %118 = vst [vmem:[#allocation2 + $0x4] sm:$0x1] %v117
    %s119 = sld [smem:[#allocation3 + $0x280]]
    %s120 = sld [smem:[#allocation6 + $0x280]]
    %s121 = scalar_lea.vmem [#allocation8], %s119
    %v122 = vld [vmem:[%s121] sm:$0x1]
    %s123 = scalar_lea.vmem %s3, %s120
    %v124 = vld [vmem:[%s123] sm:$0x1]
    %v125 = vadd.f32 %v122, %v124
    %126 = vst [vmem:[#allocation2 + $0x5] sm:$0x1] %v125
    %s127 = sld [smem:[#allocation3 + $0x300]]
    %s128 = sld [smem:[#allocation6 + $0x300]]
    %s129 = scalar_lea.vmem [#allocation8], %s127
    %v130 = vld [vmem:[%s129] sm:$0x1]
    %s131 = scalar_lea.vmem %s3, %s128
    %v132 = vld [vmem:[%s131] sm:$0x1]
    %v133 = vadd.f32 %v130, %v132
    %134 = vst [vmem:[#allocation2 + $0x6] sm:$0x1] %v133
    %s135 = sld [smem:[#allocation3 + $0x380]]
    %s136 = sld [smem:[#allocation6 + $0x380]]
    %s137 = scalar_lea.vmem [#allocation8], %s135
    %v138 = vld [vmem:[%s137] sm:$0x1]
    %s139 = scalar_lea.vmem %s3, %s136
    %v140 = vld [vmem:[%s139] sm:$0x1]
    %v141 = vadd.f32 %v138, %v140
    %142 = vst [vmem:[#allocation2 + $0x7] sm:$0x1] %v141
    %s143 = sld [smem:[#allocation3 + $0x1]]
    %s144 = sld [smem:[#allocation6 + $0x1]]
    %s145 = scalar_lea.vmem [#allocation8], %s143
    %v146 = vld [vmem:[%s145] sm:$0x1]
    %s147 = scalar_lea.vmem %s3, %s144
    %v148 = vld [vmem:[%s147] sm:$0x1]
    %v149 = vadd.f32 %v146, %v148
    %150 = vst [vmem:[#allocation2 + $0x8] sm:$0x1] %v149
    %s151 = sld [smem:[#allocation3 + $0x81]]
    %s152 = sld [smem:[#allocation6 + $0x81]]
    %s153 = scalar_lea.vmem [#allocation8], %s151
    %v154 = vld [vmem:[%s153] sm:$0x1]
    %s155 = scalar_lea.vmem %s3, %s152
    %v156 = vld [vmem:[%s155] sm:$0x1]
    %v157 = vadd.f32 %v154, %v156
    %158 = vst [vmem:[#allocation2 + $0x9] sm:$0x1] %v157
    %s159 = sld [smem:[#allocation3 + $0x101]]
    %s160 = sld [smem:[#allocation6 + $0x101]]
    %s161 = scalar_lea.vmem [#allocation8], %s159
    %v162 = vld [vmem:[%s161] sm:$0x1]
    %s163 = scalar_lea.vmem %s3, %s160
    %v164 = vld [vmem:[%s163] sm:$0x1]
    %v165 = vadd.f32 %v162, %v164
    %166 = vst [vmem:[#allocation2 + $0xa] sm:$0x1] %v165
    %s167 = sld [smem:[#allocation3 + $0x181]]
    %s168 = sld [smem:[#allocation6 + $0x181]]
    %s169 = scalar_lea.vmem [#allocation8], %s167
    %v170 = vld [vmem:[%s169] sm:$0x1]
    %s171 = scalar_lea.vmem %s3, %s168
    %v172 = vld [vmem:[%s171] sm:$0x1]
    %v173 = vadd.f32 %v170, %v172
    %174 = vst [vmem:[#allocation2 + $0xb] sm:$0x1] %v173
    %s175 = sld [smem:[#allocation3 + $0x201]]
    %s176 = sld [smem:[#allocation6 + $0x201]]
    %s177 = scalar_lea.vmem [#allocation8], %s175
    %v178 = vld [vmem:[%s177] sm:$0x1]
    %s179 = scalar_lea.vmem %s3, %s176
    %v180 = vld [vmem:[%s179] sm:$0x1]
    %v181 = vadd.f32 %v178, %v180
    %182 = vst [vmem:[#allocation2 + $0xc] sm:$0x1] %v181
    %s183 = sld [smem:[#allocation3 + $0x281]]
    %s184 = sld [smem:[#allocation6 + $0x281]]
    %s185 = scalar_lea.vmem [#allocation8], %s183
    %v186 = vld [vmem:[%s185] sm:$0x1]
    %s187 = scalar_lea.vmem %s3, %s184
    %v188 = vld [vmem:[%s187] sm:$0x1]
    %v189 = vadd.f32 %v186, %v188
    %190 = vst [vmem:[#allocation2 + $0xd] sm:$0x1] %v189
    %s191 = sld [smem:[#allocation3 + $0x301]]
    %s192 = sld [smem:[#allocation6 + $0x301]]
    %s193 = scalar_lea.vmem [#allocation8], %s191
    %v194 = vld [vmem:[%s193] sm:$0x1]
    %s195 = scalar_lea.vmem %s3, %s192
    %v196 = vld [vmem:[%s195] sm:$0x1]
    %v197 = vadd.f32 %v194, %v196
    %198 = vst [vmem:[#allocation2 + $0xe] sm:$0x1] %v197
    %s199 = sld [smem:[#allocation3 + $0x381]]
    %s200 = sld [smem:[#allocation6 + $0x381]]
    %s201 = scalar_lea.vmem [#allocation8], %s199
    %v202 = vld [vmem:[%s201] sm:$0x1]
    %s203 = scalar_lea.vmem %s3, %s200
    %v204 = vld [vmem:[%s203] sm:$0x1]
    %v205 = vadd.f32 %v202, %v204
    %206 = vst [vmem:[#allocation2 + $0xf] sm:$0x1] %v205
    %s207 = sld [smem:[#allocation3 + $0x2]]
    %s208 = sld [smem:[#allocation6 + $0x2]]
    %s209 = scalar_lea.vmem [#allocation8], %s207
    %v210 = vld [vmem:[%s209] sm:$0x1]
    %s211 = scalar_lea.vmem %s3, %s208
    %v212 = vld [vmem:[%s211] sm:$0x1]
    %v213 = vadd.f32 %v210, %v212
    %214 = vst [vmem:[#allocation2 + $0x10] sm:$0x1] %v213
    %s215 = sld [smem:[#allocation3 + $0x82]]
    %s216 = sld [smem:[#allocation6 + $0x82]]
    %s217 = scalar_lea.vmem [#allocation8], %s215
    %v218 = vld [vmem:[%s217] sm:$0x1]
    %s219 = scalar_lea.vmem %s3, %s216
    %v220 = vld [vmem:[%s219] sm:$0x1]
    %v221 = vadd.f32 %v218, %v220
    %222 = vst [vmem:[#allocation2 + $0x11] sm:$0x1] %v221
    %s223 = sld [smem:[#allocation3 + $0x102]]
    %s224 = sld [smem:[#allocation6 + $0x102]]
    %s225 = scalar_lea.vmem [#allocation8], %s223
    %v226 = vld [vmem:[%s225] sm:$0x1]
    %s227 = scalar_lea.vmem %s3, %s224
    %v228 = vld [vmem:[%s227] sm:$0x1]
    %v229 = vadd.f32 %v226, %v228
    %230 = vst [vmem:[#allocation2 + $0x12] sm:$0x1] %v229
    %s231 = sld [smem:[#allocation3 + $0x182]]
    %s232 = sld [smem:[#allocation6 + $0x182]]
    %s233 = scalar_lea.vmem [#allocation8], %s231
    %v234 = vld [vmem:[%s233] sm:$0x1]
    %s235 = scalar_lea.vmem %s3, %s232
    %v236 = vld [vmem:[%s235] sm:$0x1]
    %v237 = vadd.f32 %v234, %v236
    %238 = vst [vmem:[#allocation2 + $0x13] sm:$0x1] %v237
    %s239 = sld [smem:[#allocation3 + $0x202]]
    %s240 = sld [smem:[#allocation6 + $0x202]]
    %s241 = scalar_lea.vmem [#allocation8], %s239
    %v242 = vld [vmem:[%s241] sm:$0x1]
    %s243 = scalar_lea.vmem %s3, %s240
    %v244 = vld [vmem:[%s243] sm:$0x1]
    %v245 = vadd.f32 %v242, %v244
    %246 = vst [vmem:[#allocation2 + $0x14] sm:$0x1] %v245
    %s247 = sld [smem:[#allocation3 + $0x282]]
    %s248 = sld [smem:[#allocation6 + $0x282]]
    %s249 = scalar_lea.vmem [#allocation8], %s247
    %v250 = vld [vmem:[%s249] sm:$0x1]
    %s251 = scalar_lea.vmem %s3, %s248
    %v252 = vld [vmem:[%s251] sm:$0x1]
    %v253 = vadd.f32 %v250, %v252
    %254 = vst [vmem:[#allocation2 + $0x15] sm:$0x1] %v253
    %s255 = sld [smem:[#allocation3 + $0x302]]
    %s256 = sld [smem:[#allocation6 + $0x302]]
    %s257 = scalar_lea.vmem [#allocation8], %s255
    %v258 = vld [vmem:[%s257] sm:$0x1]
    %s259 = scalar_lea.vmem %s3, %s256
    %v260 = vld [vmem:[%s259] sm:$0x1]
    %v261 = vadd.f32 %v258, %v260
    %262 = vst [vmem:[#allocation2 + $0x16] sm:$0x1] %v261
    %s263 = sld [smem:[#allocation3 + $0x382]]
    %s264 = sld [smem:[#allocation6 + $0x382]]
    %s265 = scalar_lea.vmem [#allocation8], %s263
    %v266 = vld [vmem:[%s265] sm:$0x1]
    %s267 = scalar_lea.vmem %s3, %s264
    %v268 = vld [vmem:[%s267] sm:$0x1]
    %v269 = vadd.f32 %v266, %v268
    %270 = vst [vmem:[#allocation2 + $0x17] sm:$0x1] %v269
    %s271 = sld [smem:[#allocation3 + $0x3]]
    %s272 = sld [smem:[#allocation6 + $0x3]]
    %s273 = scalar_lea.vmem [#allocation8], %s271
    %v274 = vld [vmem:[%s273] sm:$0x1]
    %s275 = scalar_lea.vmem %s3, %s272
    %v276 = vld [vmem:[%s275] sm:$0x1]
    %v277 = vadd.f32 %v274, %v276
    %278 = vst [vmem:[#allocation2 + $0x18] sm:$0x1] %v277
    %s279 = sld [smem:[#allocation3 + $0x83]]
    %s280 = sld [smem:[#allocation6 + $0x83]]
    %s281 = scalar_lea.vmem [#allocation8], %s279
    %v282 = vld [vmem:[%s281] sm:$0x1]
    %s283 = scalar_lea.vmem %s3, %s280
    %v284 = vld [vmem:[%s283] sm:$0x1]
    %v285 = vadd.f32 %v282, %v284
    %286 = vst [vmem:[#allocation2 + $0x19] sm:$0x1] %v285
    %s287 = sld [smem:[#allocation3 + $0x103]]
    %s288 = sld [smem:[#allocation6 + $0x103]]
    %s289 = scalar_lea.vmem [#allocation8], %s287
    %v290 = vld [vmem:[%s289] sm:$0x1]
    %s291 = scalar_lea.vmem %s3, %s288
    %v292 = vld [vmem:[%s291] sm:$0x1]
    %v293 = vadd.f32 %v290, %v292
    %294 = vst [vmem:[#allocation2 + $0x1a] sm:$0x1] %v293
    %s295 = sld [smem:[#allocation3 + $0x183]]
    %s296 = sld [smem:[#allocation6 + $0x183]]
    %s297 = scalar_lea.vmem [#allocation8], %s295
    %v298 = vld [vmem:[%s297] sm:$0x1]
    %s299 = scalar_lea.vmem %s3, %s296
    %v300 = vld [vmem:[%s299] sm:$0x1]
    %v301 = vadd.f32 %v298, %v300
    %302 = vst [vmem:[#allocation2 + $0x1b] sm:$0x1] %v301
    %s303 = sld [smem:[#allocation3 + $0x203]]
    %s304 = sld [smem:[#allocation6 + $0x203]]
    %s305 = scalar_lea.vmem [#allocation8], %s303
    %v306 = vld [vmem:[%s305] sm:$0x1]
    %s307 = scalar_lea.vmem %s3, %s304
    %v308 = vld [vmem:[%s307] sm:$0x1]
    %v309 = vadd.f32 %v306, %v308
    %310 = vst [vmem:[#allocation2 + $0x1c] sm:$0x1] %v309
    %s311 = sld [smem:[#allocation3 + $0x283]]
    %s312 = sld [smem:[#allocation6 + $0x283]]
    %s313 = scalar_lea.vmem [#allocation8], %s311
    %v314 = vld [vmem:[%s313] sm:$0x1]
    %s315 = scalar_lea.vmem %s3, %s312
    %v316 = vld [vmem:[%s315] sm:$0x1]
    %v317 = vadd.f32 %v314, %v316
    %318 = vst [vmem:[#allocation2 + $0x1d] sm:$0x1] %v317
    %s319 = sld [smem:[#allocation3 + $0x303]]
    %s320 = sld [smem:[#allocation6 + $0x303]]
    %s321 = scalar_lea.vmem [#allocation8], %s319
    %v322 = vld [vmem:[%s321] sm:$0x1]
    %s323 = scalar_lea.vmem %s3, %s320
    %v324 = vld [vmem:[%s323] sm:$0x1]
    %v325 = vadd.f32 %v322, %v324
    %326 = vst [vmem:[#allocation2 + $0x1e] sm:$0x1] %v325
    %s327 = sld [smem:[#allocation3 + $0x383]]
    %s328 = sld [smem:[#allocation6 + $0x383]]
    %s329 = scalar_lea.vmem [#allocation8], %s327
    %v330 = vld [vmem:[%s329] sm:$0x1]
    %s331 = scalar_lea.vmem %s3, %s328
    %v332 = vld [vmem:[%s331] sm:$0x1]
    %v333 = vadd.f32 %v330, %v332
    %334 = vst [vmem:[#allocation2 + $0x1f] sm:$0x1] %v333
    %s335 = sld [smem:[#allocation3 + $0x4]]
    %s336 = sld [smem:[#allocation6 + $0x4]]
    %s337 = scalar_lea.vmem [#allocation8], %s335
    %v338 = vld [vmem:[%s337] sm:$0x1]
    %s339 = scalar_lea.vmem %s3, %s336
    %v340 = vld [vmem:[%s339] sm:$0x1]
    %v341 = vadd.f32 %v338, %v340
    %342 = vst [vmem:[#allocation2 + $0x20] sm:$0x1] %v341
    %s343 = sld [smem:[#allocation3 + $0x84]]
    %s344 = sld [smem:[#allocation6 + $0x84]]
    %s345 = scalar_lea.vmem [#allocation8], %s343
    %v346 = vld [vmem:[%s345] sm:$0x1]
    %s347 = scalar_lea.vmem %s3, %s344
    %v348 = vld [vmem:[%s347] sm:$0x1]
    %v349 = vadd.f32 %v346, %v348
    %350 = vst [vmem:[#allocation2 + $0x21] sm:$0x1] %v349
    %s351 = sld [smem:[#allocation3 + $0x104]]
    %s352 = sld [smem:[#allocation6 + $0x104]]
    %s353 = scalar_lea.vmem [#allocation8], %s351
    %v354 = vld [vmem:[%s353] sm:$0x1]
    %s355 = scalar_lea.vmem %s3, %s352
    %v356 = vld [vmem:[%s355] sm:$0x1]
    %v357 = vadd.f32 %v354, %v356
    %358 = vst [vmem:[#allocation2 + $0x22] sm:$0x1] %v357
    %s359 = sld [smem:[#allocation3 + $0x184]]
    %s360 = sld [smem:[#allocation6 + $0x184]]
    %s361 = scalar_lea.vmem [#allocation8], %s359
    %v362 = vld [vmem:[%s361] sm:$0x1]
    %s363 = scalar_lea.vmem %s3, %s360
    %v364 = vld [vmem:[%s363] sm:$0x1]
    %v365 = vadd.f32 %v362, %v364
    %366 = vst [vmem:[#allocation2 + $0x23] sm:$0x1] %v365
    %s367 = sld [smem:[#allocation3 + $0x204]]
    %s368 = sld [smem:[#allocation6 + $0x204]]
    %s369 = scalar_lea.vmem [#allocation8], %s367
    %v370 = vld [vmem:[%s369] sm:$0x1]
    %s371 = scalar_lea.vmem %s3, %s368
    %v372 = vld [vmem:[%s371] sm:$0x1]
    %v373 = vadd.f32 %v370, %v372
    %374 = vst [vmem:[#allocation2 + $0x24] sm:$0x1] %v373
    %s375 = sld [smem:[#allocation3 + $0x284]]
    %s376 = sld [smem:[#allocation6 + $0x284]]
    %s377 = scalar_lea.vmem [#allocation8], %s375
    %v378 = vld [vmem:[%s377] sm:$0x1]
    %s379 = scalar_lea.vmem %s3, %s376
    %v380 = vld [vmem:[%s379] sm:$0x1]
    %v381 = vadd.f32 %v378, %v380
    %382 = vst [vmem:[#allocation2 + $0x25] sm:$0x1] %v381
    %s383 = sld [smem:[#allocation3 + $0x304]]
    %s384 = sld [smem:[#allocation6 + $0x304]]
    %s385 = scalar_lea.vmem [#allocation8], %s383
    %v386 = vld [vmem:[%s385] sm:$0x1]
    %s387 = scalar_lea.vmem %s3, %s384
    %v388 = vld [vmem:[%s387] sm:$0x1]
    %v389 = vadd.f32 %v386, %v388
    %390 = vst [vmem:[#allocation2 + $0x26] sm:$0x1] %v389
    %s391 = sld [smem:[#allocation3 + $0x384]]
    %s392 = sld [smem:[#allocation6 + $0x384]]
    %s393 = scalar_lea.vmem [#allocation8], %s391
    %v394 = vld [vmem:[%s393] sm:$0x1]
    %s395 = scalar_lea.vmem %s3, %s392
    %v396 = vld [vmem:[%s395] sm:$0x1]
    %v397 = vadd.f32 %v394, %v396
    %398 = vst [vmem:[#allocation2 + $0x27] sm:$0x1] %v397
    %s399 = sld [smem:[#allocation3 + $0x5]]
    %s400 = sld [smem:[#allocation6 + $0x5]]
    %s401 = scalar_lea.vmem [#allocation8], %s399
    %v402 = vld [vmem:[%s401] sm:$0x1]
    %s403 = scalar_lea.vmem %s3, %s400
    %v404 = vld [vmem:[%s403] sm:$0x1]
    %v405 = vadd.f32 %v402, %v404
    %406 = vst [vmem:[#allocation2 + $0x28] sm:$0x1] %v405
    %s407 = sld [smem:[#allocation3 + $0x85]]
    %s408 = sld [smem:[#allocation6 + $0x85]]
    %s409 = scalar_lea.vmem [#allocation8], %s407
    %v410 = vld [vmem:[%s409] sm:$0x1]
    %s411 = scalar_lea.vmem %s3, %s408
    %v412 = vld [vmem:[%s411] sm:$0x1]
    %v413 = vadd.f32 %v410, %v412
    %414 = vst [vmem:[#allocation2 + $0x29] sm:$0x1] %v413
    %s415 = sld [smem:[#allocation3 + $0x105]]
    %s416 = sld [smem:[#allocation6 + $0x105]]
    %s417 = scalar_lea.vmem [#allocation8], %s415
    %v418 = vld [vmem:[%s417] sm:$0x1]
    %s419 = scalar_lea.vmem %s3, %s416
    %v420 = vld [vmem:[%s419] sm:$0x1]
    %v421 = vadd.f32 %v418, %v420
    %422 = vst [vmem:[#allocation2 + $0x2a] sm:$0x1] %v421
    %s423 = sld [smem:[#allocation3 + $0x185]]
    %s424 = sld [smem:[#allocation6 + $0x185]]
    %s425 = scalar_lea.vmem [#allocation8], %s423
    %v426 = vld [vmem:[%s425] sm:$0x1]
    %s427 = scalar_lea.vmem %s3, %s424
    %v428 = vld [vmem:[%s427] sm:$0x1]
    %v429 = vadd.f32 %v426, %v428
    %430 = vst [vmem:[#allocation2 + $0x2b] sm:$0x1] %v429
    %s431 = sld [smem:[#allocation3 + $0x205]]
    %s432 = sld [smem:[#allocation6 + $0x205]]
    %s433 = scalar_lea.vmem [#allocation8], %s431
    %v434 = vld [vmem:[%s433] sm:$0x1]
    %s435 = scalar_lea.vmem %s3, %s432
    %v436 = vld [vmem:[%s435] sm:$0x1]
    %v437 = vadd.f32 %v434, %v436
    %438 = vst [vmem:[#allocation2 + $0x2c] sm:$0x1] %v437
    %s439 = sld [smem:[#allocation3 + $0x285]]
    %s440 = sld [smem:[#allocation6 + $0x285]]
    %s441 = scalar_lea.vmem [#allocation8], %s439
    %v442 = vld [vmem:[%s441] sm:$0x1]
    %s443 = scalar_lea.vmem %s3, %s440
    %v444 = vld [vmem:[%s443] sm:$0x1]
    %v445 = vadd.f32 %v442, %v444
    %446 = vst [vmem:[#allocation2 + $0x2d] sm:$0x1] %v445
    %s447 = sld [smem:[#allocation3 + $0x305]]
    %s448 = sld [smem:[#allocation6 + $0x305]]
    %s449 = scalar_lea.vmem [#allocation8], %s447
    %v450 = vld [vmem:[%s449] sm:$0x1]
    %s451 = scalar_lea.vmem %s3, %s448
    %v452 = vld [vmem:[%s451] sm:$0x1]
    %v453 = vadd.f32 %v450, %v452
    %454 = vst [vmem:[#allocation2 + $0x2e] sm:$0x1] %v453
    %s455 = sld [smem:[#allocation3 + $0x385]]
    %s456 = sld [smem:[#allocation6 + $0x385]]
    %s457 = scalar_lea.vmem [#allocation8], %s455
    %v458 = vld [vmem:[%s457] sm:$0x1]
    %s459 = scalar_lea.vmem %s3, %s456
    %v460 = vld [vmem:[%s459] sm:$0x1]
    %v461 = vadd.f32 %v458, %v460
    %462 = vst [vmem:[#allocation2 + $0x2f] sm:$0x1] %v461
    %s463 = sld [smem:[#allocation3 + $0x6]]
    %s464 = sld [smem:[#allocation6 + $0x6]]
    %s465 = scalar_lea.vmem [#allocation8], %s463
    %v466 = vld [vmem:[%s465] sm:$0x1]
    %s467 = scalar_lea.vmem %s3, %s464
    %v468 = vld [vmem:[%s467] sm:$0x1]
    %v469 = vadd.f32 %v466, %v468
    %470 = vst [vmem:[#allocation2 + $0x30] sm:$0x1] %v469
    %s471 = sld [smem:[#allocation3 + $0x86]]
    %s472 = sld [smem:[#allocation6 + $0x86]]
    %s473 = scalar_lea.vmem [#allocation8], %s471
    %v474 = vld [vmem:[%s473] sm:$0x1]
    %s475 = scalar_lea.vmem %s3, %s472
    %v476 = vld [vmem:[%s475] sm:$0x1]
    %v477 = vadd.f32 %v474, %v476
    %478 = vst [vmem:[#allocation2 + $0x31] sm:$0x1] %v477
    %s479 = sld [smem:[#allocation3 + $0x106]]
    %s480 = sld [smem:[#allocation6 + $0x106]]
    %s481 = scalar_lea.vmem [#allocation8], %s479
    %v482 = vld [vmem:[%s481] sm:$0x1]
    %s483 = scalar_lea.vmem %s3, %s480
    %v484 = vld [vmem:[%s483] sm:$0x1]
    %v485 = vadd.f32 %v482, %v484
    %486 = vst [vmem:[#allocation2 + $0x32] sm:$0x1] %v485
    %s487 = sld [smem:[#allocation3 + $0x186]]
    %s488 = sld [smem:[#allocation6 + $0x186]]
    %s489 = scalar_lea.vmem [#allocation8], %s487
    %v490 = vld [vmem:[%s489] sm:$0x1]
    %s491 = scalar_lea.vmem %s3, %s488
    %v492 = vld [vmem:[%s491] sm:$0x1]
    %v493 = vadd.f32 %v490, %v492
    %494 = vst [vmem:[#allocation2 + $0x33] sm:$0x1] %v493
    %s495 = sld [smem:[#allocation3 + $0x206]]
    %s496 = sld [smem:[#allocation6 + $0x206]]
    %s497 = scalar_lea.vmem [#allocation8], %s495
    %v498 = vld [vmem:[%s497] sm:$0x1]
    %s499 = scalar_lea.vmem %s3, %s496
    %v500 = vld [vmem:[%s499] sm:$0x1]
    %v501 = vadd.f32 %v498, %v500
    %502 = vst [vmem:[#allocation2 + $0x34] sm:$0x1] %v501
    %s503 = sld [smem:[#allocation3 + $0x286]]
    %s504 = sld [smem:[#allocation6 + $0x286]]
    %s505 = scalar_lea.vmem [#allocation8], %s503
    %v506 = vld [vmem:[%s505] sm:$0x1]
    %s507 = scalar_lea.vmem %s3, %s504
    %v508 = vld [vmem:[%s507] sm:$0x1]
    %v509 = vadd.f32 %v506, %v508
    %510 = vst [vmem:[#allocation2 + $0x35] sm:$0x1] %v509
    %s511 = sld [smem:[#allocation3 + $0x306]]
    %s512 = sld [smem:[#allocation6 + $0x306]]
    %s513 = scalar_lea.vmem [#allocation8], %s511
    %v514 = vld [vmem:[%s513] sm:$0x1]
    %s515 = scalar_lea.vmem %s3, %s512
    %v516 = vld [vmem:[%s515] sm:$0x1]
    %v517 = vadd.f32 %v514, %v516
    %518 = vst [vmem:[#allocation2 + $0x36] sm:$0x1] %v517
    %s519 = sld [smem:[#allocation3 + $0x386]]
    %s520 = sld [smem:[#allocation6 + $0x386]]
    %s521 = scalar_lea.vmem [#allocation8], %s519
    %v522 = vld [vmem:[%s521] sm:$0x1]
    %s523 = scalar_lea.vmem %s3, %s520
    %v524 = vld [vmem:[%s523] sm:$0x1]
    %v525 = vadd.f32 %v522, %v524
    %526 = vst [vmem:[#allocation2 + $0x37] sm:$0x1] %v525
    %s527 = sld [smem:[#allocation3 + $0x7]]
    %s528 = sld [smem:[#allocation6 + $0x7]]
    %s529 = scalar_lea.vmem [#allocation8], %s527
    %v530 = vld [vmem:[%s529] sm:$0x1]
    %s531 = scalar_lea.vmem %s3, %s528
    %v532 = vld [vmem:[%s531] sm:$0x1]
    %v533 = vadd.f32 %v530, %v532
    %534 = vst [vmem:[#allocation2 + $0x38] sm:$0x1] %v533
    %s535 = sld [smem:[#allocation3 + $0x87]]
    %s536 = sld [smem:[#allocation6 + $0x87]]
    %s537 = scalar_lea.vmem [#allocation8], %s535
    %v538 = vld [vmem:[%s537] sm:$0x1]
    %s539 = scalar_lea.vmem %s3, %s536
    %v540 = vld [vmem:[%s539] sm:$0x1]
    %v541 = vadd.f32 %v538, %v540
    %542 = vst [vmem:[#allocation2 + $0x39] sm:$0x1] %v541
    %s543 = sld [smem:[#allocation3 + $0x107]]
    %s544 = sld [smem:[#allocation6 + $0x107]]
    %s545 = scalar_lea.vmem [#allocation8], %s543
    %v546 = vld [vmem:[%s545] sm:$0x1]
    %s547 = scalar_lea.vmem %s3, %s544
    %v548 = vld [vmem:[%s547] sm:$0x1]
    %v549 = vadd.f32 %v546, %v548
    %550 = vst [vmem:[#allocation2 + $0x3a] sm:$0x1] %v549
    %s551 = sld [smem:[#allocation3 + $0x187]]
    %s552 = sld [smem:[#allocation6 + $0x187]]
    %s553 = scalar_lea.vmem [#allocation8], %s551
    %v554 = vld [vmem:[%s553] sm:$0x1]
    %s555 = scalar_lea.vmem %s3, %s552
    %v556 = vld [vmem:[%s555] sm:$0x1]
    %v557 = vadd.f32 %v554, %v556
    %558 = vst [vmem:[#allocation2 + $0x3b] sm:$0x1] %v557
    %s559 = sld [smem:[#allocation3 + $0x207]]
    %s560 = sld [smem:[#allocation6 + $0x207]]
    %s561 = scalar_lea.vmem [#allocation8], %s559
    %v562 = vld [vmem:[%s561] sm:$0x1]
    %s563 = scalar_lea.vmem %s3, %s560
    %v564 = vld [vmem:[%s563] sm:$0x1]
    %v565 = vadd.f32 %v562, %v564
    %566 = vst [vmem:[#allocation2 + $0x3c] sm:$0x1] %v565
    %s567 = sld [smem:[#allocation3 + $0x287]]
    %s568 = sld [smem:[#allocation6 + $0x287]]
    %s569 = scalar_lea.vmem [#allocation8], %s567
    %v570 = vld [vmem:[%s569] sm:$0x1]
    %s571 = scalar_lea.vmem %s3, %s568
    %v572 = vld [vmem:[%s571] sm:$0x1]
    %v573 = vadd.f32 %v570, %v572
    %574 = vst [vmem:[#allocation2 + $0x3d] sm:$0x1] %v573
    %s575 = sld [smem:[#allocation3 + $0x307]]
    %s576 = sld [smem:[#allocation6 + $0x307]]
    %s577 = scalar_lea.vmem [#allocation8], %s575
    %v578 = vld [vmem:[%s577] sm:$0x1]
    %s579 = scalar_lea.vmem %s3, %s576
    %v580 = vld [vmem:[%s579] sm:$0x1]
    %v581 = vadd.f32 %v578, %v580
    %582 = vst [vmem:[#allocation2 + $0x3e] sm:$0x1] %v581
    %s583 = sld [smem:[#allocation3 + $0x387]]
    %s584 = sld [smem:[#allocation6 + $0x387]]
    %s585 = scalar_lea.vmem [#allocation8], %s583
    %v586 = vld [vmem:[%s585] sm:$0x1]
    %s587 = scalar_lea.vmem %s3, %s584
    %v588 = vld [vmem:[%s587] sm:$0x1]
    %v589 = vadd.f32 %v586, %v588
    %590 = vst [vmem:[#allocation2 + $0x3f] sm:$0x1] %v589
    %v591 = vld [vmem:[%s4] sm:$0xff]
    %v592 = vld [vmem:[%s4 + $0x8] sm:$0xff]
    %v593 = vld [vmem:[%s4 + $0x10] sm:$0xff]
    %v594 = vld [vmem:[%s4 + $0x18] sm:$0xff]
    %v595 = vld [vmem:[#allocation2] sm:$0xff]
    %vm596 = vcmask 261120
    %v598 = vsel %vm596, 0.0, 0
    %600 = vmatprep.subr.mxu0 0.0
    %601 = vmatpush1.msra.mxu0 %v591
    %602 = vmatprep.subr.mxu0 0.0
    %603 = vmatpush1.msra.mxu0 %v592
    %604 = vmatprep.subr.mxu0 0.0
    %605 = vmatpush1.msra.mxu0 %v593
    %606 = vmatprep.subr.mxu0 0.0
    %607 = vmatpush1.msra.mxu0 %v594
    %608 = vmatprep.subr.mxu0 0.0
    %609 = vmatpush1.msra.mxu0 0.0
    %610 = vmatprep.subr.mxu0 0.0
    %611 = vmatpush1.msra.mxu0 0.0
    %612 = vmatprep.subr.mxu0 0.0
    %613 = vmatpush1.msra.mxu0 0.0
    %614 = vmatprep.subr.mxu0 0.0
    %615 = vmatpush1.msra.mxu0 0.0
    %616 = vmatprep.subr.mxu0 0.0
    %617 = vmatpush1.msra.mxu0 0.0
    %618 = vmatprep.subr.mxu0 0.0
    %619 = vmatpush1.msra.mxu0 0.0
    %620 = vmatprep.subr.mxu0 0.0
    %621 = vmatpush1.msra.mxu0 0.0
    %622 = vmatprep.subr.mxu0 0.0
    %623 = vmatpush1.msra.mxu0 0.0
    %624 = vmatprep.subr.mxu0 0.0
    %625 = vmatpush1.msra.mxu0 0.0
    %626 = vmatprep.subr.mxu0 0.0
    %627 = vmatpush1.msra.mxu0 0.0
    %628 = vmatprep.subr.mxu0 0.0
    %629 = vmatpush1.msra.mxu0 0.0
    %630 = vmatprep.subr.mxu0 0.0
    %631 = vmatpush1.msra.mxu0 0.0
    %632 = vmatprep.subr.mxu0 0.0
    %633 = vmatpush1.msra.mxu0 0.0
    %634 = vmatprep.subr.mxu0 0.0
    %635 = vmatpush1.msra.mxu0 0.0
    %636 = vmatprep.subr.mxu0 0.0
    %637 = vmatpush1.msra.mxu0 0.0
    %638 = vmatprep.subr.mxu0 0.0
    %639 = vmatpush1.msra.mxu0 0.0
    %640 = vmatprep.subr.mxu0 0.0
    %641 = vmatpush1.msra.mxu0 0.0
    %642 = vmatprep.subr.mxu0 0.0
    %643 = vmatpush1.msra.mxu0 0.0
    %644 = vmatprep.subr.mxu0 0.0
    %645 = vmatpush1.msra.mxu0 0.0
    %646 = vmatprep.subr.mxu0 0.0
    %647 = vmatpush1.msra.mxu0 0.0
    %648 = vmatprep.subr.mxu0 0.0
    %649 = vmatpush1.msra.mxu0 0.0
    %650 = vmatprep.subr.mxu0 0.0
    %651 = vmatpush1.msra.mxu0 0.0
    %652 = vmatprep.subr.mxu0 0.0
    %653 = vmatpush1.msra.mxu0 0.0
    %654 = vmatprep.subr.mxu0 0.0
    %655 = vmatpush1.msra.mxu0 0.0
    %656 = vmatprep.subr.mxu0 0.0
    %657 = vmatpush1.msra.mxu0 0.0
    %658 = vmatprep.subr.mxu0 0.0
    %659 = vmatpush1.msra.mxu0 0.0
    %660 = vmatprep.subr.mxu0 0.0
    %661 = vmatpush1.msra.mxu0 0.0
    %662 = vmatprep.subr.mxu0 0.0
    %663 = vmatpush1.msra.mxu0 0.0
    %664 = vmatprep.mubr.f32.mxu0 0.0
    %665 = vmatmul.mubr.f32.gmra.mrb[0].mxu0 %v598
    %v666 = vpop.f32.mrb[0].mxu0
    %v667 = vadd.f32 0.0, %v666
    %v668 = vpop.f32.mrb[0].mxu0
    %669 = vdwg.mxu0
    %v670 = vadd.f32 %v595, %v667
    %v671 = vxor.u32 %v670, 2147483648
    %v672 = vmul.f32 %v671, 1.442695
    %v673 = vpow.pop %v672
    %v674 = vadd.f32 %v673, 1.0
    %v675 = vrcp.pop %v674
    %v676 = vmul.f32 1.0, %v675
    %v677 = vtanh.pop %v670
    %v678 = vmul.f32 %v676, 0.0
    %680 = vrot.lane.b32.xlu0 %v677, 64
    %v681 = vpop.permute.xlu0 %680
    %v683 = vmul.f32 %v676, %v681
    %685 = vrot.lane.b32.xlu0 %v683, 32
    %v686 = vpop.permute.xlu0 %685
    %v688 = vadd.f32 %v678, %v686
    %v689 = vtanh.pop %v688
    %691 = vrot.lane.b32.xlu0 %v689, 64
    %v692 = vpop.permute.xlu0 %691
    %v694 = vmul.f32 %v676, %v692
    %v695 = vld [vmem:[#allocation2 + $0x8] sm:$0xff]
    %697 = vrot.lane.b32.xlu0 %v694, 32
    %v698 = vpop.permute.xlu0 %697
    %v699 = vsel %vm596, %v698, 0
    %701 = vmatprep.subr.mxu0 0.0
    %702 = vmatpush1.msra.mxu0 %v591
    %703 = vmatprep.subr.mxu0 0.0
    %704 = vmatpush1.msra.mxu0 %v592
    %705 = vmatprep.subr.mxu0 0.0
    %706 = vmatpush1.msra.mxu0 %v593
    %707 = vmatprep.subr.mxu0 0.0
    %708 = vmatpush1.msra.mxu0 %v594
    %709 = vmatprep.subr.mxu0 0.0
    %710 = vmatpush1.msra.mxu0 0.0
    %711 = vmatprep.subr.mxu0 0.0
    %712 = vmatpush1.msra.mxu0 0.0
    %713 = vmatprep.subr.mxu0 0.0
    %714 = vmatpush1.msra.mxu0 0.0
    %715 = vmatprep.subr.mxu0 0.0
    %716 = vmatpush1.msra.mxu0 0.0
    %717 = vmatprep.subr.mxu0 0.0
    %718 = vmatpush1.msra.mxu0 0.0
    %719 = vmatprep.subr.mxu0 0.0
    %720 = vmatpush1.msra.mxu0 0.0
    %721 = vmatprep.subr.mxu0 0.0
    %722 = vmatpush1.msra.mxu0 0.0
    %723 = vmatprep.subr.mxu0 0.0
    %724 = vmatpush1.msra.mxu0 0.0
    %725 = vmatprep.subr.mxu0 0.0
    %726 = vmatpush1.msra.mxu0 0.0
    %727 = vmatprep.subr.mxu0 0.0
    %728 = vmatpush1.msra.mxu0 0.0
    %729 = vmatprep.subr.mxu0 0.0
    %730 = vmatpush1.msra.mxu0 0.0
    %731 = vmatprep.subr.mxu0 0.0
    %732 = vmatpush1.msra.mxu0 0.0
    %733 = vmatprep.subr.mxu0 0.0
    %734 = vmatpush1.msra.mxu0 0.0
    %735 = vmatprep.subr.mxu0 0.0
    %736 = vmatpush1.msra.mxu0 0.0
    %737 = vmatprep.subr.mxu0 0.0
    %738 = vmatpush1.msra.mxu0 0.0
    %739 = vmatprep.subr.mxu0 0.0
    %740 = vmatpush1.msra.mxu0 0.0
    %741 = vmatprep.subr.mxu0 0.0
    %742 = vmatpush1.msra.mxu0 0.0
    %743 = vmatprep.subr.mxu0 0.0
    %744 = vmatpush1.msra.mxu0 0.0
    %745 = vmatprep.subr.mxu0 0.0
    %746 = vmatpush1.msra.mxu0 0.0
    %747 = vmatprep.subr.mxu0 0.0
    %748 = vmatpush1.msra.mxu0 0.0
    %749 = vmatprep.subr.mxu0 0.0
    %750 = vmatpush1.msra.mxu0 0.0
    %751 = vmatprep.subr.mxu0 0.0
    %752 = vmatpush1.msra.mxu0 0.0
    %753 = vmatprep.subr.mxu0 0.0
    %754 = vmatpush1.msra.mxu0 0.0
    %755 = vmatprep.subr.mxu0 0.0
    %756 = vmatpush1.msra.mxu0 0.0
    %757 = vmatprep.subr.mxu0 0.0
    %758 = vmatpush1.msra.mxu0 0.0
    %759 = vmatprep.subr.mxu0 0.0
    %760 = vmatpush1.msra.mxu0 0.0
    %761 = vmatprep.subr.mxu0 0.0
    %762 = vmatpush1.msra.mxu0 0.0
    %763 = vmatprep.subr.mxu0 0.0
    %764 = vmatpush1.msra.mxu0 0.0
    %765 = vmatprep.mubr.f32.mxu0 0.0
    %766 = vmatmul.mubr.f32.gmra.mrb[0].mxu0 %v699
    %v767 = vpop.f32.mrb[0].mxu0
    %v768 = vadd.f32 0.0, %v767
    %v769 = vpop.f32.mrb[0].mxu0
    %770 = vdwg.mxu0
    %v771 = vadd.f32 %v695, %v768
    %v772 = vxor.u32 %v771, 2147483648
    %v773 = vmul.f32 %v772, 1.442695
    %v774 = vpow.pop %v773
    %v775 = vadd.f32 %v774, 1.0
    %v776 = vrcp.pop %v775
    %v777 = vmul.f32 1.0, %v776
    %v778 = vtanh.pop %v771
    %v779 = vmul.f32 %v777, %v688
    %781 = vrot.lane.b32.xlu0 %v778, 64
    %v782 = vpop.permute.xlu0 %781
    %v784 = vmul.f32 %v777, %v782
    %786 = vrot.lane.b32.xlu0 %v784, 32
    %v787 = vpop.permute.xlu0 %786
    %v789 = vadd.f32 %v779, %v787
    %v790 = vtanh.pop %v789
    %792 = vrot.lane.b32.xlu0 %v790, 64
    %v793 = vpop.permute.xlu0 %792
    %v795 = vmul.f32 %v777, %v793
    %v796 = vld [vmem:[#allocation2 + $0x10] sm:$0xff]
    %798 = vrot.lane.b32.xlu0 %v795, 32
    %v799 = vpop.permute.xlu0 %798
    %v800 = vsel %vm596, %v799, 0
    %802 = vmatprep.subr.mxu0 0.0
    %803 = vmatpush1.msra.mxu0 %v591
    %804 = vmatprep.subr.mxu0 0.0
    %805 = vmatpush1.msra.mxu0 %v592
    %806 = vmatprep.subr.mxu0 0.0
    %807 = vmatpush1.msra.mxu0 %v593
    %808 = vmatprep.subr.mxu0 0.0
    %809 = vmatpush1.msra.mxu0 %v594
    %810 = vmatprep.subr.mxu0 0.0
    %811 = vmatpush1.msra.mxu0 0.0
    %812 = vmatprep.subr.mxu0 0.0
    %813 = vmatpush1.msra.mxu0 0.0
    %814 = vmatprep.subr.mxu0 0.0
    %815 = vmatpush1.msra.mxu0 0.0
    %816 = vmatprep.subr.mxu0 0.0
    %817 = vmatpush1.msra.mxu0 0.0
    %818 = vmatprep.subr.mxu0 0.0
    %819 = vmatpush1.msra.mxu0 0.0
    %820 = vmatprep.subr.mxu0 0.0
    %821 = vmatpush1.msra.mxu0 0.0
    %822 = vmatprep.subr.mxu0 0.0
    %823 = vmatpush1.msra.mxu0 0.0
    %824 = vmatprep.subr.mxu0 0.0
    %825 = vmatpush1.msra.mxu0 0.0
    %826 = vmatprep.subr.mxu0 0.0
    %827 = vmatpush1.msra.mxu0 0.0
    %828 = vmatprep.subr.mxu0 0.0
    %829 = vmatpush1.msra.mxu0 0.0
    %830 = vmatprep.subr.mxu0 0.0
    %831 = vmatpush1.msra.mxu0 0.0
    %832 = vmatprep.subr.mxu0 0.0
    %833 = vmatpush1.msra.mxu0 0.0
    %834 = vmatprep.subr.mxu0 0.0
    %835 = vmatpush1.msra.mxu0 0.0
    %836 = vmatprep.subr.mxu0 0.0
    %837 = vmatpush1.msra.mxu0 0.0
    %838 = vmatprep.subr.mxu0 0.0
    %839 = vmatpush1.msra.mxu0 0.0
    %840 = vmatprep.subr.mxu0 0.0
    %841 = vmatpush1.msra.mxu0 0.0
    %842 = vmatprep.subr.mxu0 0.0
    %843 = vmatpush1.msra.mxu0 0.0
    %844 = vmatprep.subr.mxu0 0.0
    %845 = vmatpush1.msra.mxu0 0.0
    %846 = vmatprep.subr.mxu0 0.0
    %847 = vmatpush1.msra.mxu0 0.0
    %848 = vmatprep.subr.mxu0 0.0
    %849 = vmatpush1.msra.mxu0 0.0
    %850 = vmatprep.subr.mxu0 0.0
    %851 = vmatpush1.msra.mxu0 0.0
    %852 = vmatprep.subr.mxu0 0.0
    %853 = vmatpush1.msra.mxu0 0.0
    %854 = vmatprep.subr.mxu0 0.0
    %855 = vmatpush1.msra.mxu0 0.0
    %856 = vmatprep.subr.mxu0 0.0
    %857 = vmatpush1.msra.mxu0 0.0
    %858 = vmatprep.subr.mxu0 0.0
    %859 = vmatpush1.msra.mxu0 0.0
    %860 = vmatprep.subr.mxu0 0.0
    %861 = vmatpush1.msra.mxu0 0.0
    %862 = vmatprep.subr.mxu0 0.0
    %863 = vmatpush1.msra.mxu0 0.0
    %864 = vmatprep.subr.mxu0 0.0
    %865 = vmatpush1.msra.mxu0 0.0
    %866 = vmatprep.mubr.f32.mxu0 0.0
    %867 = vmatmul.mubr.f32.gmra.mrb[0].mxu0 %v800
    %v868 = vpop.f32.mrb[0].mxu0
    %v869 = vadd.f32 0.0, %v868
    %v870 = vpop.f32.mrb[0].mxu0
    %871 = vdwg.mxu0
    %v872 = vadd.f32 %v796, %v869
    %v873 = vxor.u32 %v872, 2147483648
    %v874 = vmul.f32 %v873, 1.442695
    %v875 = vpow.pop %v874
    %v876 = vadd.f32 %v875, 1.0
    %v877 = vrcp.pop %v876
    %v878 = vmul.f32 1.0, %v877
    %v879 = vtanh.pop %v872
    %v880 = vmul.f32 %v878, %v789
    %882 = vrot.lane.b32.xlu0 %v879, 64
    %v883 = vpop.permute.xlu0 %882
    %v885 = vmul.f32 %v878, %v883
    %887 = vrot.lane.b32.xlu0 %v885, 32
    %v888 = vpop.permute.xlu0 %887
    %v890 = vadd.f32 %v880, %v888
    %v891 = vtanh.pop %v890
    %893 = vrot.lane.b32.xlu0 %v891, 64
    %v894 = vpop.permute.xlu0 %893
    %v896 = vmul.f32 %v878, %v894
    %v897 = vld [vmem:[#allocation2 + $0x18] sm:$0xff]
    %899 = vrot.lane.b32.xlu0 %v896, 32
    %v900 = vpop.permute.xlu0 %899
    %v901 = vsel %vm596, %v900, 0
    %903 = vmatprep.subr.mxu0 0.0
    %904 = vmatpush1.msra.mxu0 %v591
    %905 = vmatprep.subr.mxu0 0.0
    %906 = vmatpush1.msra.mxu0 %v592
    %907 = vmatprep.subr.mxu0 0.0
    %908 = vmatpush1.msra.mxu0 %v593
    %909 = vmatprep.subr.mxu0 0.0
    %910 = vmatpush1.msra.mxu0 %v594
    %911 = vmatprep.subr.mxu0 0.0
    %912 = vmatpush1.msra.mxu0 0.0
    %913 = vmatprep.subr.mxu0 0.0
    %914 = vmatpush1.msra.mxu0 0.0
    %915 = vmatprep.subr.mxu0 0.0
    %916 = vmatpush1.msra.mxu0 0.0
    %917 = vmatprep.subr.mxu0 0.0
    %918 = vmatpush1.msra.mxu0 0.0
    %919 = vmatprep.subr.mxu0 0.0
    %920 = vmatpush1.msra.mxu0 0.0
    %921 = vmatprep.subr.mxu0 0.0
    %922 = vmatpush1.msra.mxu0 0.0
    %923 = vmatprep.subr.mxu0 0.0
    %924 = vmatpush1.msra.mxu0 0.0
    %925 = vmatprep.subr.mxu0 0.0
    %926 = vmatpush1.msra.mxu0 0.0
    %927 = vmatprep.subr.mxu0 0.0
    %928 = vmatpush1.msra.mxu0 0.0
    %929 = vmatprep.subr.mxu0 0.0
    %930 = vmatpush1.msra.mxu0 0.0
    %931 = vmatprep.subr.mxu0 0.0
    %932 = vmatpush1.msra.mxu0 0.0
    %933 = vmatprep.subr.mxu0 0.0
    %934 = vmatpush1.msra.mxu0 0.0
    %935 = vmatprep.subr.mxu0 0.0
    %936 = vmatpush1.msra.mxu0 0.0
    %937 = vmatprep.subr.mxu0 0.0
    %938 = vmatpush1.msra.mxu0 0.0
    %939 = vmatprep.subr.mxu0 0.0
    %940 = vmatpush1.msra.mxu0 0.0
    %941 = vmatprep.subr.mxu0 0.0
    %942 = vmatpush1.msra.mxu0 0.0
    %943 = vmatprep.subr.mxu0 0.0
    %944 = vmatpush1.msra.mxu0 0.0
    %945 = vmatprep.subr.mxu0 0.0
    %946 = vmatpush1.msra.mxu0 0.0
    %947 = vmatprep.subr.mxu0 0.0
    %948 = vmatpush1.msra.mxu0 0.0
    %949 = vmatprep.subr.mxu0 0.0
    %950 = vmatpush1.msra.mxu0 0.0
    %951 = vmatprep.subr.mxu0 0.0
    %952 = vmatpush1.msra.mxu0 0.0
    %953 = vmatprep.subr.mxu0 0.0
    %954 = vmatpush1.msra.mxu0 0.0
    %955 = vmatprep.subr.mxu0 0.0
    %956 = vmatpush1.msra.mxu0 0.0
    %957 = vmatprep.subr.mxu0 0.0
    %958 = vmatpush1.msra.mxu0 0.0
    %959 = vmatprep.subr.mxu0 0.0
    %960 = vmatpush1.msra.mxu0 0.0
    %961 = vmatprep.subr.mxu0 0.0
    %962 = vmatpush1.msra.mxu0 0.0
    %963 = vmatprep.subr.mxu0 0.0
    %964 = vmatpush1.msra.mxu0 0.0
    %965 = vmatprep.subr.mxu0 0.0
    %966 = vmatpush1.msra.mxu0 0.0
    %967 = vmatprep.mubr.f32.mxu0 0.0
    %968 = vmatmul.mubr.f32.gmra.mrb[0].mxu0 %v901
    %v969 = vpop.f32.mrb[0].mxu0
    %v970 = vadd.f32 0.0, %v969
    %v971 = vpop.f32.mrb[0].mxu0
    %972 = vdwg.mxu0
    %v973 = vadd.f32 %v897, %v970
    %v974 = vxor.u32 %v973, 2147483648
    %v975 = vmul.f32 %v974, 1.442695
    %v976 = vpow.pop %v975
    %v977 = vadd.f32 %v976, 1.0
    %v978 = vrcp.pop %v977
    %v979 = vmul.f32 1.0, %v978
    %v980 = vtanh.pop %v973
    %v981 = vmul.f32 %v979, %v890
    %983 = vrot.lane.b32.xlu0 %v980, 64
    %v984 = vpop.permute.xlu0 %983
    %v986 = vmul.f32 %v979, %v984
    %988 = vrot.lane.b32.xlu0 %v986, 32
    %v989 = vpop.permute.xlu0 %988
    %v991 = vadd.f32 %v981, %v989
    %v992 = vtanh.pop %v991
    %994 = vrot.lane.b32.xlu0 %v992, 64
    %v995 = vpop.permute.xlu0 %994
    %v997 = vmul.f32 %v979, %v995
    %v998 = vld [vmem:[#allocation2 + $0x20] sm:$0xff]
    %1000 = vrot.lane.b32.xlu0 %v997, 32
    %v1001 = vpop.permute.xlu0 %1000
    %v1002 = vsel %vm596, %v1001, 0
    %1004 = vmatprep.subr.mxu0 0.0
    %1005 = vmatpush1.msra.mxu0 %v591
    %1006 = vmatprep.subr.mxu0 0.0
    %1007 = vmatpush1.msra.mxu0 %v592
    %1008 = vmatprep.subr.mxu0 0.0
    %1009 = vmatpush1.msra.mxu0 %v593
    %1010 = vmatprep.subr.mxu0 0.0
    %1011 = vmatpush1.msra.mxu0 %v594
    %1012 = vmatprep.subr.mxu0 0.0
    %1013 = vmatpush1.msra.mxu0 0.0
    %1014 = vmatprep.subr.mxu0 0.0
    %1015 = vmatpush1.msra.mxu0 0.0
    %1016 = vmatprep.subr.mxu0 0.0
    %1017 = vmatpush1.msra.mxu0 0.0
    %1018 = vmatprep.subr.mxu0 0.0
    %1019 = vmatpush1.msra.mxu0 0.0
    %1020 = vmatprep.subr.mxu0 0.0
    %1021 = vmatpush1.msra.mxu0 0.0
    %1022 = vmatprep.subr.mxu0 0.0
    %1023 = vmatpush1.msra.mxu0 0.0
    %1024 = vmatprep.subr.mxu0 0.0
    %1025 = vmatpush1.msra.mxu0 0.0
    %1026 = vmatprep.subr.mxu0 0.0
    %1027 = vmatpush1.msra.mxu0 0.0
    %1028 = vmatprep.subr.mxu0 0.0
    %1029 = vmatpush1.msra.mxu0 0.0
    %1030 = vmatprep.subr.mxu0 0.0
    %1031 = vmatpush1.msra.mxu0 0.0
    %1032 = vmatprep.subr.mxu0 0.0
    %1033 = vmatpush1.msra.mxu0 0.0
    %1034 = vmatprep.subr.mxu0 0.0
    %1035 = vmatpush1.msra.mxu0 0.0
    %1036 = vmatprep.subr.mxu0 0.0
    %1037 = vmatpush1.msra.mxu0 0.0
    %1038 = vmatprep.subr.mxu0 0.0
    %1039 = vmatpush1.msra.mxu0 0.0
    %1040 = vmatprep.subr.mxu0 0.0
    %1041 = vmatpush1.msra.mxu0 0.0
    %1042 = vmatprep.subr.mxu0 0.0
    %1043 = vmatpush1.msra.mxu0 0.0
    %1044 = vmatprep.subr.mxu0 0.0
    %1045 = vmatpush1.msra.mxu0 0.0
    %1046 = vmatprep.subr.mxu0 0.0
    %1047 = vmatpush1.msra.mxu0 0.0
    %1048 = vmatprep.subr.mxu0 0.0
    %1049 = vmatpush1.msra.mxu0 0.0
    %1050 = vmatprep.subr.mxu0 0.0
    %1051 = vmatpush1.msra.mxu0 0.0
    %1052 = vmatprep.subr.mxu0 0.0
    %1053 = vmatpush1.msra.mxu0 0.0
    %1054 = vmatprep.subr.mxu0 0.0
    %1055 = vmatpush1.msra.mxu0 0.0
    %1056 = vmatprep.subr.mxu0 0.0
    %1057 = vmatpush1.msra.mxu0 0.0
    %1058 = vmatprep.subr.mxu0 0.0
    %1059 = vmatpush1.msra.mxu0 0.0
    %1060 = vmatprep.subr.mxu0 0.0
    %1061 = vmatpush1.msra.mxu0 0.0
    %1062 = vmatprep.subr.mxu0 0.0
    %1063 = vmatpush1.msra.mxu0 0.0
    %1064 = vmatprep.subr.mxu0 0.0
    %1065 = vmatpush1.msra.mxu0 0.0
    %1066 = vmatprep.subr.mxu0 0.0
    %1067 = vmatpush1.msra.mxu0 0.0
    %1068 = vmatprep.mubr.f32.mxu0 0.0
    %1069 = vmatmul.mubr.f32.gmra.mrb[0].mxu0 %v1002
    %v1070 = vpop.f32.mrb[0].mxu0
    %v1071 = vadd.f32 0.0, %v1070
    %v1072 = vpop.f32.mrb[0].mxu0
    %1073 = vdwg.mxu0
    %v1074 = vadd.f32 %v998, %v1071
    %v1075 = vxor.u32 %v1074, 2147483648
    %v1076 = vmul.f32 %v1075, 1.442695
    %v1077 = vpow.pop %v1076
    %v1078 = vadd.f32 %v1077, 1.0
    %v1079 = vrcp.pop %v1078
    %v1080 = vmul.f32 1.0, %v1079
    %v1081 = vtanh.pop %v1074
    %v1082 = vmul.f32 %v1080, %v991
    %1084 = vrot.lane.b32.xlu0 %v1081, 64
    %v1085 = vpop.permute.xlu0 %1084
    %v1087 = vmul.f32 %v1080, %v1085
    %1089 = vrot.lane.b32.xlu0 %v1087, 32
    %v1090 = vpop.permute.xlu0 %1089
    %v1092 = vadd.f32 %v1082, %v1090
    %v1093 = vtanh.pop %v1092
    %1095 = vrot.lane.b32.xlu0 %v1093, 64
    %v1096 = vpop.permute.xlu0 %1095
    %v1098 = vmul.f32 %v1080, %v1096
    %v1099 = vld [vmem:[#allocation2 + $0x28] sm:$0xff]
    %1101 = vrot.lane.b32.xlu0 %v1098, 32
    %v1102 = vpop.permute.xlu0 %1101
    %v1103 = vsel %vm596, %v1102, 0
    %1105 = vmatprep.subr.mxu0 0.0
    %1106 = vmatpush1.msra.mxu0 %v591
    %1107 = vmatprep.subr.mxu0 0.0
    %1108 = vmatpush1.msra.mxu0 %v592
    %1109 = vmatprep.subr.mxu0 0.0
    %1110 = vmatpush1.msra.mxu0 %v593
    %1111 = vmatprep.subr.mxu0 0.0
    %1112 = vmatpush1.msra.mxu0 %v594
    %1113 = vmatprep.subr.mxu0 0.0
    %1114 = vmatpush1.msra.mxu0 0.0
    %1115 = vmatprep.subr.mxu0 0.0
    %1116 = vmatpush1.msra.mxu0 0.0
    %1117 = vmatprep.subr.mxu0 0.0
    %1118 = vmatpush1.msra.mxu0 0.0
    %1119 = vmatprep.subr.mxu0 0.0
    %1120 = vmatpush1.msra.mxu0 0.0
    %1121 = vmatprep.subr.mxu0 0.0
    %1122 = vmatpush1.msra.mxu0 0.0
    %1123 = vmatprep.subr.mxu0 0.0
    %1124 = vmatpush1.msra.mxu0 0.0
    %1125 = vmatprep.subr.mxu0 0.0
    %1126 = vmatpush1.msra.mxu0 0.0
    %1127 = vmatprep.subr.mxu0 0.0
    %1128 = vmatpush1.msra.mxu0 0.0
    %1129 = vmatprep.subr.mxu0 0.0
    %1130 = vmatpush1.msra.mxu0 0.0
    %1131 = vmatprep.subr.mxu0 0.0
    %1132 = vmatpush1.msra.mxu0 0.0
    %1133 = vmatprep.subr.mxu0 0.0
    %1134 = vmatpush1.msra.mxu0 0.0
    %1135 = vmatprep.subr.mxu0 0.0
    %1136 = vmatpush1.msra.mxu0 0.0
    %1137 = vmatprep.subr.mxu0 0.0
    %1138 = vmatpush1.msra.mxu0 0.0
    %1139 = vmatprep.subr.mxu0 0.0
    %1140 = vmatpush1.msra.mxu0 0.0
    %1141 = vmatprep.subr.mxu0 0.0
    %1142 = vmatpush1.msra.mxu0 0.0
    %1143 = vmatprep.subr.mxu0 0.0
    %1144 = vmatpush1.msra.mxu0 0.0
    %1145 = vmatprep.subr.mxu0 0.0
    %1146 = vmatpush1.msra.mxu0 0.0
    %1147 = vmatprep.subr.mxu0 0.0
    %1148 = vmatpush1.msra.mxu0 0.0
    %1149 = vmatprep.subr.mxu0 0.0
    %1150 = vmatpush1.msra.mxu0 0.0
    %1151 = vmatprep.subr.mxu0 0.0
    %1152 = vmatpush1.msra.mxu0 0.0
    %1153 = vmatprep.subr.mxu0 0.0
    %1154 = vmatpush1.msra.mxu0 0.0
    %1155 = vmatprep.subr.mxu0 0.0
    %1156 = vmatpush1.msra.mxu0 0.0
    %1157 = vmatprep.subr.mxu0 0.0
    %1158 = vmatpush1.msra.mxu0 0.0
    %1159 = vmatprep.subr.mxu0 0.0
    %1160 = vmatpush1.msra.mxu0 0.0
    %1161 = vmatprep.subr.mxu0 0.0
    %1162 = vmatpush1.msra.mxu0 0.0
    %1163 = vmatprep.subr.mxu0 0.0
    %1164 = vmatpush1.msra.mxu0 0.0
    %1165 = vmatprep.subr.mxu0 0.0
    %1166 = vmatpush1.msra.mxu0 0.0
    %1167 = vmatprep.subr.mxu0 0.0
    %1168 = vmatpush1.msra.mxu0 0.0
    %1169 = vmatprep.mubr.f32.mxu0 0.0
    %1170 = vmatmul.mubr.f32.gmra.mrb[0].mxu0 %v1103
    %v1171 = vpop.f32.mrb[0].mxu0
    %v1172 = vadd.f32 0.0, %v1171
    %v1173 = vpop.f32.mrb[0].mxu0
    %1174 = vdwg.mxu0
    %v1175 = vadd.f32 %v1099, %v1172
    %v1176 = vxor.u32 %v1175, 2147483648
    %v1177 = vmul.f32 %v1176, 1.442695
    %v1178 = vpow.pop %v1177
    %v1179 = vadd.f32 %v1178, 1.0
    %v1180 = vrcp.pop %v1179
    %v1181 = vmul.f32 1.0, %v1180
    %v1182 = vtanh.pop %v1175
    %v1183 = vmul.f32 %v1181, %v1092
    %1185 = vrot.lane.b32.xlu0 %v1182, 64
    %v1186 = vpop.permute.xlu0 %1185
    %v1188 = vmul.f32 %v1181, %v1186
    %1190 = vrot.lane.b32.xlu0 %v1188, 32
    %v1191 = vpop.permute.xlu0 %1190
    %v1193 = vadd.f32 %v1183, %v1191
    %v1194 = vtanh.pop %v1193
    %1196 = vrot.lane.b32.xlu0 %v1194, 64
    %v1197 = vpop.permute.xlu0 %1196
    %v1199 = vmul.f32 %v1181, %v1197
    %v1200 = vld [vmem:[#allocation2 + $0x30] sm:$0xff]
    %1202 = vrot.lane.b32.xlu0 %v1199, 32
    %v1203 = vpop.permute.xlu0 %1202
    %v1204 = vsel %vm596, %v1203, 0
    %1206 = vmatprep.subr.mxu0 0.0
    %1207 = vmatpush1.msra.mxu0 %v591
    %1208 = vmatprep.subr.mxu0 0.0
    %1209 = vmatpush1.msra.mxu0 %v592
    %1210 = vmatprep.subr.mxu0 0.0
    %1211 = vmatpush1.msra.mxu0 %v593
    %1212 = vmatprep.subr.mxu0 0.0
    %1213 = vmatpush1.msra.mxu0 %v594
    %1214 = vmatprep.subr.mxu0 0.0
    %1215 = vmatpush1.msra.mxu0 0.0
    %1216 = vmatprep.subr.mxu0 0.0
    %1217 = vmatpush1.msra.mxu0 0.0
    %1218 = vmatprep.subr.mxu0 0.0
    %1219 = vmatpush1.msra.mxu0 0.0
    %1220 = vmatprep.subr.mxu0 0.0
    %1221 = vmatpush1.msra.mxu0 0.0
    %1222 = vmatprep.subr.mxu0 0.0
    %1223 = vmatpush1.msra.mxu0 0.0
    %1224 = vmatprep.subr.mxu0 0.0
    %1225 = vmatpush1.msra.mxu0 0.0
    %1226 = vmatprep.subr.mxu0 0.0
    %1227 = vmatpush1.msra.mxu0 0.0
    %1228 = vmatprep.subr.mxu0 0.0
    %1229 = vmatpush1.msra.mxu0 0.0
    %1230 = vmatprep.subr.mxu0 0.0
    %1231 = vmatpush1.msra.mxu0 0.0
    %1232 = vmatprep.subr.mxu0 0.0
    %1233 = vmatpush1.msra.mxu0 0.0
    %1234 = vmatprep.subr.mxu0 0.0
    %1235 = vmatpush1.msra.mxu0 0.0
    %1236 = vmatprep.subr.mxu0 0.0
    %1237 = vmatpush1.msra.mxu0 0.0
    %1238 = vmatprep.subr.mxu0 0.0
    %1239 = vmatpush1.msra.mxu0 0.0
    %1240 = vmatprep.subr.mxu0 0.0
    %1241 = vmatpush1.msra.mxu0 0.0
    %1242 = vmatprep.subr.mxu0 0.0
    %1243 = vmatpush1.msra.mxu0 0.0
    %1244 = vmatprep.subr.mxu0 0.0
    %1245 = vmatpush1.msra.mxu0 0.0
    %1246 = vmatprep.subr.mxu0 0.0
    %1247 = vmatpush1.msra.mxu0 0.0
    %1248 = vmatprep.subr.mxu0 0.0
    %1249 = vmatpush1.msra.mxu0 0.0
    %1250 = vmatprep.subr.mxu0 0.0
    %1251 = vmatpush1.msra.mxu0 0.0
    %1252 = vmatprep.subr.mxu0 0.0
    %1253 = vmatpush1.msra.mxu0 0.0
    %1254 = vmatprep.subr.mxu0 0.0
    %1255 = vmatpush1.msra.mxu0 0.0
    %1256 = vmatprep.subr.mxu0 0.0
    %1257 = vmatpush1.msra.mxu0 0.0
    %1258 = vmatprep.subr.mxu0 0.0
    %1259 = vmatpush1.msra.mxu0 0.0
    %1260 = vmatprep.subr.mxu0 0.0
    %1261 = vmatpush1.msra.mxu0 0.0
    %1262 = vmatprep.subr.mxu0 0.0
    %1263 = vmatpush1.msra.mxu0 0.0
    %1264 = vmatprep.subr.mxu0 0.0
    %1265 = vmatpush1.msra.mxu0 0.0
    %1266 = vmatprep.subr.mxu0 0.0
    %1267 = vmatpush1.msra.mxu0 0.0
    %1268 = vmatprep.subr.mxu0 0.0
    %1269 = vmatpush1.msra.mxu0 0.0
    %1270 = vmatprep.mubr.f32.mxu0 0.0
    %1271 = vmatmul.mubr.f32.gmra.mrb[0].mxu0 %v1204
    %v1272 = vpop.f32.mrb[0].mxu0
    %v1273 = vadd.f32 0.0, %v1272
    %v1274 = vpop.f32.mrb[0].mxu0
    %1275 = vdwg.mxu0
    %v1276 = vadd.f32 %v1200, %v1273
    %v1277 = vxor.u32 %v1276, 2147483648
    %v1278 = vmul.f32 %v1277, 1.442695
    %v1279 = vpow.pop %v1278
    %v1280 = vadd.f32 %v1279, 1.0
    %v1281 = vrcp.pop %v1280
    %v1282 = vmul.f32 1.0, %v1281
    %v1283 = vtanh.pop %v1276
    %v1284 = vmul.f32 %v1282, %v1193
    %1286 = vrot.lane.b32.xlu0 %v1283, 64
    %v1287 = vpop.permute.xlu0 %1286
    %v1289 = vmul.f32 %v1282, %v1287
    %1291 = vrot.lane.b32.xlu0 %v1289, 32
    %v1292 = vpop.permute.xlu0 %1291
    %v1294 = vadd.f32 %v1284, %v1292
    %v1295 = vtanh.pop %v1294
    %1297 = vrot.lane.b32.xlu0 %v1295, 64
    %v1298 = vpop.permute.xlu0 %1297
    %v1300 = vmul.f32 %v1282, %v1298
    %v1301 = vld [vmem:[#allocation2 + $0x38] sm:$0xff]
    %1303 = vrot.lane.b32.xlu0 %v1300, 32
    %v1304 = vpop.permute.xlu0 %1303
    %v1305 = vsel %vm596, %v1304, 0
    %1307 = vmatprep.subr.mxu0 0.0
    %1308 = vmatpush1.msra.mxu0 %v591
    %1309 = vmatprep.subr.mxu0 0.0
    %1310 = vmatpush1.msra.mxu0 %v592
    %1311 = vmatprep.subr.mxu0 0.0
    %1312 = vmatpush1.msra.mxu0 %v593
    %1313 = vmatprep.subr.mxu0 0.0
    %1314 = vmatpush1.msra.mxu0 %v594
    %1315 = vmatprep.subr.mxu0 0.0
    %1316 = vmatpush1.msra.mxu0 0.0
    %1317 = vmatprep.subr.mxu0 0.0
    %1318 = vmatpush1.msra.mxu0 0.0
    %1319 = vmatprep.subr.mxu0 0.0
    %1320 = vmatpush1.msra.mxu0 0.0
    %1321 = vmatprep.subr.mxu0 0.0
    %1322 = vmatpush1.msra.mxu0 0.0
    %1323 = vmatprep.subr.mxu0 0.0
    %1324 = vmatpush1.msra.mxu0 0.0
    %1325 = vmatprep.subr.mxu0 0.0
    %1326 = vmatpush1.msra.mxu0 0.0
    %1327 = vmatprep.subr.mxu0 0.0
    %1328 = vmatpush1.msra.mxu0 0.0
    %1329 = vmatprep.subr.mxu0 0.0
    %1330 = vmatpush1.msra.mxu0 0.0
    %1331 = vmatprep.subr.mxu0 0.0
    %1332 = vmatpush1.msra.mxu0 0.0
    %1333 = vmatprep.subr.mxu0 0.0
    %1334 = vmatpush1.msra.mxu0 0.0
    %1335 = vmatprep.subr.mxu0 0.0
    %1336 = vmatpush1.msra.mxu0 0.0
    %1337 = vmatprep.subr.mxu0 0.0
    %1338 = vmatpush1.msra.mxu0 0.0
    %1339 = vmatprep.subr.mxu0 0.0
    %1340 = vmatpush1.msra.mxu0 0.0
    %1341 = vmatprep.subr.mxu0 0.0
    %1342 = vmatpush1.msra.mxu0 0.0
    %1343 = vmatprep.subr.mxu0 0.0
    %1344 = vmatpush1.msra.mxu0 0.0
    %1345 = vmatprep.subr.mxu0 0.0
    %1346 = vmatpush1.msra.mxu0 0.0
    %1347 = vmatprep.subr.mxu0 0.0
    %1348 = vmatpush1.msra.mxu0 0.0
    %1349 = vmatprep.subr.mxu0 0.0
    %1350 = vmatpush1.msra.mxu0 0.0
    %1351 = vmatprep.subr.mxu0 0.0
    %1352 = vmatpush1.msra.mxu0 0.0
    %1353 = vmatprep.subr.mxu0 0.0
    %1354 = vmatpush1.msra.mxu0 0.0
    %1355 = vmatprep.subr.mxu0 0.0
    %1356 = vmatpush1.msra.mxu0 0.0
    %1357 = vmatprep.subr.mxu0 0.0
    %1358 = vmatpush1.msra.mxu0 0.0
    %1359 = vmatprep.subr.mxu0 0.0
    %1360 = vmatpush1.msra.mxu0 0.0
    %1361 = vmatprep.subr.mxu0 0.0
    %1362 = vmatpush1.msra.mxu0 0.0
    %1363 = vmatprep.subr.mxu0 0.0
    %1364 = vmatpush1.msra.mxu0 0.0
    %1365 = vmatprep.subr.mxu0 0.0
    %1366 = vmatpush1.msra.mxu0 0.0
    %1367 = vmatprep.subr.mxu0 0.0
    %1368 = vmatpush1.msra.mxu0 0.0
    %1369 = vmatprep.subr.mxu0 0.0
    %1370 = vmatpush1.msra.mxu0 0.0
    %1371 = vmatprep.mubr.f32.mxu0 0.0
    %1372 = vmatmul.mubr.f32.gmra.mrb[0].mxu0 %v1305
    %v1373 = vpop.f32.mrb[0].mxu0
    %v1374 = vadd.f32 0.0, %v1373
    %v1375 = vpop.f32.mrb[0].mxu0
    %1376 = vdwg.mxu0
    %v1377 = vadd.f32 %v1301, %v1374
    %v1378 = vxor.u32 %v1377, 2147483648
    %v1379 = vmul.f32 %v1378, 1.442695
    %v1380 = vpow.pop %v1379
    %v1381 = vadd.f32 %v1380, 1.0
    %v1382 = vrcp.pop %v1381
    %v1383 = vmul.f32 1.0, %v1382
    %v1384 = vtanh.pop %v1377
    %v1385 = vmul.f32 %v1383, %v1294
    %1387 = vrot.lane.b32.xlu0 %v1384, 64
    %v1388 = vpop.permute.xlu0 %1387
    %v1390 = vmul.f32 %v1383, %v1388
    %1392 = vrot.lane.b32.xlu0 %v1390, 32
    %v1393 = vpop.permute.xlu0 %1392
    %v1395 = vadd.f32 %v1385, %v1393
    %v1396 = vtanh.pop %v1395
    %1398 = vrot.lane.b32.xlu0 %v1396, 64
    %v1399 = vpop.permute.xlu0 %1398
    %v1401 = vmul.f32 %v1383, %v1399
    %v1402 = vld [vmem:[#allocation9] sm:$0xff]
    %v1403 = vld [vmem:[#allocation9 + $0x8] sm:$0xff]
    %v1404 = vld [vmem:[#allocation9 + $0x10] sm:$0xff]
    %v1405 = vld [vmem:[#allocation9 + $0x18] sm:$0xff]
    %v1406 = vld [vmem:[%s6] sm:$0x1]
    %v1408 = vlaneseq
    %v1409 = vshrl.u32 %v1408, 7
    %v1410 = vsub.s32 0, %v1409
    %v1411 = vrot.slane %v1406, %v1410
    %1414 = vrot.lane.b32.xlu0 %v1401, 32
    %v1415 = vpop.permute.xlu0 %1414
    %v1416 = vsel %vm596, %v1415, 0
    %1418 = vmatprep.subr.mxu0 0.0
    %1419 = vmatpush1.msra.mxu0 %v1402
    %1420 = vmatprep.subr.mxu0 0.0
    %1421 = vmatpush1.msra.mxu0 %v1403
    %1422 = vmatprep.subr.mxu0 0.0
    %1423 = vmatpush1.msra.mxu0 %v1404
    %1424 = vmatprep.subr.mxu0 0.0
    %1425 = vmatpush1.msra.mxu0 %v1405
    %1426 = vmatprep.subr.mxu0 0.0
    %1427 = vmatpush1.msra.mxu0 0.0
    %1428 = vmatprep.subr.mxu0 0.0
    %1429 = vmatpush1.msra.mxu0 0.0
    %1430 = vmatprep.subr.mxu0 0.0
    %1431 = vmatpush1.msra.mxu0 0.0
    %1432 = vmatprep.subr.mxu0 0.0
    %1433 = vmatpush1.msra.mxu0 0.0
    %1434 = vmatprep.subr.mxu0 0.0
    %1435 = vmatpush1.msra.mxu0 0.0
    %1436 = vmatprep.subr.mxu0 0.0
    %1437 = vmatpush1.msra.mxu0 0.0
    %1438 = vmatprep.subr.mxu0 0.0
    %1439 = vmatpush1.msra.mxu0 0.0
    %1440 = vmatprep.subr.mxu0 0.0
    %1441 = vmatpush1.msra.mxu0 0.0
    %1442 = vmatprep.subr.mxu0 0.0
    %1443 = vmatpush1.msra.mxu0 0.0
    %1444 = vmatprep.subr.mxu0 0.0
    %1445 = vmatpush1.msra.mxu0 0.0
    %1446 = vmatprep.subr.mxu0 0.0
    %1447 = vmatpush1.msra.mxu0 0.0
    %1448 = vmatprep.subr.mxu0 0.0
    %1449 = vmatpush1.msra.mxu0 0.0
    %1450 = vmatprep.subr.mxu0 0.0
    %1451 = vmatpush1.msra.mxu0 0.0
    %1452 = vmatprep.subr.mxu0 0.0
    %1453 = vmatpush1.msra.mxu0 0.0
    %1454 = vmatprep.subr.mxu0 0.0
    %1455 = vmatpush1.msra.mxu0 0.0
    %1456 = vmatprep.subr.mxu0 0.0
    %1457 = vmatpush1.msra.mxu0 0.0
    %1458 = vmatprep.subr.mxu0 0.0
    %1459 = vmatpush1.msra.mxu0 0.0
    %1460 = vmatprep.subr.mxu0 0.0
    %1461 = vmatpush1.msra.mxu0 0.0
    %1462 = vmatprep.subr.mxu0 0.0
    %1463 = vmatpush1.msra.mxu0 0.0
    %1464 = vmatprep.subr.mxu0 0.0
    %1465 = vmatpush1.msra.mxu0 0.0
    %1466 = vmatprep.subr.mxu0 0.0
    %1467 = vmatpush1.msra.mxu0 0.0
    %1468 = vmatprep.subr.mxu0 0.0
    %1469 = vmatpush1.msra.mxu0 0.0
    %1470 = vmatprep.subr.mxu0 0.0
    %1471 = vmatpush1.msra.mxu0 0.0
    %1472 = vmatprep.subr.mxu0 0.0
    %1473 = vmatpush1.msra.mxu0 0.0
    %1474 = vmatprep.subr.mxu0 0.0
    %1475 = vmatpush1.msra.mxu0 0.0
    %1476 = vmatprep.subr.mxu0 0.0
    %1477 = vmatpush1.msra.mxu0 0.0
    %1478 = vmatprep.subr.mxu0 0.0
    %1479 = vmatpush1.msra.mxu0 0.0
    %1480 = vmatprep.subr.mxu0 0.0
    %1481 = vmatpush1.msra.mxu0 0.0
    %1482 = vmatprep.mubr.f32.mxu0 0.0
    %1483 = vmatmul.mubr.f32.gmra.mrb[0].mxu0 %v1416
    %v1484 = vpop.f32.mrb[0].mxu0
    %v1485 = vadd.f32 %v1411, %v1484
    %v1486 = vpop.f32.mrb[0].mxu0
    %1487 = vdwg.mxu0
    %1488 = vmax.xlane.f32.xlu0 %v1485
    %v1489 = vpop.xlane.xlu0 %1488
    %v1490 = vsub.f32 %v1485, %v1489
    %v1491 = vmul.f32 %v1490, 1.442695
    %v1492 = vpow.pop %v1491
    %1493 = vadd.xlane.f32.xlu0 %v1492
    %v1494 = vpop.xlane.xlu0 %1493
    %v1495 = vlog2.pop %v1494
    %v1496 = vmul.f32 %v1495, 0.6931472
    %v1497 = vadd.f32 %v1496, %v1489
    %v1498 = vsub.f32 %v1485, %v1497
    %1499 = vst [vmem:[%s7] sm:$0xff] %v1498
    // Predicated region
    $region46: #{model_forward_batched.1} parent=1 // pred_check
      _
    $region47: #{model_forward_batched.1} parent=1 // pred_check_branch
      %1501 = sbr.rel (0) target = $region49
    $region48: #{model_forward_batched.1} parent=1 // pred_region
      _
    $region49: #{model_forward_batched.1} parent=1 // pred_fallthru
      _
    // Predicated region
    $region50: #{model_forward_batched.1} parent=1 // pred_check
      _
    $region51: #{model_forward_batched.1} parent=1 // pred_check_branch
      %1503 = sbr.rel (0) target = $region53
    $region52: #{model_forward_batched.1} parent=1 // pred_region
      _
    $region53: #{model_forward_batched.1} parent=1 // pred_fallthru
      _
    %1504 = vsyncpa [#allocation4], 1
    %1505 = vsyncpa [#allocation10], 1
    %1506 = vsyncpa [#allocation5], 1
    %1507 = vsyncpa [#allocation7], 1

</llo_original>
